<compile_context>
chip_gen: v5e
topology: v5e:2x2
jax: 0.10.0
libtpu: 0.0.40
codegen_flags: <defaults>
</compile_context>

<pallas_src>
import functools
import math

import jax
import jax.numpy as jnp
from jax.experimental import pallas as pl
from jax.experimental.pallas import tpu as pltpu

EPS = 1e-5
LANE = 128


def _round_up(x, m):
    return (x + m - 1) // m * m


# --------------------------- in-kernel helpers ------------------------------ #

def _ln_padded(x, g, b, inv_n):
    # LayerNorm over the *real* feature count. Padded tail columns of x are 0
    # and padded gamma/beta are 0, so padded columns remain exactly 0.
    s1 = jnp.sum(x, axis=-1, keepdims=True)
    s2 = jnp.sum(x * x, axis=-1, keepdims=True)
    mu = s1 * inv_n
    var = s2 * inv_n - mu * mu
    return (x - mu) * jax.lax.rsqrt(var + EPS) * g + b


def _attention_core(q2, k2, v2, nhead):
    # q2: (Tq, Dp), k2/v2: (Tk, Dp). 1/sqrt(hd) already folded into Wq.
    # Returns per-head context (H, Tq, hd_pad).
    dp = q2.shape[-1]
    hd_p = dp // nhead
    qh = jnp.stack([q2[:, h * hd_p:(h + 1) * hd_p] for h in range(nhead)])
    kh = jnp.stack([k2[:, h * hd_p:(h + 1) * hd_p] for h in range(nhead)])
    vh = jnp.stack([v2[:, h * hd_p:(h + 1) * hd_p] for h in range(nhead)])
    s = jnp.einsum("hqd,hkd->hqk", qh, kh, preferred_element_type=jnp.float32)
    s = s - jnp.max(s, axis=-1, keepdims=True)
    p = jnp.exp(s)
    # NOTE: pl.reciprocal(denom, approx=True) would move this divide to the EUP;
    # exact division is kept so the f32 reference check holds at 1e-4.
    p = p / jnp.sum(p, axis=-1, keepdims=True)
    return jnp.einsum("hqk,hkd->hqd", p, vh, preferred_element_type=jnp.float32)


def _head_out_proj(ctx, wo_heads, bo):
    # ctx: (H, T, hd_p), wo_heads: (H, hd_p, Dp) -> (T, Dp)
    per_head = jnp.einsum("hqd,hdk->hqk", ctx, wo_heads,
                          preferred_element_type=jnp.float32)
    return jnp.sum(per_head, axis=0) + bo


# ------------------------------ fused kernel -------------------------------- #

def decoder_stack_kernel(
        tgt_ref, mem_ref,
        w_sqkv_ref, b_sqkv_ref, w_so_ref, b_so_ref,
        w_cq_ref, b_cq_ref, w_ckv_ref, b_ckv_ref, w_co_ref, b_co_ref,
        ln_w_ref, ln_b_ref, w1_ref, b1_ref, w2_ref, b2_ref,
        fn_g_ref, fn_b_ref,
        out_ref, x_scr,
        *, nhead, inv_d, n_reg_layers, have_final_norm):
    l = pl.program_id(1)
    dp = x_scr.shape[-1]

    # Layer 0 of this batch element: load the (padded) target into the resident
    # VMEM scratch that carries x across the (arbitrary) layer axis.
    @pl.when(l == 0)
    def _():
        x_scr[...] = tgt_ref[0]

    # Optional final LayerNorm of the stack, applied right before `last_layer`
    # (which is the last grid step on the layer axis).
    if have_final_norm:
        @pl.when(l == n_reg_layers)
        def _():
            x_scr[...] = _ln_padded(x_scr[...], fn_g_ref[0], fn_b_ref[0], inv_d)

    x = x_scr[...]            # (T, Dp)
    m = mem_ref[0]            # (S, Dp)
    lnw = ln_w_ref[0]         # (3, Dp)  tiny
    lnb = ln_b_ref[0]

    # ---- self attention (fused QKV projection, heads batched) ----
    qkv = jnp.dot(x, w_sqkv_ref[0], preferred_element_type=jnp.float32) \
        + b_sqkv_ref[0]
    ctx = _attention_core(qkv[:, :dp], qkv[:, dp:2 * dp], qkv[:, 2 * dp:], nhead)
    sa = _head_out_proj(ctx, w_so_ref[0], b_so_ref[0])
    x = _ln_padded(x + sa, lnw[0], lnb[0], inv_d)

    # ---- cross attention (fused KV projection from memory) ----
    qc = jnp.dot(x, w_cq_ref[0], preferred_element_type=jnp.float32) \
        + b_cq_ref[0]
    kv = jnp.dot(m, w_ckv_ref[0], preferred_element_type=jnp.float32) \
        + b_ckv_ref[0]
    ctx = _attention_core(qc, kv[:, :dp], kv[:, dp:], nhead)
    ca = _head_out_proj(ctx, w_co_ref[0], b_co_ref[0])
    x = _ln_padded(x + ca, lnw[1], lnb[1], inv_d)

    # ---- feed forward (ReLU) ----
    h = jnp.dot(x, w1_ref[0], preferred_element_type=jnp.float32) + b1_ref[0]
    h = jnp.maximum(h, 0.0)
    f = jnp.dot(h, w2_ref[0], preferred_element_type=jnp.float32) + b2_ref[0]
    x = _ln_padded(x + f, lnw[2], lnb[2], inv_d)

    x_scr[...] = x

    @pl.when(l == pl.num_programs(1) - 1)
    def _():
        out_ref[0] = x


# --------------------------- parameter packing ------------------------------ #

def _pad2(w, rows, cols):
    out = jnp.zeros((rows, cols), jnp.float32)
    return out.at[: w.shape[0], : w.shape[1]].set(w)


def _pad_row(v, n):
    out = jnp.zeros((1, n), jnp.float32)
    return out.at[0, : v.shape[0]].set(v)


def _head_out_pad(w, nhead, hd, hd_p, d_p):
    # (D, D) with head-partitioned *columns* -> (d_p, nhead*hd_p)
    d_in = w.shape[0]
    out = jnp.zeros((d_p, nhead, hd_p), jnp.float32)
    out = out.at[:d_in, :, :hd].set(w.reshape(d_in, nhead, hd))
    return out.reshape(d_p, nhead * hd_p)


def _head_in_pad(w, nhead, hd, hd_p, d_p):
    # (D, D) with head-partitioned *rows* -> per-head (nhead, hd_p, d_p)
    d_out = w.shape[1]
    out = jnp.zeros((nhead, hd_p, d_p), jnp.float32)
    out = out.at[:, :hd, :d_out].set(w.reshape(nhead, hd, d_out))
    return out


def _head_bias_pad(v, nhead, hd, hd_p):
    out = jnp.zeros((1, nhead, hd_p), jnp.float32)
    out = out.at[0, :, :hd].set(v.reshape(nhead, hd))
    return out.reshape(1, nhead * hd_p)


def pack_params(layer_params, last_layer_params, norm_params, nhead, d_model,
                dim_ff, d_pad, ff_pad):
    hd = d_model // nhead
    hd_p = d_pad // nhead
    scale = 1.0 / math.sqrt(hd)
    all_layers = list(layer_params) + [last_layer_params]
    keys = ("w_sqkv", "b_sqkv", "w_so", "b_so", "w_cq", "b_cq",
            "w_ckv", "b_ckv", "w_co", "b_co", "ln_w", "ln_b",
            "w1", "b1", "w2", "b2")
    acc = {k: [] for k in keys}
    for p in all_layers:
        aw, ab = p["attn_w"], p["attn_b"]
        # fold the 1/sqrt(hd) attention scale into the query projections
        sq, bsq = aw[0] * scale, ab[0] * scale
        cq, bcq = aw[4] * scale, ab[4] * scale
        acc["w_sqkv"].append(jnp.concatenate(
            [_head_out_pad(w, nhead, hd, hd_p, d_pad) for w in (sq, aw[1], aw[2])],
            axis=1))
        acc["b_sqkv"].append(jnp.concatenate(
            [_head_bias_pad(b, nhead, hd, hd_p) for b in (bsq, ab[1], ab[2])],
            axis=1))
        acc["w_so"].append(_head_in_pad(aw[3], nhead, hd, hd_p, d_pad))
        acc["b_so"].append(_pad_row(ab[3], d_pad))
        acc["w_cq"].append(_head_out_pad(cq, nhead, hd, hd_p, d_pad))
        acc["b_cq"].append(_head_bias_pad(bcq, nhead, hd, hd_p))
        acc["w_ckv"].append(jnp.concatenate(
            [_head_out_pad(w, nhead, hd, hd_p, d_pad) for w in (aw[5], aw[6])],
            axis=1))
        acc["b_ckv"].append(jnp.concatenate(
            [_head_bias_pad(b, nhead, hd, hd_p) for b in (ab[5], ab[6])],
            axis=1))
        acc["w_co"].append(_head_in_pad(aw[7], nhead, hd, hd_p, d_pad))
        acc["b_co"].append(_pad_row(ab[7], d_pad))
        acc["ln_w"].append(jnp.stack(
            [_pad_row(p["ln_w"][i], d_pad)[0] for i in range(3)]))
        acc["ln_b"].append(jnp.stack(
            [_pad_row(p["ln_b"][i], d_pad)[0] for i in range(3)]))
        acc["w1"].append(_pad2(p["w1"], d_pad, ff_pad))
        acc["b1"].append(_pad_row(p["b1"], ff_pad))
        acc["w2"].append(_pad2(p["w2"], ff_pad, d_pad))
        acc["b2"].append(_pad_row(p["b2"], d_pad))
    packed = {k: jnp.stack(v) for k, v in acc.items()}
    if norm_params is not None:
        packed["fn_g"] = _pad_row(norm_params["g"], d_pad)
        packed["fn_b"] = _pad_row(norm_params["b"], d_pad)
    else:
        packed["fn_g"] = jnp.zeros((1, d_pad), jnp.float32)
        packed["fn_b"] = jnp.zeros((1, d_pad), jnp.float32)
    return packed


# -------------------------------- wrapper ----------------------------------- #

def ptransformer_decoder(tgt_tbd, mem_sbd, packed, *, nhead, d_model,
                         num_layers, have_norm):
    """Equivalent of PTransformerDecoder.forward (masks=None, eval mode)."""
    T, B, D = tgt_tbd.shape
    S = mem_sbd.shape[0]
    Dp = packed["w_sqkv"].shape[1]
    FFp = packed["w1"].shape[-1]
    L_total = packed["w_sqkv"].shape[0]
    H = nhead
    hd_p = Dp // H

    # (T,B,D)/(S,B,D) -> batch-major, lane-dense padded (B,T,Dp)/(B,S,Dp).
    # Single relayout pass in/out for the whole fused stack (XLA fuses pad+T).
    x = jnp.pad(jnp.transpose(tgt_tbd, (1, 0, 2)),
                ((0, 0), (0, 0), (0, Dp - D)))
    m = jnp.pad(jnp.transpose(mem_sbd, (1, 0, 2)),
                ((0, 0), (0, 0), (0, Dp - D)))

    kern = functools.partial(
        decoder_stack_kernel, nhead=H, inv_d=1.0 / d_model,
        n_reg_layers=num_layers, have_final_norm=have_norm)

    per_layer_flops = (
        2 * T * Dp * 3 * Dp + 2 * T * Dp * Dp             # self qkv + out proj
        + 4 * H * T * T * hd_p                            # self scores + pv
        + 2 * T * Dp * Dp + 2 * S * Dp * 2 * Dp           # cross q + kv proj
        + 4 * H * T * S * hd_p + 2 * T * Dp * Dp          # cross scores/pv + out
        + 4 * T * Dp * FFp)                               # ffn
    weight_bytes = 4 * sum(int(v.size) for v in packed.values())
    cost = pl.CostEstimate(
        flops=int(B * L_total * per_layer_flops),
        transcendentals=int(B * L_total * H * T * (T + S)),
        bytes_accessed=int(weight_bytes + 4 * (x.size + m.size + B * T * Dp)))

    bmap = lambda b, l: (b, 0, 0)        # per-batch blocks, resident across layers
    wmap = lambda b, l: (l, 0, 0)        # per-layer stacked weights (3-D)
    w4map = lambda b, l: (l, 0, 0, 0)    # per-layer per-head weights (4-D)
    cmap = lambda b, l: (0, 0)           # broadcast final-norm params

    out = pl.pallas_call(
        kern,
        out_shape=jax.ShapeDtypeStruct((B, T, Dp), jnp.float32),
        grid=(B, L_total),
        in_specs=[
            pl.BlockSpec((1, T, Dp), bmap),
            pl.BlockSpec((1, S, Dp), bmap),
            pl.BlockSpec((1, Dp, 3 * Dp), wmap),
            pl.BlockSpec((1, 1, 3 * Dp), wmap),
            pl.BlockSpec((1, H, hd_p, Dp), w4map),
            pl.BlockSpec((1, 1, Dp), wmap),
            pl.BlockSpec((1, Dp, Dp), wmap),
            pl.BlockSpec((1, 1, Dp), wmap),
            pl.BlockSpec((1, Dp, 2 * Dp), wmap),
            pl.BlockSpec((1, 1, 2 * Dp), wmap),
            pl.BlockSpec((1, H, hd_p, Dp), w4map),
            pl.BlockSpec((1, 1, Dp), wmap),
            pl.BlockSpec((1, 3, Dp), wmap),
            pl.BlockSpec((1, 3, Dp), wmap),
            pl.BlockSpec((1, Dp, FFp), wmap),
            pl.BlockSpec((1, 1, FFp), wmap),
            pl.BlockSpec((1, FFp, Dp), wmap),
            pl.BlockSpec((1, 1, Dp), wmap),
            pl.BlockSpec((1, Dp), cmap),
            pl.BlockSpec((1, Dp), cmap),
        ],
        out_specs=pl.BlockSpec((1, T, Dp), bmap),
        scratch_shapes=[pltpu.VMEM((T, Dp), jnp.float32)],
        compiler_params=pltpu.CompilerParams(
            dimension_semantics=("parallel", "arbitrary"),
            vmem_limit_bytes=32 * 1024 * 1024),
        cost_estimate=cost,
    )(x, m,
      packed["w_sqkv"], packed["b_sqkv"], packed["w_so"], packed["b_so"],
      packed["w_cq"], packed["b_cq"], packed["w_ckv"], packed["b_ckv"],
      packed["w_co"], packed["b_co"], packed["ln_w"], packed["ln_b"],
      packed["w1"], packed["b1"], packed["w2"], packed["b2"],
      packed["fn_g"], packed["fn_b"])

    return jnp.transpose(out[:, :, :D], (1, 0, 2))   # back to (T, B, D)


# --------------------------- pure-JAX reference ------------------------------ #

def _ref_layernorm(x, g, b):
    mu = jnp.mean(x, axis=-1, keepdims=True)
    var = jnp.mean((x - mu) ** 2, axis=-1, keepdims=True)
    return (x - mu) * jax.lax.rsqrt(var + EPS) * g + b


def _ref_mha(xq, xkv, wq, bq, wk, bk, wv, bv, wo, bo, nhead):
    d = xq.shape[-1]
    hd = d // nhead
    scale = 1.0 / math.sqrt(hd)
    q = xq @ wq + bq
    k = xkv @ wk + bk
    v = xkv @ wv + bv
    outs = []
    for h in range(nhead):
        sl = slice(h * hd, (h + 1) * hd)
        s = (q[:, sl] @ k[:, sl].T) * scale
        s = s - jnp.max(s, axis=-1, keepdims=True)
        p = jnp.exp(s)
        p = p / jnp.sum(p, axis=-1, keepdims=True)
        outs.append(p @ v[:, sl])
    return jnp.concatenate(outs, axis=-1) @ wo + bo


def _ref_layer(x, m, p, nhead):
    aw, ab = p["attn_w"], p["attn_b"]
    sa = _ref_mha(x, x, aw[0], ab[0], aw[1], ab[1], aw[2], ab[2], aw[3], ab[3],
                  nhead)
    x = _ref_layernorm(x + sa, p["ln_w"][0], p["ln_b"][0])
    ca = _ref_mha(x, m, aw[4], ab[4], aw[5], ab[5], aw[6], ab[6], aw[7], ab[7],
                  nhead)
    x = _ref_layernorm(x + ca, p["ln_w"][1], p["ln_b"][1])
    h = jnp.maximum(x @ p["w1"] + p["b1"], 0.0)
    x = _ref_layernorm(x + h @ p["w2"] + p["b2"], p["ln_w"][2], p["ln_b"][2])
    return x


def ref_decoder(tgt_tbd, mem_sbd, layer_params, last_layer_params,
                norm_params, nhead):
    x = jnp.transpose(tgt_tbd, (1, 0, 2))
    m = jnp.transpose(mem_sbd, (1, 0, 2))
    outs = []
    for b in range(x.shape[0]):
        xb, mb = x[b], m[b]
        for p in layer_params:
            xb = _ref_layer(xb, mb, p, nhead)
        if norm_params is not None:
            xb = _ref_layernorm(xb, norm_params["g"], norm_params["b"])
        xb = _ref_layer(xb, mb, last_layer_params, nhead)
        outs.append(xb)
    return jnp.transpose(jnp.stack(outs, 0), (1, 0, 2))


# --------------------------------- setup ------------------------------------ #

def make_layer_params(key, d_model, dim_ff):
    ks = jax.random.split(key, 8)
    s = 0.05
    return {
        "attn_w": s * jax.random.normal(ks[0], (8, d_model, d_model), jnp.float32),
        "attn_b": s * jax.random.normal(ks[1], (8, d_model), jnp.float32),
        "ln_w": 1.0 + 0.1 * jax.random.normal(ks[2], (3, d_model), jnp.float32),
        "ln_b": 0.1 * jax.random.normal(ks[3], (3, d_model), jnp.float32),
        "w1": s * jax.random.normal(ks[4], (d_model, dim_ff), jnp.float32),
        "b1": s * jax.random.normal(ks[5], (dim_ff,), jnp.float32),
        "w2": s * jax.random.normal(ks[6], (dim_ff, d_model), jnp.float32),
        "b2": s * jax.random.normal(ks[7], (d_model,), jnp.float32),
    }


if __name__ == "__main__":
    # T=8 tgt tokens, S=16 memory tokens, batch=2, d_model=32, nhead=4,
    # dim_feedforward=64, num_layers=2 (+ last_layer, + final LayerNorm).
    T, S, B, D, H, FF = 8, 16, 2, 32, 4, 64
    NUM_LAYERS = 2
    D_PAD = _round_up(D, LANE)
    FF_PAD = _round_up(FF, LANE)
    assert D_PAD % H == 0

    root = jax.random.PRNGKey(0)
    k_tgt, k_mem, k_norm, *k_layers = jax.random.split(root, 3 + NUM_LAYERS + 1)

    tgt = jax.random.normal(k_tgt, (T, B, D), jnp.float32)       # (T, B, D)
    memory = jax.random.normal(k_mem, (S, B, D), jnp.float32)    # (S, B, D)

    layer_params = [make_layer_params(k, D, FF) for k in k_layers[:NUM_LAYERS]]
    last_layer_params = make_layer_params(k_layers[NUM_LAYERS], D, FF)
    kg, kb = jax.random.split(k_norm)
    norm_params = {"g": 1.0 + 0.1 * jax.random.normal(kg, (D,), jnp.float32),
                   "b": 0.1 * jax.random.normal(kb, (D,), jnp.float32)}

    packed = pack_params(layer_params, last_layer_params, norm_params,
                         H, D, FF, D_PAD, FF_PAD)

    run = jax.jit(functools.partial(ptransformer_decoder, nhead=H, d_model=D,
                                    num_layers=NUM_LAYERS, have_norm=True))
    out = jax.block_until_ready(run(tgt, memory, packed))

    ref = ref_decoder(tgt, memory, layer_params, last_layer_params,
                      norm_params, H)
    assert out.shape == (T, B, D)
    assert jnp.allclose(out, ref, atol=1e-4, rtol=1e-4), "mismatch vs reference"

    print("KERNEL_OK")
</pallas_src>

<mosaic_0001>
module attributes {stable_mosaic.version = 11 : i64} {
  func.func @decoder_stack_kernel(%arg0: i32, %arg1: i32, %arg2: memref<1x8x128xf32, #tpu.memory_space<vmem>>, %arg3: memref<1x16x128xf32, #tpu.memory_space<vmem>>, %arg4: memref<1x128x384xf32, #tpu.memory_space<vmem>>, %arg5: memref<1x1x384xf32, #tpu.memory_space<vmem>>, %arg6: memref<1x4x32x128xf32, #tpu.memory_space<vmem>>, %arg7: memref<1x1x128xf32, #tpu.memory_space<vmem>>, %arg8: memref<1x128x128xf32, #tpu.memory_space<vmem>>, %arg9: memref<1x1x128xf32, #tpu.memory_space<vmem>>, %arg10: memref<1x128x256xf32, #tpu.memory_space<vmem>>, %arg11: memref<1x1x256xf32, #tpu.memory_space<vmem>>, %arg12: memref<1x4x32x128xf32, #tpu.memory_space<vmem>>, %arg13: memref<1x1x128xf32, #tpu.memory_space<vmem>>, %arg14: memref<1x3x128xf32, #tpu.memory_space<vmem>>, %arg15: memref<1x3x128xf32, #tpu.memory_space<vmem>>, %arg16: memref<1x128x128xf32, #tpu.memory_space<vmem>>, %arg17: memref<1x1x128xf32, #tpu.memory_space<vmem>>, %arg18: memref<1x128x128xf32, #tpu.memory_space<vmem>>, %arg19: memref<1x1x128xf32, #tpu.memory_space<vmem>>, %arg20: memref<1x128xf32, #tpu.memory_space<vmem>>, %arg21: memref<1x128xf32, #tpu.memory_space<vmem>>, %arg22: memref<1x8x128xf32, #tpu.memory_space<vmem>>, %arg23: memref<8x128xf32, #tpu.memory_space<vmem>>) attributes {dimension_semantics = [#tpu.dimension_semantics<parallel>, #tpu.dimension_semantics<arbitrary>], iteration_bounds = array<i64: 2, 3>, scalar_prefetch = 0 : i64, scratch_operands = 1 : i64, tpu.core_type = #tpu.core_type<tc>, window_params = [{transform_indices = @transform_0, window_bounds = array<i64: 1, 8, 128>}, {transform_indices = @transform_1, window_bounds = array<i64: 1, 16, 128>}, {transform_indices = @transform_2, window_bounds = array<i64: 1, 128, 384>}, {transform_indices = @transform_3, window_bounds = array<i64: 1, 1, 384>}, {transform_indices = @transform_4, window_bounds = array<i64: 1, 4, 32, 128>}, {transform_indices = @transform_5, window_bounds = array<i64: 1, 1, 128>}, {transform_indices = @transform_6, window_bounds = array<i64: 1, 128, 128>}, {transform_indices = @transform_7, window_bounds = array<i64: 1, 1, 128>}, {transform_indices = @transform_8, window_bounds = array<i64: 1, 128, 256>}, {transform_indices = @transform_9, window_bounds = array<i64: 1, 1, 256>}, {transform_indices = @transform_10, window_bounds = array<i64: 1, 4, 32, 128>}, {transform_indices = @transform_11, window_bounds = array<i64: 1, 1, 128>}, {transform_indices = @transform_12, window_bounds = array<i64: 1, 3, 128>}, {transform_indices = @transform_13, window_bounds = array<i64: 1, 3, 128>}, {transform_indices = @transform_14, window_bounds = array<i64: 1, 128, 128>}, {transform_indices = @transform_15, window_bounds = array<i64: 1, 1, 128>}, {transform_indices = @transform_16, window_bounds = array<i64: 1, 128, 128>}, {transform_indices = @transform_17, window_bounds = array<i64: 1, 1, 128>}, {pipeline_mode = #tpu.pipeline_mode<synchronous>, transform_indices = @transform_18, window_bounds = array<i64: 1, 128>}, {pipeline_mode = #tpu.pipeline_mode<synchronous>, transform_indices = @transform_19, window_bounds = array<i64: 1, 128>}, {transform_indices = @transform_20, window_bounds = array<i64: 1, 8, 128>}]} {
    %c0_i32 = arith.constant 0 : i32
    %0 = arith.cmpi eq, %arg1, %c0_i32 : i32
    %1 = arith.extui %0 : i1 to i32
    %c0_i32_0 = arith.constant 0 : i32
    %2 = arith.cmpi ne, %1, %c0_i32_0 : i32
    scf.if %2 {
      %c0_92 = arith.constant 0 : index
      %c0_93 = arith.constant 0 : index
      %c0_94 = arith.constant 0 : index
      %238 = vector.load %arg2[%c0_92, %c0_93, %c0_94] : memref<1x8x128xf32, #tpu.memory_space<vmem>>, vector<1x8x128xf32>
      %239 = vector.shape_cast %238 : vector<1x8x128xf32> to vector<8x128xf32>
      %c0_95 = arith.constant 0 : index
      %c0_96 = arith.constant 0 : index
      %240 = vector.load %arg23[%c0_95, %c0_96] : memref<8x128xf32, #tpu.memory_space<vmem>>, vector<8x128xf32>
      tpu.vector_store %arg23[%c0_95, %c0_96], %239 {strides = array<i32>} : memref<8x128xf32, #tpu.memory_space<vmem>>, vector<8x128xf32>,
    } else {
    }
    %c2_i32 = arith.constant 2 : i32
    %3 = arith.cmpi eq, %arg1, %c2_i32 : i32
    %4 = arith.extui %3 : i1 to i32
    %c0_i32_1 = arith.constant 0 : i32
    %5 = arith.cmpi ne, %4, %c0_i32_1 : i32
    scf.if %5 {
      %c0_92 = arith.constant 0 : index
      %c0_93 = arith.constant 0 : index
      %238 = vector.load %arg23[%c0_92, %c0_93] : memref<8x128xf32, #tpu.memory_space<vmem>>, vector<8x128xf32>
      %c0_94 = arith.constant 0 : index
      %c0_95 = arith.constant 0 : index
      %239 = vector.load %arg20[%c0_94, %c0_95] : memref<1x128xf32, #tpu.memory_space<vmem>>, vector<1x128xf32>
      %240 = vector.shape_cast %239 : vector<1x128xf32> to vector<128xf32>
      %c0_96 = arith.constant 0 : index
      %c0_97 = arith.constant 0 : index
      %241 = vector.load %arg21[%c0_96, %c0_97] : memref<1x128xf32, #tpu.memory_space<vmem>>, vector<1x128xf32>
      %242 = vector.shape_cast %241 : vector<1x128xf32> to vector<128xf32>
      %cst_98 = arith.constant dense<0.000000e+00> : vector<8xf32>
      %243 = vector.multi_reduction <add>, %238, %cst_98 [1] : vector<8x128xf32> to vector<8xf32>
      %244 = vector.shape_cast %243 : vector<8xf32> to vector<8x1xf32>
      %245 = arith.mulf %238, %238 : vector<8x128xf32>
      %cst_99 = arith.constant dense<0.000000e+00> : vector<8xf32>
      %246 = vector.multi_reduction <add>, %245, %cst_99 [1] : vector<8x128xf32> to vector<8xf32>
      %247 = vector.shape_cast %246 : vector<8xf32> to vector<8x1xf32>
      %cst_100 = arith.constant 3.125000e-02 : f32
      %248 = vector.broadcast %cst_100 : f32 to vector<8x1xf32>
      %249 = arith.mulf %244, %248 : vector<8x1xf32>
      %cst_101 = arith.constant 3.125000e-02 : f32
      %250 = vector.broadcast %cst_101 : f32 to vector<8x1xf32>
      %251 = arith.mulf %247, %250 : vector<8x1xf32>
      %252 = arith.mulf %249, %249 : vector<8x1xf32>
      %253 = arith.subf %251, %252 : vector<8x1xf32>
      %254 = vector.broadcast %249 : vector<8x1xf32> to vector<8x128xf32>
      %255 = arith.subf %238, %254 : vector<8x128xf32>
      %cst_102 = arith.constant 9.99999974E-6 : f32
      %256 = vector.broadcast %cst_102 : f32 to vector<8x1xf32>
      %257 = arith.addf %253, %256 : vector<8x1xf32>
      %258 = math.rsqrt %257 : vector<8x1xf32>
      %259 = vector.broadcast %258 : vector<8x1xf32> to vector<8x128xf32>
      %260 = arith.mulf %255, %259 : vector<8x128xf32>
      %261 = vector.shape_cast %240 : vector<128xf32> to vector<1x128xf32>
      %262 = vector.broadcast %261 : vector<1x128xf32> to vector<8x128xf32>
      %263 = arith.mulf %260, %262 : vector<8x128xf32>
      %264 = vector.shape_cast %242 : vector<128xf32> to vector<1x128xf32>
      %265 = vector.broadcast %264 : vector<1x128xf32> to vector<8x128xf32>
      %266 = arith.addf %263, %265 : vector<8x128xf32>
      %c0_103 = arith.constant 0 : index
      %c0_104 = arith.constant 0 : index
      %267 = vector.load %arg23[%c0_103, %c0_104] : memref<8x128xf32, #tpu.memory_space<vmem>>, vector<8x128xf32>
      tpu.vector_store %arg23[%c0_103, %c0_104], %266 {strides = array<i32>} : memref<8x128xf32, #tpu.memory_space<vmem>>, vector<8x128xf32>,
    } else {
    }
    %c0 = arith.constant 0 : index
    %c0_2 = arith.constant 0 : index
    %6 = vector.load %arg23[%c0, %c0_2] : memref<8x128xf32, #tpu.memory_space<vmem>>, vector<8x128xf32>
    %c0_3 = arith.constant 0 : index
    %c0_4 = arith.constant 0 : index
    %c0_5 = arith.constant 0 : index
    %7 = vector.load %arg3[%c0_3, %c0_4, %c0_5] : memref<1x16x128xf32, #tpu.memory_space<vmem>>, vector<1x16x128xf32>
    %8 = vector.shape_cast %7 : vector<1x16x128xf32> to vector<16x128xf32>
    %c0_6 = arith.constant 0 : index
    %c0_7 = arith.constant 0 : index
    %c0_8 = arith.constant 0 : index
    %9 = vector.load %arg14[%c0_6, %c0_7, %c0_8] : memref<1x3x128xf32, #tpu.memory_space<vmem>>, vector<1x3x128xf32>
    %10 = vector.shape_cast %9 : vector<1x3x128xf32> to vector<3x128xf32>
    %c0_9 = arith.constant 0 : index
    %c0_10 = arith.constant 0 : index
    %c0_11 = arith.constant 0 : index
    %11 = vector.load %arg15[%c0_9, %c0_10, %c0_11] : memref<1x3x128xf32, #tpu.memory_space<vmem>>, vector<1x3x128xf32>
    %12 = vector.shape_cast %11 : vector<1x3x128xf32> to vector<3x128xf32>
    %c0_12 = arith.constant 0 : index
    %c0_13 = arith.constant 0 : index
    %c0_14 = arith.constant 0 : index
    %13 = vector.load %arg4[%c0_12, %c0_13, %c0_14] : memref<1x128x384xf32, #tpu.memory_space<vmem>>, vector<1x128x384xf32>
    %14 = vector.shape_cast %13 : vector<1x128x384xf32> to vector<128x384xf32>
    %cst = arith.constant dense<0.000000e+00> : vector<8x384xf32>
    %15 = tpu.matmul %6, %14, %cst {dimension_numbers = #tpu.dot_dimension_numbers<[1], [0], [0], [1], [0, 0, 1, 1], [], []>} : vector<8x128xf32>, vector<128x384xf32>, vector<8x384xf32> -> vector<8x384xf32>
    %c0_15 = arith.constant 0 : index
    %c0_16 = arith.constant 0 : index
    %c0_17 = arith.constant 0 : index
    %16 = vector.load %arg5[%c0_15, %c0_16, %c0_17] : memref<1x1x384xf32, #tpu.memory_space<vmem>>, vector<1x1x384xf32>
    %17 = vector.shape_cast %16 : vector<1x1x384xf32> to vector<1x384xf32>
    %18 = vector.broadcast %17 : vector<1x384xf32> to vector<8x384xf32>
    %19 = arith.addf %15, %18 : vector<8x384xf32>
    %20 = vector.extract_strided_slice %19 {offsets = [0, 0], sizes = [8, 128], strides = [1, 1]} : vector<8x384xf32> to vector<8x128xf32>
    %21 = vector.extract_strided_slice %19 {offsets = [0, 128], sizes = [8, 128], strides = [1, 1]} : vector<8x384xf32> to vector<8x128xf32>
    %22 = vector.extract_strided_slice %19 {offsets = [0, 256], sizes = [8, 128], strides = [1, 1]} : vector<8x384xf32> to vector<8x128xf32>
    %23 = vector.extract_strided_slice %20 {offsets = [0, 0], sizes = [8, 32], strides = [1, 1]} : vector<8x128xf32> to vector<8x32xf32>
    %24 = vector.extract_strided_slice %20 {offsets = [0, 32], sizes = [8, 32], strides = [1, 1]} : vector<8x128xf32> to vector<8x32xf32>
    %25 = vector.extract_strided_slice %20 {offsets = [0, 64], sizes = [8, 32], strides = [1, 1]} : vector<8x128xf32> to vector<8x32xf32>
    %26 = vector.extract_strided_slice %20 {offsets = [0, 96], sizes = [8, 32], strides = [1, 1]} : vector<8x128xf32> to vector<8x32xf32>
    %27 = vector.shape_cast %23 : vector<8x32xf32> to vector<1x8x32xf32>
    %28 = vector.shape_cast %24 : vector<8x32xf32> to vector<1x8x32xf32>
    %29 = vector.shape_cast %25 : vector<8x32xf32> to vector<1x8x32xf32>
    %30 = vector.shape_cast %26 : vector<8x32xf32> to vector<1x8x32xf32>
    %31 = tpu.concatenate %27, %28, %29, %30 in 0 : vector<1x8x32xf32>, vector<1x8x32xf32>, vector<1x8x32xf32>, vector<1x8x32xf32> -> vector<4x8x32xf32>
    %32 = vector.extract_strided_slice %21 {offsets = [0, 0], sizes = [8, 32], strides = [1, 1]} : vector<8x128xf32> to vector<8x32xf32>
    %33 = vector.extract_strided_slice %21 {offsets = [0, 32], sizes = [8, 32], strides = [1, 1]} : vector<8x128xf32> to vector<8x32xf32>
    %34 = vector.extract_strided_slice %21 {offsets = [0, 64], sizes = [8, 32], strides = [1, 1]} : vector<8x128xf32> to vector<8x32xf32>
    %35 = vector.extract_strided_slice %21 {offsets = [0, 96], sizes = [8, 32], strides = [1, 1]} : vector<8x128xf32> to vector<8x32xf32>
    %36 = vector.shape_cast %32 : vector<8x32xf32> to vector<1x8x32xf32>
    %37 = vector.shape_cast %33 : vector<8x32xf32> to vector<1x8x32xf32>
    %38 = vector.shape_cast %34 : vector<8x32xf32> to vector<1x8x32xf32>
    %39 = vector.shape_cast %35 : vector<8x32xf32> to vector<1x8x32xf32>
    %40 = tpu.concatenate %36, %37, %38, %39 in 0 : vector<1x8x32xf32>, vector<1x8x32xf32>, vector<1x8x32xf32>, vector<1x8x32xf32> -> vector<4x8x32xf32>
    %41 = vector.extract_strided_slice %22 {offsets = [0, 0], sizes = [8, 32], strides = [1, 1]} : vector<8x128xf32> to vector<8x32xf32>
    %42 = vector.extract_strided_slice %22 {offsets = [0, 32], sizes = [8, 32], strides = [1, 1]} : vector<8x128xf32> to vector<8x32xf32>
    %43 = vector.extract_strided_slice %22 {offsets = [0, 64], sizes = [8, 32], strides = [1, 1]} : vector<8x128xf32> to vector<8x32xf32>
    %44 = vector.extract_strided_slice %22 {offsets = [0, 96], sizes = [8, 32], strides = [1, 1]} : vector<8x128xf32> to vector<8x32xf32>
    %45 = vector.shape_cast %41 : vector<8x32xf32> to vector<1x8x32xf32>
    %46 = vector.shape_cast %42 : vector<8x32xf32> to vector<1x8x32xf32>
    %47 = vector.shape_cast %43 : vector<8x32xf32> to vector<1x8x32xf32>
    %48 = vector.shape_cast %44 : vector<8x32xf32> to vector<1x8x32xf32>
    %49 = tpu.concatenate %45, %46, %47, %48 in 0 : vector<1x8x32xf32>, vector<1x8x32xf32>, vector<1x8x32xf32>, vector<1x8x32xf32> -> vector<4x8x32xf32>
    "tpu.trace_start"() <{level = 10 : i32, message = "hqd,hkd->hqk"}> : () -> ()
    %cst_18 = arith.constant dense<0.000000e+00> : vector<4x8x8xf32>
    %50 = tpu.matmul %31, %40, %cst_18 {dimension_numbers = #tpu.dot_dimension_numbers<[2], [2], [1], [1], [0, 0, 0, 1, 1, 1], [0], [0]>} : vector<4x8x32xf32>, vector<4x8x32xf32>, vector<4x8x8xf32> -> vector<4x8x8xf32>
    "tpu.trace_stop"() : () -> ()
    %cst_19 = arith.constant dense<0xFF800000> : vector<4x8xf32>
    %51 = vector.multi_reduction <maximumf>, %50, %cst_19 [2] : vector<4x8x8xf32> to vector<4x8xf32>
    %52 = vector.shape_cast %51 : vector<4x8xf32> to vector<4x8x1xf32>
    %53 = vector.broadcast %52 : vector<4x8x1xf32> to vector<4x8x8xf32>
    %54 = arith.subf %50, %53 : vector<4x8x8xf32>
    %55 = math.exp %54 : vector<4x8x8xf32>
    %cst_20 = arith.constant dense<0.000000e+00> : vector<4x8xf32>
    %56 = vector.multi_reduction <add>, %55, %cst_20 [2] : vector<4x8x8xf32> to vector<4x8xf32>
    %57 = vector.shape_cast %56 : vector<4x8xf32> to vector<4x8x1xf32>
    %58 = vector.broadcast %57 : vector<4x8x1xf32> to vector<4x8x8xf32>
    %59 = arith.divf %55, %58 : vector<4x8x8xf32>
    "tpu.trace_start"() <{level = 10 : i32, message = "hqk,hkd->hqd"}> : () -> ()
    %cst_21 = arith.constant dense<0.000000e+00> : vector<4x8x32xf32>
    %60 = tpu.matmul %59, %49, %cst_21 {dimension_numbers = #tpu.dot_dimension_numbers<[2], [1], [1], [2], [0, 0, 0, 1, 1, 2], [0], [0]>} : vector<4x8x8xf32>, vector<4x8x32xf32>, vector<4x8x32xf32> -> vector<4x8x32xf32>
    "tpu.trace_stop"() : () -> ()
    %c0_22 = arith.constant 0 : index
    %c0_23 = arith.constant 0 : index
    %c0_24 = arith.constant 0 : index
    %c0_25 = arith.constant 0 : index
    %61 = vector.load %arg6[%c0_22, %c0_23, %c0_24, %c0_25] : memref<1x4x32x128xf32, #tpu.memory_space<vmem>>, vector<1x4x32x128xf32>
    %62 = vector.shape_cast %61 : vector<1x4x32x128xf32> to vector<4x32x128xf32>
    %c0_26 = arith.constant 0 : index
    %c0_27 = arith.constant 0 : index
    %c0_28 = arith.constant 0 : index
    %63 = vector.load %arg7[%c0_26, %c0_27, %c0_28] : memref<1x1x128xf32, #tpu.memory_space<vmem>>, vector<1x1x128xf32>
    %64 = vector.shape_cast %63 : vector<1x1x128xf32> to vector<1x128xf32>
    "tpu.trace_start"() <{level = 10 : i32, message = "hqd,hdk->hqk"}> : () -> ()
    %cst_29 = arith.constant dense<0.000000e+00> : vector<4x8x128xf32>
    %65 = tpu.matmul %60, %62, %cst_29 {dimension_numbers = #tpu.dot_dimension_numbers<[2], [1], [1], [2], [0, 0, 0, 1, 1, 2], [0], [0]>} : vector<4x8x32xf32>, vector<4x32x128xf32>, vector<4x8x128xf32> -> vector<4x8x128xf32>
    "tpu.trace_stop"() : () -> ()
    %cst_30 = arith.constant dense<0.000000e+00> : vector<8x128xf32>
    %66 = vector.multi_reduction <add>, %65, %cst_30 [0] : vector<4x8x128xf32> to vector<8x128xf32>
    %67 = vector.broadcast %64 : vector<1x128xf32> to vector<8x128xf32>
    %68 = arith.addf %66, %67 : vector<8x128xf32>
    %69 = arith.addf %6, %68 : vector<8x128xf32>
    %70 = vector.extract_strided_slice %10 {offsets = [0, 0], sizes = [1, 128], strides = [1, 1]} : vector<3x128xf32> to vector<1x128xf32>
    %71 = vector.shape_cast %70 : vector<1x128xf32> to vector<128xf32>
    %72 = vector.extract_strided_slice %12 {offsets = [0, 0], sizes = [1, 128], strides = [1, 1]} : vector<3x128xf32> to vector<1x128xf32>
    %73 = vector.shape_cast %72 : vector<1x128xf32> to vector<128xf32>
    %cst_31 = arith.constant dense<0.000000e+00> : vector<8xf32>
    %74 = vector.multi_reduction <add>, %69, %cst_31 [1] : vector<8x128xf32> to vector<8xf32>
    %75 = vector.shape_cast %74 : vector<8xf32> to vector<8x1xf32>
    %76 = arith.mulf %69, %69 : vector<8x128xf32>
    %cst_32 = arith.constant dense<0.000000e+00> : vector<8xf32>
    %77 = vector.multi_reduction <add>, %76, %cst_32 [1] : vector<8x128xf32> to vector<8xf32>
    %78 = vector.shape_cast %77 : vector<8xf32> to vector<8x1xf32>
    %cst_33 = arith.constant 3.125000e-02 : f32
    %79 = vector.broadcast %cst_33 : f32 to vector<8x1xf32>
    %80 = arith.mulf %75, %79 : vector<8x1xf32>
    %cst_34 = arith.constant 3.125000e-02 : f32
    %81 = vector.broadcast %cst_34 : f32 to vector<8x1xf32>
    %82 = arith.mulf %78, %81 : vector<8x1xf32>
    %83 = arith.mulf %80, %80 : vector<8x1xf32>
    %84 = arith.subf %82, %83 : vector<8x1xf32>
    %85 = vector.broadcast %80 : vector<8x1xf32> to vector<8x128xf32>
    %86 = arith.subf %69, %85 : vector<8x128xf32>
    %cst_35 = arith.constant 9.99999974E-6 : f32
    %87 = vector.broadcast %cst_35 : f32 to vector<8x1xf32>
    %88 = arith.addf %84, %87 : vector<8x1xf32>
    %89 = math.rsqrt %88 : vector<8x1xf32>
    %90 = vector.broadcast %89 : vector<8x1xf32> to vector<8x128xf32>
    %91 = arith.mulf %86, %90 : vector<8x128xf32>
    %92 = vector.shape_cast %71 : vector<128xf32> to vector<1x128xf32>
    %93 = vector.broadcast %92 : vector<1x128xf32> to vector<8x128xf32>
    %94 = arith.mulf %91, %93 : vector<8x128xf32>
    %95 = vector.shape_cast %73 : vector<128xf32> to vector<1x128xf32>
    %96 = vector.broadcast %95 : vector<1x128xf32> to vector<8x128xf32>
    %97 = arith.addf %94, %96 : vector<8x128xf32>
    %c0_36 = arith.constant 0 : index
    %c0_37 = arith.constant 0 : index
    %c0_38 = arith.constant 0 : index
    %98 = vector.load %arg8[%c0_36, %c0_37, %c0_38] : memref<1x128x128xf32, #tpu.memory_space<vmem>>, vector<1x128x128xf32>
    %99 = vector.shape_cast %98 : vector<1x128x128xf32> to vector<128x128xf32>
    %cst_39 = arith.constant dense<0.000000e+00> : vector<8x128xf32>
    %100 = tpu.matmul %97, %99, %cst_39 {dimension_numbers = #tpu.dot_dimension_numbers<[1], [0], [0], [1], [0, 0, 1, 1], [], []>} : vector<8x128xf32>, vector<128x128xf32>, vector<8x128xf32> -> vector<8x128xf32>
    %c0_40 = arith.constant 0 : index
    %c0_41 = arith.constant 0 : index
    %c0_42 = arith.constant 0 : index
    %101 = vector.load %arg9[%c0_40, %c0_41, %c0_42] : memref<1x1x128xf32, #tpu.memory_space<vmem>>, vector<1x1x128xf32>
    %102 = vector.shape_cast %101 : vector<1x1x128xf32> to vector<1x128xf32>
    %103 = vector.broadcast %102 : vector<1x128xf32> to vector<8x128xf32>
    %104 = arith.addf %100, %103 : vector<8x128xf32>
    %c0_43 = arith.constant 0 : index
    %c0_44 = arith.constant 0 : index
    %c0_45 = arith.constant 0 : index
    %105 = vector.load %arg10[%c0_43, %c0_44, %c0_45] : memref<1x128x256xf32, #tpu.memory_space<vmem>>, vector<1x128x256xf32>
    %106 = vector.shape_cast %105 : vector<1x128x256xf32> to vector<128x256xf32>
    %cst_46 = arith.constant dense<0.000000e+00> : vector<16x256xf32>
    %107 = tpu.matmul %8, %106, %cst_46 {dimension_numbers = #tpu.dot_dimension_numbers<[1], [0], [0], [1], [0, 0, 1, 1], [], []>} : vector<16x128xf32>, vector<128x256xf32>, vector<16x256xf32> -> vector<16x256xf32>
    %c0_47 = arith.constant 0 : index
    %c0_48 = arith.constant 0 : index
    %c0_49 = arith.constant 0 : index
    %108 = vector.load %arg11[%c0_47, %c0_48, %c0_49] : memref<1x1x256xf32, #tpu.memory_space<vmem>>, vector<1x1x256xf32>
    %109 = vector.shape_cast %108 : vector<1x1x256xf32> to vector<1x256xf32>
    %110 = vector.broadcast %109 : vector<1x256xf32> to vector<16x256xf32>
    %111 = arith.addf %107, %110 : vector<16x256xf32>
    %112 = vector.extract_strided_slice %111 {offsets = [0, 0], sizes = [16, 128], strides = [1, 1]} : vector<16x256xf32> to vector<16x128xf32>
    %113 = vector.extract_strided_slice %111 {offsets = [0, 128], sizes = [16, 128], strides = [1, 1]} : vector<16x256xf32> to vector<16x128xf32>
    %114 = vector.extract_strided_slice %104 {offsets = [0, 0], sizes = [8, 32], strides = [1, 1]} : vector<8x128xf32> to vector<8x32xf32>
    %115 = vector.extract_strided_slice %104 {offsets = [0, 32], sizes = [8, 32], strides = [1, 1]} : vector<8x128xf32> to vector<8x32xf32>
    %116 = vector.extract_strided_slice %104 {offsets = [0, 64], sizes = [8, 32], strides = [1, 1]} : vector<8x128xf32> to vector<8x32xf32>
    %117 = vector.extract_strided_slice %104 {offsets = [0, 96], sizes = [8, 32], strides = [1, 1]} : vector<8x128xf32> to vector<8x32xf32>
    %118 = vector.shape_cast %114 : vector<8x32xf32> to vector<1x8x32xf32>
    %119 = vector.shape_cast %115 : vector<8x32xf32> to vector<1x8x32xf32>
    %120 = vector.shape_cast %116 : vector<8x32xf32> to vector<1x8x32xf32>
    %121 = vector.shape_cast %117 : vector<8x32xf32> to vector<1x8x32xf32>
    %122 = tpu.concatenate %118, %119, %120, %121 in 0 : vector<1x8x32xf32>, vector<1x8x32xf32>, vector<1x8x32xf32>, vector<1x8x32xf32> -> vector<4x8x32xf32>
    %123 = vector.extract_strided_slice %112 {offsets = [0, 0], sizes = [16, 32], strides = [1, 1]} : vector<16x128xf32> to vector<16x32xf32>
    %124 = vector.extract_strided_slice %112 {offsets = [0, 32], sizes = [16, 32], strides = [1, 1]} : vector<16x128xf32> to vector<16x32xf32>
    %125 = vector.extract_strided_slice %112 {offsets = [0, 64], sizes = [16, 32], strides = [1, 1]} : vector<16x128xf32> to vector<16x32xf32>
    %126 = vector.extract_strided_slice %112 {offsets = [0, 96], sizes = [16, 32], strides = [1, 1]} : vector<16x128xf32> to vector<16x32xf32>
    %127 = vector.shape_cast %123 : vector<16x32xf32> to vector<1x16x32xf32>
    %128 = vector.shape_cast %124 : vector<16x32xf32> to vector<1x16x32xf32>
    %129 = vector.shape_cast %125 : vector<16x32xf32> to vector<1x16x32xf32>
    %130 = vector.shape_cast %126 : vector<16x32xf32> to vector<1x16x32xf32>
    %131 = tpu.concatenate %127, %128, %129, %130 in 0 : vector<1x16x32xf32>, vector<1x16x32xf32>, vector<1x16x32xf32>, vector<1x16x32xf32> -> vector<4x16x32xf32>
    %132 = vector.extract_strided_slice %113 {offsets = [0, 0], sizes = [16, 32], strides = [1, 1]} : vector<16x128xf32> to vector<16x32xf32>
    %133 = vector.extract_strided_slice %113 {offsets = [0, 32], sizes = [16, 32], strides = [1, 1]} : vector<16x128xf32> to vector<16x32xf32>
    %134 = vector.extract_strided_slice %113 {offsets = [0, 64], sizes = [16, 32], strides = [1, 1]} : vector<16x128xf32> to vector<16x32xf32>
    %135 = vector.extract_strided_slice %113 {offsets = [0, 96], sizes = [16, 32], strides = [1, 1]} : vector<16x128xf32> to vector<16x32xf32>
    %136 = vector.shape_cast %132 : vector<16x32xf32> to vector<1x16x32xf32>
    %137 = vector.shape_cast %133 : vector<16x32xf32> to vector<1x16x32xf32>
    %138 = vector.shape_cast %134 : vector<16x32xf32> to vector<1x16x32xf32>
    %139 = vector.shape_cast %135 : vector<16x32xf32> to vector<1x16x32xf32>
    %140 = tpu.concatenate %136, %137, %138, %139 in 0 : vector<1x16x32xf32>, vector<1x16x32xf32>, vector<1x16x32xf32>, vector<1x16x32xf32> -> vector<4x16x32xf32>
    "tpu.trace_start"() <{level = 10 : i32, message = "hqd,hkd->hqk"}> : () -> ()
    %cst_50 = arith.constant dense<0.000000e+00> : vector<4x8x16xf32>
    %141 = tpu.matmul %122, %131, %cst_50 {dimension_numbers = #tpu.dot_dimension_numbers<[2], [2], [1], [1], [0, 0, 0, 1, 1, 1], [0], [0]>} : vector<4x8x32xf32>, vector<4x16x32xf32>, vector<4x8x16xf32> -> vector<4x8x16xf32>
    "tpu.trace_stop"() : () -> ()
    %cst_51 = arith.constant dense<0xFF800000> : vector<4x8xf32>
    %142 = vector.multi_reduction <maximumf>, %141, %cst_51 [2] : vector<4x8x16xf32> to vector<4x8xf32>
    %143 = vector.shape_cast %142 : vector<4x8xf32> to vector<4x8x1xf32>
    %144 = vector.broadcast %143 : vector<4x8x1xf32> to vector<4x8x16xf32>
    %145 = arith.subf %141, %144 : vector<4x8x16xf32>
    %146 = math.exp %145 : vector<4x8x16xf32>
    %cst_52 = arith.constant dense<0.000000e+00> : vector<4x8xf32>
    %147 = vector.multi_reduction <add>, %146, %cst_52 [2] : vector<4x8x16xf32> to vector<4x8xf32>
    %148 = vector.shape_cast %147 : vector<4x8xf32> to vector<4x8x1xf32>
    %149 = vector.broadcast %148 : vector<4x8x1xf32> to vector<4x8x16xf32>
    %150 = arith.divf %146, %149 : vector<4x8x16xf32>
    "tpu.trace_start"() <{level = 10 : i32, message = "hqk,hkd->hqd"}> : () -> ()
    %cst_53 = arith.constant dense<0.000000e+00> : vector<4x8x32xf32>
    %151 = tpu.matmul %150, %140, %cst_53 {dimension_numbers = #tpu.dot_dimension_numbers<[2], [1], [1], [2], [0, 0, 0, 1, 1, 2], [0], [0]>} : vector<4x8x16xf32>, vector<4x16x32xf32>, vector<4x8x32xf32> -> vector<4x8x32xf32>
    "tpu.trace_stop"() : () -> ()
    %c0_54 = arith.constant 0 : index
    %c0_55 = arith.constant 0 : index
    %c0_56 = arith.constant 0 : index
    %c0_57 = arith.constant 0 : index
    %152 = vector.load %arg12[%c0_54, %c0_55, %c0_56, %c0_57] : memref<1x4x32x128xf32, #tpu.memory_space<vmem>>, vector<1x4x32x128xf32>
    %153 = vector.shape_cast %152 : vector<1x4x32x128xf32> to vector<4x32x128xf32>
    %c0_58 = arith.constant 0 : index
    %c0_59 = arith.constant 0 : index
    %c0_60 = arith.constant 0 : index
    %154 = vector.load %arg13[%c0_58, %c0_59, %c0_60] : memref<1x1x128xf32, #tpu.memory_space<vmem>>, vector<1x1x128xf32>
    %155 = vector.shape_cast %154 : vector<1x1x128xf32> to vector<1x128xf32>
    "tpu.trace_start"() <{level = 10 : i32, message = "hqd,hdk->hqk"}> : () -> ()
    %cst_61 = arith.constant dense<0.000000e+00> : vector<4x8x128xf32>
    %156 = tpu.matmul %151, %153, %cst_61 {dimension_numbers = #tpu.dot_dimension_numbers<[2], [1], [1], [2], [0, 0, 0, 1, 1, 2], [0], [0]>} : vector<4x8x32xf32>, vector<4x32x128xf32>, vector<4x8x128xf32> -> vector<4x8x128xf32>
    "tpu.trace_stop"() : () -> ()
    %cst_62 = arith.constant dense<0.000000e+00> : vector<8x128xf32>
    %157 = vector.multi_reduction <add>, %156, %cst_62 [0] : vector<4x8x128xf32> to vector<8x128xf32>
    %158 = vector.broadcast %155 : vector<1x128xf32> to vector<8x128xf32>
    %159 = arith.addf %157, %158 : vector<8x128xf32>
    %160 = arith.addf %97, %159 : vector<8x128xf32>
    %161 = vector.extract_strided_slice %10 {offsets = [1, 0], sizes = [1, 128], strides = [1, 1]} : vector<3x128xf32> to vector<1x128xf32>
    %162 = vector.shape_cast %161 : vector<1x128xf32> to vector<128xf32>
    %163 = vector.extract_strided_slice %12 {offsets = [1, 0], sizes = [1, 128], strides = [1, 1]} : vector<3x128xf32> to vector<1x128xf32>
    %164 = vector.shape_cast %163 : vector<1x128xf32> to vector<128xf32>
    %cst_63 = arith.constant dense<0.000000e+00> : vector<8xf32>
    %165 = vector.multi_reduction <add>, %160, %cst_63 [1] : vector<8x128xf32> to vector<8xf32>
    %166 = vector.shape_cast %165 : vector<8xf32> to vector<8x1xf32>
    %167 = arith.mulf %160, %160 : vector<8x128xf32>
    %cst_64 = arith.constant dense<0.000000e+00> : vector<8xf32>
    %168 = vector.multi_reduction <add>, %167, %cst_64 [1] : vector<8x128xf32> to vector<8xf32>
    %169 = vector.shape_cast %168 : vector<8xf32> to vector<8x1xf32>
    %cst_65 = arith.constant 3.125000e-02 : f32
    %170 = vector.broadcast %cst_65 : f32 to vector<8x1xf32>
    %171 = arith.mulf %166, %170 : vector<8x1xf32>
    %cst_66 = arith.constant 3.125000e-02 : f32
    %172 = vector.broadcast %cst_66 : f32 to vector<8x1xf32>
    %173 = arith.mulf %169, %172 : vector<8x1xf32>
    %174 = arith.mulf %171, %171 : vector<8x1xf32>
    %175 = arith.subf %173, %174 : vector<8x1xf32>
    %176 = vector.broadcast %171 : vector<8x1xf32> to vector<8x128xf32>
    %177 = arith.subf %160, %176 : vector<8x128xf32>
    %cst_67 = arith.constant 9.99999974E-6 : f32
    %178 = vector.broadcast %cst_67 : f32 to vector<8x1xf32>
    %179 = arith.addf %175, %178 : vector<8x1xf32>
    %180 = math.rsqrt %179 : vector<8x1xf32>
    %181 = vector.broadcast %180 : vector<8x1xf32> to vector<8x128xf32>
    %182 = arith.mulf %177, %181 : vector<8x128xf32>
    %183 = vector.shape_cast %162 : vector<128xf32> to vector<1x128xf32>
    %184 = vector.broadcast %183 : vector<1x128xf32> to vector<8x128xf32>
    %185 = arith.mulf %182, %184 : vector<8x128xf32>
    %186 = vector.shape_cast %164 : vector<128xf32> to vector<1x128xf32>
    %187 = vector.broadcast %186 : vector<1x128xf32> to vector<8x128xf32>
    %188 = arith.addf %185, %187 : vector<8x128xf32>
    %c0_68 = arith.constant 0 : index
    %c0_69 = arith.constant 0 : index
    %c0_70 = arith.constant 0 : index
    %189 = vector.load %arg16[%c0_68, %c0_69, %c0_70] : memref<1x128x128xf32, #tpu.memory_space<vmem>>, vector<1x128x128xf32>
    %190 = vector.shape_cast %189 : vector<1x128x128xf32> to vector<128x128xf32>
    %cst_71 = arith.constant dense<0.000000e+00> : vector<8x128xf32>
    %191 = tpu.matmul %188, %190, %cst_71 {dimension_numbers = #tpu.dot_dimension_numbers<[1], [0], [0], [1], [0, 0, 1, 1], [], []>} : vector<8x128xf32>, vector<128x128xf32>, vector<8x128xf32> -> vector<8x128xf32>
    %c0_72 = arith.constant 0 : index
    %c0_73 = arith.constant 0 : index
    %c0_74 = arith.constant 0 : index
    %192 = vector.load %arg17[%c0_72, %c0_73, %c0_74] : memref<1x1x128xf32, #tpu.memory_space<vmem>>, vector<1x1x128xf32>
    %193 = vector.shape_cast %192 : vector<1x1x128xf32> to vector<1x128xf32>
    %194 = vector.broadcast %193 : vector<1x128xf32> to vector<8x128xf32>
    %195 = arith.addf %191, %194 : vector<8x128xf32>
    %cst_75 = arith.constant 0.000000e+00 : f32
    %196 = vector.broadcast %cst_75 : f32 to vector<8x128xf32>
    %197 = arith.maximumf %195, %196 : vector<8x128xf32>
    %c0_76 = arith.constant 0 : index
    %c0_77 = arith.constant 0 : index
    %c0_78 = arith.constant 0 : index
    %198 = vector.load %arg18[%c0_76, %c0_77, %c0_78] : memref<1x128x128xf32, #tpu.memory_space<vmem>>, vector<1x128x128xf32>
    %199 = vector.shape_cast %198 : vector<1x128x128xf32> to vector<128x128xf32>
    %cst_79 = arith.constant dense<0.000000e+00> : vector<8x128xf32>
    %200 = tpu.matmul %197, %199, %cst_79 {dimension_numbers = #tpu.dot_dimension_numbers<[1], [0], [0], [1], [0, 0, 1, 1], [], []>} : vector<8x128xf32>, vector<128x128xf32>, vector<8x128xf32> -> vector<8x128xf32>
    %c0_80 = arith.constant 0 : index
    %c0_81 = arith.constant 0 : index
    %c0_82 = arith.constant 0 : index
    %201 = vector.load %arg19[%c0_80, %c0_81, %c0_82] : memref<1x1x128xf32, #tpu.memory_space<vmem>>, vector<1x1x128xf32>
    %202 = vector.shape_cast %201 : vector<1x1x128xf32> to vector<1x128xf32>
    %203 = vector.broadcast %202 : vector<1x128xf32> to vector<8x128xf32>
    %204 = arith.addf %200, %203 : vector<8x128xf32>
    %205 = arith.addf %188, %204 : vector<8x128xf32>
    %206 = vector.extract_strided_slice %10 {offsets = [2, 0], sizes = [1, 128], strides = [1, 1]} : vector<3x128xf32> to vector<1x128xf32>
    %207 = vector.shape_cast %206 : vector<1x128xf32> to vector<128xf32>
    %208 = vector.extract_strided_slice %12 {offsets = [2, 0], sizes = [1, 128], strides = [1, 1]} : vector<3x128xf32> to vector<1x128xf32>
    %209 = vector.shape_cast %208 : vector<1x128xf32> to vector<128xf32>
    %cst_83 = arith.constant dense<0.000000e+00> : vector<8xf32>
    %210 = vector.multi_reduction <add>, %205, %cst_83 [1] : vector<8x128xf32> to vector<8xf32>
    %211 = vector.shape_cast %210 : vector<8xf32> to vector<8x1xf32>
    %212 = arith.mulf %205, %205 : vector<8x128xf32>
    %cst_84 = arith.constant dense<0.000000e+00> : vector<8xf32>
    %213 = vector.multi_reduction <add>, %212, %cst_84 [1] : vector<8x128xf32> to vector<8xf32>
    %214 = vector.shape_cast %213 : vector<8xf32> to vector<8x1xf32>
    %cst_85 = arith.constant 3.125000e-02 : f32
    %215 = vector.broadcast %cst_85 : f32 to vector<8x1xf32>
    %216 = arith.mulf %211, %215 : vector<8x1xf32>
    %cst_86 = arith.constant 3.125000e-02 : f32
    %217 = vector.broadcast %cst_86 : f32 to vector<8x1xf32>
    %218 = arith.mulf %214, %217 : vector<8x1xf32>
    %219 = arith.mulf %216, %216 : vector<8x1xf32>
    %220 = arith.subf %218, %219 : vector<8x1xf32>
    %221 = vector.broadcast %216 : vector<8x1xf32> to vector<8x128xf32>
    %222 = arith.subf %205, %221 : vector<8x128xf32>
    %cst_87 = arith.constant 9.99999974E-6 : f32
    %223 = vector.broadcast %cst_87 : f32 to vector<8x1xf32>
    %224 = arith.addf %220, %223 : vector<8x1xf32>
    %225 = math.rsqrt %224 : vector<8x1xf32>
    %226 = vector.broadcast %225 : vector<8x1xf32> to vector<8x128xf32>
    %227 = arith.mulf %222, %226 : vector<8x128xf32>
    %228 = vector.shape_cast %207 : vector<128xf32> to vector<1x128xf32>
    %229 = vector.broadcast %228 : vector<1x128xf32> to vector<8x128xf32>
    %230 = arith.mulf %227, %229 : vector<8x128xf32>
    %231 = vector.shape_cast %209 : vector<128xf32> to vector<1x128xf32>
    %232 = vector.broadcast %231 : vector<1x128xf32> to vector<8x128xf32>
    %233 = arith.addf %230, %232 : vector<8x128xf32>
    %c0_88 = arith.constant 0 : index
    %c0_89 = arith.constant 0 : index
    %234 = vector.load %arg23[%c0_88, %c0_89] : memref<8x128xf32, #tpu.memory_space<vmem>>, vector<8x128xf32>
    tpu.vector_store %arg23[%c0_88, %c0_89], %233 {strides = array<i32>} : memref<8x128xf32, #tpu.memory_space<vmem>>, vector<8x128xf32>,
    %c2_i32_90 = arith.constant 2 : i32
    %235 = arith.cmpi eq, %arg1, %c2_i32_90 : i32
    %236 = arith.extui %235 : i1 to i32
    %c0_i32_91 = arith.constant 0 : i32
    %237 = arith.cmpi ne, %236, %c0_i32_91 : i32
    scf.if %237 {
      %c0_92 = arith.constant 0 : index
      %c0_93 = arith.constant 0 : index
      %c0_94 = arith.constant 0 : index
      %238 = vector.load %arg22[%c0_92, %c0_93, %c0_94] : memref<1x8x128xf32, #tpu.memory_space<vmem>>, vector<1x8x128xf32>
      %239 = vector.shape_cast %238 : vector<1x8x128xf32> to vector<8x128xf32>
      %240 = vector.shape_cast %233 : vector<8x128xf32> to vector<1x8x128xf32>
      tpu.vector_store %arg22[%c0_92, %c0_93, %c0_94], %240 {strides = array<i32>} : memref<1x8x128xf32, #tpu.memory_space<vmem>>, vector<1x8x128xf32>,
    } else {
    }
    return
  }
  func.func @transform_0(%arg0: i32, %arg1: i32) -> (i32, i32, i32) {
    %c0_i32 = arith.constant 0 : i32
    %c0_i32_0 = arith.constant 0 : i32
    %c0_i32_1 = arith.constant 0 : i32
    return %arg0, %c0_i32, %c0_i32_0 : i32, i32, i32
  }
  func.func @transform_1(%arg0: i32, %arg1: i32) -> (i32, i32, i32) {
    %c0_i32 = arith.constant 0 : i32
    %c0_i32_0 = arith.constant 0 : i32
    %c0_i32_1 = arith.constant 0 : i32
    return %arg0, %c0_i32, %c0_i32_0 : i32, i32, i32
  }
  func.func @transform_2(%arg0: i32, %arg1: i32) -> (i32, i32, i32) {
    %c0_i32 = arith.constant 0 : i32
    %c0_i32_0 = arith.constant 0 : i32
    %c0_i32_1 = arith.constant 0 : i32
    return %arg1, %c0_i32, %c0_i32_0 : i32, i32, i32
  }
  func.func @transform_3(%arg0: i32, %arg1: i32) -> (i32, i32, i32) {
    %c0_i32 = arith.constant 0 : i32
    %c0_i32_0 = arith.constant 0 : i32
    %c0_i32_1 = arith.constant 0 : i32
    return %arg1, %c0_i32, %c0_i32_0 : i32, i32, i32
  }
  func.func @transform_4(%arg0: i32, %arg1: i32) -> (i32, i32, i32, i32) {
    %c0_i32 = arith.constant 0 : i32
    %c0_i32_0 = arith.constant 0 : i32
    %c0_i32_1 = arith.constant 0 : i32
    %c0_i32_2 = arith.constant 0 : i32
    return %arg1, %c0_i32, %c0_i32_0, %c0_i32_1 : i32, i32, i32, i32
  }
  func.func @transform_5(%arg0: i32, %arg1: i32) -> (i32, i32, i32) {
    %c0_i32 = arith.constant 0 : i32
    %c0_i32_0 = arith.constant 0 : i32
    %c0_i32_1 = arith.constant 0 : i32
    return %arg1, %c0_i32, %c0_i32_0 : i32, i32, i32
  }
  func.func @transform_6(%arg0: i32, %arg1: i32) -> (i32, i32, i32) {
    %c0_i32 = arith.constant 0 : i32
    %c0_i32_0 = arith.constant 0 : i32
    %c0_i32_1 = arith.constant 0 : i32
    return %arg1, %c0_i32, %c0_i32_0 : i32, i32, i32
  }
  func.func @transform_7(%arg0: i32, %arg1: i32) -> (i32, i32, i32) {
    %c0_i32 = arith.constant 0 : i32
    %c0_i32_0 = arith.constant 0 : i32
    %c0_i32_1 = arith.constant 0 : i32
    return %arg1, %c0_i32, %c0_i32_0 : i32, i32, i32
  }
  func.func @transform_8(%arg0: i32, %arg1: i32) -> (i32, i32, i32) {
    %c0_i32 = arith.constant 0 : i32
    %c0_i32_0 = arith.constant 0 : i32
    %c0_i32_1 = arith.constant 0 : i32
    return %arg1, %c0_i32, %c0_i32_0 : i32, i32, i32
  }
  func.func @transform_9(%arg0: i32, %arg1: i32) -> (i32, i32, i32) {
    %c0_i32 = arith.constant 0 : i32
    %c0_i32_0 = arith.constant 0 : i32
    %c0_i32_1 = arith.constant 0 : i32
    return %arg1, %c0_i32, %c0_i32_0 : i32, i32, i32
  }
  func.func @transform_10(%arg0: i32, %arg1: i32) -> (i32, i32, i32, i32) {
    %c0_i32 = arith.constant 0 : i32
    %c0_i32_0 = arith.constant 0 : i32
    %c0_i32_1 = arith.constant 0 : i32
    %c0_i32_2 = arith.constant 0 : i32
    return %arg1, %c0_i32, %c0_i32_0, %c0_i32_1 : i32, i32, i32, i32
  }
  func.func @transform_11(%arg0: i32, %arg1: i32) -> (i32, i32, i32) {
    %c0_i32 = arith.constant 0 : i32
    %c0_i32_0 = arith.constant 0 : i32
    %c0_i32_1 = arith.constant 0 : i32
    return %arg1, %c0_i32, %c0_i32_0 : i32, i32, i32
  }
  func.func @transform_12(%arg0: i32, %arg1: i32) -> (i32, i32, i32) {
    %c0_i32 = arith.constant 0 : i32
    %c0_i32_0 = arith.constant 0 : i32
    %c0_i32_1 = arith.constant 0 : i32
    return %arg1, %c0_i32, %c0_i32_0 : i32, i32, i32
  }
  func.func @transform_13(%arg0: i32, %arg1: i32) -> (i32, i32, i32) {
    %c0_i32 = arith.constant 0 : i32
    %c0_i32_0 = arith.constant 0 : i32
    %c0_i32_1 = arith.constant 0 : i32
    return %arg1, %c0_i32, %c0_i32_0 : i32, i32, i32
  }
  func.func @transform_14(%arg0: i32, %arg1: i32) -> (i32, i32, i32) {
    %c0_i32 = arith.constant 0 : i32
    %c0_i32_0 = arith.constant 0 : i32
    %c0_i32_1 = arith.constant 0 : i32
    return %arg1, %c0_i32, %c0_i32_0 : i32, i32, i32
  }
  func.func @transform_15(%arg0: i32, %arg1: i32) -> (i32, i32, i32) {
    %c0_i32 = arith.constant 0 : i32
    %c0_i32_0 = arith.constant 0 : i32
    %c0_i32_1 = arith.constant 0 : i32
    return %arg1, %c0_i32, %c0_i32_0 : i32, i32, i32
  }
  func.func @transform_16(%arg0: i32, %arg1: i32) -> (i32, i32, i32) {
    %c0_i32 = arith.constant 0 : i32
    %c0_i32_0 = arith.constant 0 : i32
    %c0_i32_1 = arith.constant 0 : i32
    return %arg1, %c0_i32, %c0_i32_0 : i32, i32, i32
  }
  func.func @transform_17(%arg0: i32, %arg1: i32) -> (i32, i32, i32) {
    %c0_i32 = arith.constant 0 : i32
    %c0_i32_0 = arith.constant 0 : i32
    %c0_i32_1 = arith.constant 0 : i32
    return %arg1, %c0_i32, %c0_i32_0 : i32, i32, i32
  }
  func.func @transform_18(%arg0: i32, %arg1: i32) -> (i32, i32) {
    %c0_i32 = arith.constant 0 : i32
    %c0_i32_0 = arith.constant 0 : i32
    %c0_i32_1 = arith.constant 0 : i32
    return %c0_i32, %c0_i32_0 : i32, i32
  }
  func.func @transform_19(%arg0: i32, %arg1: i32) -> (i32, i32) {
    %c0_i32 = arith.constant 0 : i32
    %c0_i32_0 = arith.constant 0 : i32
    %c0_i32_1 = arith.constant 0 : i32
    return %c0_i32, %c0_i32_0 : i32, i32
  }
  func.func @transform_20(%arg0: i32, %arg1: i32) -> (i32, i32, i32) {
    %c0_i32 = arith.constant 0 : i32
    %c0_i32_0 = arith.constant 0 : i32
    %c0_i32_1 = arith.constant 0 : i32
    return %arg0, %c0_i32, %c0_i32_0 : i32, i32, i32
  }
}

</mosaic_0001>

<llo_original>
// kernel: ptransformer_decoder.1
$region0: #{ptransformer_decoder.1}
  #allocation0 [shape = 'u32[]', space=smem, size = 0x4, offset = 0x4, fixed_abs, tag = 'smem constant byte address 0x4 - core index']
  #allocation1 [shape = 'u32[72,128]{1,0:T(1,128)}', space=vmem, size = 0x9000, scoped, tag = 'internal scratch']
  #allocation2 [shape = 'f32[8,128]{1,0:T(8,128)}', space=vmem, size = 0x1000, scoped, tag = 'scratch operand']
  %s0 = inlined_call_operand.vmem [shape: f32[2,8,128], index: 0, kind: input, shape index: {}]
  %s1 = inlined_call_operand.vmem [shape: f32[2,16,128], index: 1, kind: input, shape index: {}]
  %s2 = inlined_call_operand.hbm [shape: f32[3,128,384], index: 2, kind: input, shape index: {}]
  %s3 = inlined_call_operand.vmem [shape: f32[3,1,384], index: 3, kind: input, shape index: {}]
  %s4 = inlined_call_operand.hbm [shape: f32[3,4,32,128], index: 4, kind: input, shape index: {}]
  %s5 = inlined_call_operand.vmem [shape: f32[3,1,128], index: 5, kind: input, shape index: {}]
  %s6 = inlined_call_operand.hbm [shape: f32[3,128,128], index: 6, kind: input, shape index: {}]
  %s7 = inlined_call_operand.vmem [shape: f32[3,1,128], index: 7, kind: input, shape index: {}]
  %s8 = inlined_call_operand.hbm [shape: f32[3,128,256], index: 8, kind: input, shape index: {}]
  %s9 = inlined_call_operand.vmem [shape: f32[3,1,256], index: 9, kind: input, shape index: {}]
  %s10 = inlined_call_operand.hbm [shape: f32[3,4,32,128], index: 10, kind: input, shape index: {}]
  %s11 = inlined_call_operand.vmem [shape: f32[3,1,128], index: 11, kind: input, shape index: {}]
  %s12 = inlined_call_operand.vmem [shape: f32[3,3,128], index: 12, kind: input, shape index: {}]
  %s13 = inlined_call_operand.vmem [shape: f32[3,3,128], index: 13, kind: input, shape index: {}]
  %s14 = inlined_call_operand.hbm [shape: f32[3,128,128], index: 14, kind: input, shape index: {}]
  %s15 = inlined_call_operand.vmem [shape: f32[3,1,128], index: 15, kind: input, shape index: {}]
  %s16 = inlined_call_operand.hbm [shape: f32[3,128,128], index: 16, kind: input, shape index: {}]
  %s17 = inlined_call_operand.vmem [shape: f32[3,1,128], index: 17, kind: input, shape index: {}]
  %s18 = inlined_call_operand.vmem [shape: f32[1,128], index: 18, kind: input, shape index: {}]
  %s19 = inlined_call_operand.vmem [shape: f32[1,128], index: 19, kind: input, shape index: {}]
  %s20 = inlined_call_operand.vmem [shape: f32[2,8,128], index: 20, kind: output, shape index: {}]
  %s21 = sld [smem:[#allocation0]]
  $region153: #{ptransformer_decoder.1} parent=0
    _
  %s23 = ssub.s32 1, %s21
  %s24 = scalar_select 0, %s23, %s21
  $region1: #{ptransformer_decoder.1} parent=0
    #allocation3 [shape = 'u8[393216]{0}', space=vmem, size = 0x60000, scoped, tag = 'input window, operand 2']
    #allocation4 [shape = 's32[2]{0}', space=sflag, size = 0x8, scoped, tag = 'scoped memory for ptransformer_decoder.1']
    #allocation5 [shape = 'u8[131072]{0}', space=vmem, size = 0x20000, scoped, tag = 'input window, operand 4']
    #allocation6 [shape = 's32[2]{0}', space=sflag, size = 0x8, scoped, tag = 'scoped memory for ptransformer_decoder.1']
    #allocation7 [shape = 'u8[131072]{0}', space=vmem, size = 0x20000, scoped, tag = 'input window, operand 6']
    #allocation8 [shape = 'u8[262144]{0}', space=vmem, size = 0x40000, scoped, tag = 'input window, operand 8']
    #allocation9 [shape = 's32[2]{0}', space=sflag, size = 0x8, scoped, tag = 'scoped memory for ptransformer_decoder.1']
    #allocation10 [shape = 'u8[131072]{0}', space=vmem, size = 0x20000, scoped, tag = 'input window, operand 10']
    #allocation11 [shape = 'u8[131072]{0}', space=vmem, size = 0x20000, scoped, tag = 'input window, operand 14']
    #allocation12 [shape = 's32[2]{0}', space=sflag, size = 0x8, scoped, tag = 'scoped memory for ptransformer_decoder.1']
    #allocation13 [shape = 'u8[131072]{0}', space=vmem, size = 0x20000, scoped, tag = 'input window, operand 16']
    %25 = vsyncpa [#allocation4], 0
    %s26 = scalar_lea.sflag [#allocation4], 1
    %27 = vsyncpa %s26, 0
    %28 = vsyncpa [#allocation6], 0
    %s29 = scalar_lea.sflag [#allocation6], 1
    %30 = vsyncpa %s29, 0
    %31 = vsyncpa [#allocation9], 0
    %s32 = scalar_lea.sflag [#allocation9], 1
    %33 = vsyncpa %s32, 0
    %34 = vsyncpa [#allocation12], 0
    %s35 = scalar_lea.sflag [#allocation12], 1
    %36 = vsyncpa %s35, 0
    loop: start=0, step=1, limit=8
    $region2: #{ptransformer_decoder.1} parent=1 // loop_pre_header
      _
    $region3: #{ptransformer_decoder.1} parent=1 // loop_header
      %s38 = sphi 0, %s42
      %p39 = scmp.ge.s32.totalorder %s38, 8
      %s45 = sphi 0, %s57
      %s46 = sphi 0, %s53
      %s47 = sphi 0, %s45
      %s48 = sphi 0, %s46
      %s49 = sphi 0, %s47
      %s50 = sphi 0, %s48
      %s60 = sphi 0, %s62
      %s63 = sphi 0, %s60
      %s64 = sphi 0, %s63
      %s80 = sphi 0, %s64
      %s86 = sphi 0, %s88
      %s89 = sphi 0, %s86
      %s90 = sphi 0, %s89
      %s106 = sphi 0, %s90
      %s112 = sphi 0, %s114
      %s115 = sphi 0, %s112
      %s116 = sphi 0, %s115
      %s132 = sphi 0, %s116
      %s138 = sphi 0, %s140
      %s141 = sphi 0, %s138
      %s142 = sphi 0, %s141
      %s158 = sphi 0, %s142
      %s164 = sphi 0, %s166
      %s167 = sphi 0, %s164
      %s168 = sphi 0, %s167
      %s184 = sphi 0, %s168
      %s190 = sphi 0, %s192
      %s193 = sphi 0, %s190
      %s194 = sphi 0, %s193
      %s210 = sphi 0, %s194
      %s216 = sphi 0, %s218
      %s219 = sphi 0, %s216
      %s220 = sphi 0, %s219
      %s236 = sphi 0, %s220
      %s242 = sphi 0, %s244
      %s245 = sphi 0, %s242
      %s246 = sphi 0, %s245
      %s262 = sphi 0, %s246
      %s268 = sphi 0, %s270
      %s271 = sphi 0, %s268
      %s272 = sphi 0, %s271
      %s288 = sphi 0, %s272
      %s294 = sphi 0, %s296
      %s297 = sphi 0, %s294
      %s298 = sphi 0, %s297
      %s314 = sphi 0, %s298
      %s320 = sphi 0, %s322
      %s323 = sphi 0, %s320
      %s324 = sphi 0, %s323
      %s340 = sphi 0, %s324
      %s346 = sphi 0, %s348
      %s349 = sphi 0, %s346
      %s350 = sphi 0, %s349
      %s366 = sphi 0, %s350
      %s372 = sphi 0, %s374
      %s375 = sphi 0, %s372
      %s376 = sphi 0, %s375
      %s392 = sphi 0, %s376
      %s398 = sphi 0, %s400
      %s401 = sphi 0, %s398
      %s402 = sphi 0, %s401
      %s418 = sphi 0, %s402
      %s424 = sphi 0, %s426
      %s427 = sphi 0, %s424
      %s428 = sphi 0, %s427
      %s444 = sphi 0, %s428
      %s450 = sphi 0, %s452
      %s453 = sphi 0, %s450
      %s454 = sphi 0, %s453
      %s470 = sphi 0, %s454
      %s476 = sphi 0, %s478
      %s479 = sphi 0, %s476
      %s480 = sphi 0, %s479
      %s496 = sphi 0, %s480
      %s502 = sphi 0, %s504
      %s505 = sphi 0, %s502
      %s506 = sphi 0, %s505
      %s522 = sphi 0, %s506
      %s526 = sphi 0, %s526
      %s528 = sphi 0, %s526
      %s529 = sphi 0, %s528
      %s543 = sphi 0, %s529
      %s547 = sphi 0, %s547
      %s549 = sphi 0, %s547
      %s550 = sphi 0, %s549
      %s564 = sphi 0, %s550
      %s570 = sphi 0, %s572
      %s573 = sphi 0, %s570
      %s574 = sphi 0, %s573
      %s590 = sphi 0, %s574
    $region4: #{ptransformer_decoder.1} parent=1 // loop_header_branch
      %41 = sbr.rel (%p39) target = $region8
    $region5: #{ptransformer_decoder.1} parent=1 // loop_body
      %s43 = ssub.s32 %s38, 1
      %s44 = ssub.s32 %s38, 2
      %s51 = sadd.s32 1, %s46
      %p52 = scmp.ge.s32.totalorder %s51, 3
      %s53 = scalar_select %p52, 0, %s51
      %s54 = sadd.s32 1, %s45
      %s55 = scalar_select %p52, %s54, %s45
      %p56 = scmp.ge.s32.totalorder %s55, 2
      %s57 = scalar_select %p56, 0, %s55
      %s58 = ssub.s32 %s45, %s57
      %p59 = scmp.eq.s32.totalorder %s58, 0
      %s61 = sadd.s32 %s60, 1
      %s62 = scalar_select %p59, %s60, %s61
      %p65 = pneg %p59
      %p66 = scmp.eq.s32.totalorder %s38, 5
      %p67 = por %p65, %p66
      %p68 = scmp.ne.s32.totalorder %s60, %s63
      %p69 = scmp.eq.s32.totalorder %s38, 0
      %p70 = por %p68, %p69
      %p71 = scmp.ne.s32.totalorder %s60, %s63
      %p72 = scmp.eq.s32.totalorder %s43, 5
      %p73 = por %p71, %p72
      %p74 = scmp.ne.s32.totalorder %s63, %s64
      %p75 = scmp.eq.s32.totalorder %s43, 0
      %p76 = por %p74, %p75
      %p77 = scmp.ne.s32.totalorder %s63, %s64
      %p78 = scmp.eq.s32.totalorder %s44, 5
      %p79 = por %p77, %p78
      %p81 = scmp.ne.s32.totalorder %s64, %s80
      %p82 = scmp.eq.s32.totalorder %s44, 0
      %p83 = por %p81, %p82
      %s84 = ssub.s32 %s45, %s57
      %p85 = scmp.eq.s32.totalorder %s84, 0
      %s87 = sadd.s32 %s86, 1
      %s88 = scalar_select %p85, %s86, %s87
      %p91 = pneg %p85
      %p92 = scmp.eq.s32.totalorder %s38, 5
      %p93 = por %p91, %p92
      %p94 = scmp.ne.s32.totalorder %s86, %s89
      %p95 = scmp.eq.s32.totalorder %s38, 0
      %p96 = por %p94, %p95
      %p97 = scmp.ne.s32.totalorder %s86, %s89
      %p98 = scmp.eq.s32.totalorder %s43, 5
      %p99 = por %p97, %p98
      %p100 = scmp.ne.s32.totalorder %s89, %s90
      %p101 = scmp.eq.s32.totalorder %s43, 0
      %p102 = por %p100, %p101
      %p103 = scmp.ne.s32.totalorder %s89, %s90
      %p104 = scmp.eq.s32.totalorder %s44, 5
      %p105 = por %p103, %p104
      %p107 = scmp.ne.s32.totalorder %s90, %s106
      %p108 = scmp.eq.s32.totalorder %s44, 0
      %p109 = por %p107, %p108
      %s110 = ssub.s32 %s46, %s53
      %p111 = scmp.eq.s32.totalorder %s110, 0
      %s113 = sadd.s32 %s112, 1
      %s114 = scalar_select %p111, %s112, %s113
      %p117 = pneg %p111
      %p118 = scmp.eq.s32.totalorder %s38, 5
      %p119 = por %p117, %p118
      %p120 = scmp.ne.s32.totalorder %s112, %s115
      %p121 = scmp.eq.s32.totalorder %s38, 0
      %p122 = por %p120, %p121
      %p123 = scmp.ne.s32.totalorder %s112, %s115
      %p124 = scmp.eq.s32.totalorder %s43, 5
      %p125 = por %p123, %p124
      %p126 = scmp.ne.s32.totalorder %s115, %s116
      %p127 = scmp.eq.s32.totalorder %s43, 0
      %p128 = por %p126, %p127
      %p129 = scmp.ne.s32.totalorder %s115, %s116
      %p130 = scmp.eq.s32.totalorder %s44, 5
      %p131 = por %p129, %p130
      %p133 = scmp.ne.s32.totalorder %s116, %s132
      %p134 = scmp.eq.s32.totalorder %s44, 0
      %p135 = por %p133, %p134
      %s136 = ssub.s32 %s46, %s53
      %p137 = scmp.eq.s32.totalorder %s136, 0
      %s139 = sadd.s32 %s138, 1
      %s140 = scalar_select %p137, %s138, %s139
      %p143 = pneg %p137
      %p144 = scmp.eq.s32.totalorder %s38, 5
      %p145 = por %p143, %p144
      %p146 = scmp.ne.s32.totalorder %s138, %s141
      %p147 = scmp.eq.s32.totalorder %s38, 0
      %p148 = por %p146, %p147
      %p149 = scmp.ne.s32.totalorder %s138, %s141
      %p150 = scmp.eq.s32.totalorder %s43, 5
      %p151 = por %p149, %p150
      %p152 = scmp.ne.s32.totalorder %s141, %s142
      %p153 = scmp.eq.s32.totalorder %s43, 0
      %p154 = por %p152, %p153
      %p155 = scmp.ne.s32.totalorder %s141, %s142
      %p156 = scmp.eq.s32.totalorder %s44, 5
      %p157 = por %p155, %p156
      %p159 = scmp.ne.s32.totalorder %s142, %s158
      %p160 = scmp.eq.s32.totalorder %s44, 0
      %p161 = por %p159, %p160
      %s162 = ssub.s32 %s46, %s53
      %p163 = scmp.eq.s32.totalorder %s162, 0
      %s165 = sadd.s32 %s164, 1
      %s166 = scalar_select %p163, %s164, %s165
      %p169 = pneg %p163
      %p170 = scmp.eq.s32.totalorder %s38, 5
      %p171 = por %p169, %p170
      %p172 = scmp.ne.s32.totalorder %s164, %s167
      %p173 = scmp.eq.s32.totalorder %s38, 0
      %p174 = por %p172, %p173
      %p175 = scmp.ne.s32.totalorder %s164, %s167
      %p176 = scmp.eq.s32.totalorder %s43, 5
      %p177 = por %p175, %p176
      %p178 = scmp.ne.s32.totalorder %s167, %s168
      %p179 = scmp.eq.s32.totalorder %s43, 0
      %p180 = por %p178, %p179
      %p181 = scmp.ne.s32.totalorder %s167, %s168
      %p182 = scmp.eq.s32.totalorder %s44, 5
      %p183 = por %p181, %p182
      %p185 = scmp.ne.s32.totalorder %s168, %s184
      %p186 = scmp.eq.s32.totalorder %s44, 0
      %p187 = por %p185, %p186
      %s188 = ssub.s32 %s46, %s53
      %p189 = scmp.eq.s32.totalorder %s188, 0
      %s191 = sadd.s32 %s190, 1
      %s192 = scalar_select %p189, %s190, %s191
      %p195 = pneg %p189
      %p196 = scmp.eq.s32.totalorder %s38, 5
      %p197 = por %p195, %p196
      %p198 = scmp.ne.s32.totalorder %s190, %s193
      %p199 = scmp.eq.s32.totalorder %s38, 0
      %p200 = por %p198, %p199
      %p201 = scmp.ne.s32.totalorder %s190, %s193
      %p202 = scmp.eq.s32.totalorder %s43, 5
      %p203 = por %p201, %p202
      %p204 = scmp.ne.s32.totalorder %s193, %s194
      %p205 = scmp.eq.s32.totalorder %s43, 0
      %p206 = por %p204, %p205
      %p207 = scmp.ne.s32.totalorder %s193, %s194
      %p208 = scmp.eq.s32.totalorder %s44, 5
      %p209 = por %p207, %p208
      %p211 = scmp.ne.s32.totalorder %s194, %s210
      %p212 = scmp.eq.s32.totalorder %s44, 0
      %p213 = por %p211, %p212
      %s214 = ssub.s32 %s46, %s53
      %p215 = scmp.eq.s32.totalorder %s214, 0
      %s217 = sadd.s32 %s216, 1
      %s218 = scalar_select %p215, %s216, %s217
      %p221 = pneg %p215
      %p222 = scmp.eq.s32.totalorder %s38, 5
      %p223 = por %p221, %p222
      %p224 = scmp.ne.s32.totalorder %s216, %s219
      %p225 = scmp.eq.s32.totalorder %s38, 0
      %p226 = por %p224, %p225
      %p227 = scmp.ne.s32.totalorder %s216, %s219
      %p228 = scmp.eq.s32.totalorder %s43, 5
      %p229 = por %p227, %p228
      %p230 = scmp.ne.s32.totalorder %s219, %s220
      %p231 = scmp.eq.s32.totalorder %s43, 0
      %p232 = por %p230, %p231
      %p233 = scmp.ne.s32.totalorder %s219, %s220
      %p234 = scmp.eq.s32.totalorder %s44, 5
      %p235 = por %p233, %p234
      %p237 = scmp.ne.s32.totalorder %s220, %s236
      %p238 = scmp.eq.s32.totalorder %s44, 0
      %p239 = por %p237, %p238
      %s240 = ssub.s32 %s46, %s53
      %p241 = scmp.eq.s32.totalorder %s240, 0
      %s243 = sadd.s32 %s242, 1
      %s244 = scalar_select %p241, %s242, %s243
      %p247 = pneg %p241
      %p248 = scmp.eq.s32.totalorder %s38, 5
      %p249 = por %p247, %p248
      %p250 = scmp.ne.s32.totalorder %s242, %s245
      %p251 = scmp.eq.s32.totalorder %s38, 0
      %p252 = por %p250, %p251
      %p253 = scmp.ne.s32.totalorder %s242, %s245
      %p254 = scmp.eq.s32.totalorder %s43, 5
      %p255 = por %p253, %p254
      %p256 = scmp.ne.s32.totalorder %s245, %s246
      %p257 = scmp.eq.s32.totalorder %s43, 0
      %p258 = por %p256, %p257
      %p259 = scmp.ne.s32.totalorder %s245, %s246
      %p260 = scmp.eq.s32.totalorder %s44, 5
      %p261 = por %p259, %p260
      %p263 = scmp.ne.s32.totalorder %s246, %s262
      %p264 = scmp.eq.s32.totalorder %s44, 0
      %p265 = por %p263, %p264
      %s266 = ssub.s32 %s46, %s53
      %p267 = scmp.eq.s32.totalorder %s266, 0
      %s269 = sadd.s32 %s268, 1
      %s270 = scalar_select %p267, %s268, %s269
      %p273 = pneg %p267
      %p274 = scmp.eq.s32.totalorder %s38, 5
      %p275 = por %p273, %p274
      %p276 = scmp.ne.s32.totalorder %s268, %s271
      %p277 = scmp.eq.s32.totalorder %s38, 0
      %p278 = por %p276, %p277
      %p279 = scmp.ne.s32.totalorder %s268, %s271
      %p280 = scmp.eq.s32.totalorder %s43, 5
      %p281 = por %p279, %p280
      %p282 = scmp.ne.s32.totalorder %s271, %s272
      %p283 = scmp.eq.s32.totalorder %s43, 0
      %p284 = por %p282, %p283
      %p285 = scmp.ne.s32.totalorder %s271, %s272
      %p286 = scmp.eq.s32.totalorder %s44, 5
      %p287 = por %p285, %p286
      %p289 = scmp.ne.s32.totalorder %s272, %s288
      %p290 = scmp.eq.s32.totalorder %s44, 0
      %p291 = por %p289, %p290
      %s292 = ssub.s32 %s46, %s53
      %p293 = scmp.eq.s32.totalorder %s292, 0
      %s295 = sadd.s32 %s294, 1
      %s296 = scalar_select %p293, %s294, %s295
      %p299 = pneg %p293
      %p300 = scmp.eq.s32.totalorder %s38, 5
      %p301 = por %p299, %p300
      %p302 = scmp.ne.s32.totalorder %s294, %s297
      %p303 = scmp.eq.s32.totalorder %s38, 0
      %p304 = por %p302, %p303
      %p305 = scmp.ne.s32.totalorder %s294, %s297
      %p306 = scmp.eq.s32.totalorder %s43, 5
      %p307 = por %p305, %p306
      %p308 = scmp.ne.s32.totalorder %s297, %s298
      %p309 = scmp.eq.s32.totalorder %s43, 0
      %p310 = por %p308, %p309
      %p311 = scmp.ne.s32.totalorder %s297, %s298
      %p312 = scmp.eq.s32.totalorder %s44, 5
      %p313 = por %p311, %p312
      %p315 = scmp.ne.s32.totalorder %s298, %s314
      %p316 = scmp.eq.s32.totalorder %s44, 0
      %p317 = por %p315, %p316
      %s318 = ssub.s32 %s46, %s53
      %p319 = scmp.eq.s32.totalorder %s318, 0
      %s321 = sadd.s32 %s320, 1
      %s322 = scalar_select %p319, %s320, %s321
      %p325 = pneg %p319
      %p326 = scmp.eq.s32.totalorder %s38, 5
      %p327 = por %p325, %p326
      %p328 = scmp.ne.s32.totalorder %s320, %s323
      %p329 = scmp.eq.s32.totalorder %s38, 0
      %p330 = por %p328, %p329
      %p331 = scmp.ne.s32.totalorder %s320, %s323
      %p332 = scmp.eq.s32.totalorder %s43, 5
      %p333 = por %p331, %p332
      %p334 = scmp.ne.s32.totalorder %s323, %s324
      %p335 = scmp.eq.s32.totalorder %s43, 0
      %p336 = por %p334, %p335
      %p337 = scmp.ne.s32.totalorder %s323, %s324
      %p338 = scmp.eq.s32.totalorder %s44, 5
      %p339 = por %p337, %p338
      %p341 = scmp.ne.s32.totalorder %s324, %s340
      %p342 = scmp.eq.s32.totalorder %s44, 0
      %p343 = por %p341, %p342
      %s344 = ssub.s32 %s46, %s53
      %p345 = scmp.eq.s32.totalorder %s344, 0
      %s347 = sadd.s32 %s346, 1
      %s348 = scalar_select %p345, %s346, %s347
      %p351 = pneg %p345
      %p352 = scmp.eq.s32.totalorder %s38, 5
      %p353 = por %p351, %p352
      %p354 = scmp.ne.s32.totalorder %s346, %s349
      %p355 = scmp.eq.s32.totalorder %s38, 0
      %p356 = por %p354, %p355
      %p357 = scmp.ne.s32.totalorder %s346, %s349
      %p358 = scmp.eq.s32.totalorder %s43, 5
      %p359 = por %p357, %p358
      %p360 = scmp.ne.s32.totalorder %s349, %s350
      %p361 = scmp.eq.s32.totalorder %s43, 0
      %p362 = por %p360, %p361
      %p363 = scmp.ne.s32.totalorder %s349, %s350
      %p364 = scmp.eq.s32.totalorder %s44, 5
      %p365 = por %p363, %p364
      %p367 = scmp.ne.s32.totalorder %s350, %s366
      %p368 = scmp.eq.s32.totalorder %s44, 0
      %p369 = por %p367, %p368
      %s370 = ssub.s32 %s46, %s53
      %p371 = scmp.eq.s32.totalorder %s370, 0
      %s373 = sadd.s32 %s372, 1
      %s374 = scalar_select %p371, %s372, %s373
      %p377 = pneg %p371
      %p378 = scmp.eq.s32.totalorder %s38, 5
      %p379 = por %p377, %p378
      %p380 = scmp.ne.s32.totalorder %s372, %s375
      %p381 = scmp.eq.s32.totalorder %s38, 0
      %p382 = por %p380, %p381
      %p383 = scmp.ne.s32.totalorder %s372, %s375
      %p384 = scmp.eq.s32.totalorder %s43, 5
      %p385 = por %p383, %p384
      %p386 = scmp.ne.s32.totalorder %s375, %s376
      %p387 = scmp.eq.s32.totalorder %s43, 0
      %p388 = por %p386, %p387
      %p389 = scmp.ne.s32.totalorder %s375, %s376
      %p390 = scmp.eq.s32.totalorder %s44, 5
      %p391 = por %p389, %p390
      %p393 = scmp.ne.s32.totalorder %s376, %s392
      %p394 = scmp.eq.s32.totalorder %s44, 0
      %p395 = por %p393, %p394
      %s396 = ssub.s32 %s46, %s53
      %p397 = scmp.eq.s32.totalorder %s396, 0
      %s399 = sadd.s32 %s398, 1
      %s400 = scalar_select %p397, %s398, %s399
      %p403 = pneg %p397
      %p404 = scmp.eq.s32.totalorder %s38, 5
      %p405 = por %p403, %p404
      %p406 = scmp.ne.s32.totalorder %s398, %s401
      %p407 = scmp.eq.s32.totalorder %s38, 0
      %p408 = por %p406, %p407
      %p409 = scmp.ne.s32.totalorder %s398, %s401
      %p410 = scmp.eq.s32.totalorder %s43, 5
      %p411 = por %p409, %p410
      %p412 = scmp.ne.s32.totalorder %s401, %s402
      %p413 = scmp.eq.s32.totalorder %s43, 0
      %p414 = por %p412, %p413
      %p415 = scmp.ne.s32.totalorder %s401, %s402
      %p416 = scmp.eq.s32.totalorder %s44, 5
      %p417 = por %p415, %p416
      %p419 = scmp.ne.s32.totalorder %s402, %s418
      %p420 = scmp.eq.s32.totalorder %s44, 0
      %p421 = por %p419, %p420
      %s422 = ssub.s32 %s46, %s53
      %p423 = scmp.eq.s32.totalorder %s422, 0
      %s425 = sadd.s32 %s424, 1
      %s426 = scalar_select %p423, %s424, %s425
      %p429 = pneg %p423
      %p430 = scmp.eq.s32.totalorder %s38, 5
      %p431 = por %p429, %p430
      %p432 = scmp.ne.s32.totalorder %s424, %s427
      %p433 = scmp.eq.s32.totalorder %s38, 0
      %p434 = por %p432, %p433
      %p435 = scmp.ne.s32.totalorder %s424, %s427
      %p436 = scmp.eq.s32.totalorder %s43, 5
      %p437 = por %p435, %p436
      %p438 = scmp.ne.s32.totalorder %s427, %s428
      %p439 = scmp.eq.s32.totalorder %s43, 0
      %p440 = por %p438, %p439
      %p441 = scmp.ne.s32.totalorder %s427, %s428
      %p442 = scmp.eq.s32.totalorder %s44, 5
      %p443 = por %p441, %p442
      %p445 = scmp.ne.s32.totalorder %s428, %s444
      %p446 = scmp.eq.s32.totalorder %s44, 0
      %p447 = por %p445, %p446
      %s448 = ssub.s32 %s46, %s53
      %p449 = scmp.eq.s32.totalorder %s448, 0
      %s451 = sadd.s32 %s450, 1
      %s452 = scalar_select %p449, %s450, %s451
      %p455 = pneg %p449
      %p456 = scmp.eq.s32.totalorder %s38, 5
      %p457 = por %p455, %p456
      %p458 = scmp.ne.s32.totalorder %s450, %s453
      %p459 = scmp.eq.s32.totalorder %s38, 0
      %p460 = por %p458, %p459
      %p461 = scmp.ne.s32.totalorder %s450, %s453
      %p462 = scmp.eq.s32.totalorder %s43, 5
      %p463 = por %p461, %p462
      %p464 = scmp.ne.s32.totalorder %s453, %s454
      %p465 = scmp.eq.s32.totalorder %s43, 0
      %p466 = por %p464, %p465
      %p467 = scmp.ne.s32.totalorder %s453, %s454
      %p468 = scmp.eq.s32.totalorder %s44, 5
      %p469 = por %p467, %p468
      %p471 = scmp.ne.s32.totalorder %s454, %s470
      %p472 = scmp.eq.s32.totalorder %s44, 0
      %p473 = por %p471, %p472
      %s474 = ssub.s32 %s46, %s53
      %p475 = scmp.eq.s32.totalorder %s474, 0
      %s477 = sadd.s32 %s476, 1
      %s478 = scalar_select %p475, %s476, %s477
      %p481 = pneg %p475
      %p482 = scmp.eq.s32.totalorder %s38, 5
      %p483 = por %p481, %p482
      %p484 = scmp.ne.s32.totalorder %s476, %s479
      %p485 = scmp.eq.s32.totalorder %s38, 0
      %p486 = por %p484, %p485
      %p487 = scmp.ne.s32.totalorder %s476, %s479
      %p488 = scmp.eq.s32.totalorder %s43, 5
      %p489 = por %p487, %p488
      %p490 = scmp.ne.s32.totalorder %s479, %s480
      %p491 = scmp.eq.s32.totalorder %s43, 0
      %p492 = por %p490, %p491
      %p493 = scmp.ne.s32.totalorder %s479, %s480
      %p494 = scmp.eq.s32.totalorder %s44, 5
      %p495 = por %p493, %p494
      %p497 = scmp.ne.s32.totalorder %s480, %s496
      %p498 = scmp.eq.s32.totalorder %s44, 0
      %p499 = por %p497, %p498
      %s500 = ssub.s32 %s46, %s53
      %p501 = scmp.eq.s32.totalorder %s500, 0
      %s503 = sadd.s32 %s502, 1
      %s504 = scalar_select %p501, %s502, %s503
      %p507 = pneg %p501
      %p508 = scmp.eq.s32.totalorder %s38, 5
      %p509 = por %p507, %p508
      %p510 = scmp.ne.s32.totalorder %s502, %s505
      %p511 = scmp.eq.s32.totalorder %s38, 0
      %p512 = por %p510, %p511
      %p513 = scmp.ne.s32.totalorder %s502, %s505
      %p514 = scmp.eq.s32.totalorder %s43, 5
      %p515 = por %p513, %p514
      %p516 = scmp.ne.s32.totalorder %s505, %s506
      %p517 = scmp.eq.s32.totalorder %s43, 0
      %p518 = por %p516, %p517
      %p519 = scmp.ne.s32.totalorder %s505, %s506
      %p520 = scmp.eq.s32.totalorder %s44, 5
      %p521 = por %p519, %p520
      %p523 = scmp.ne.s32.totalorder %s506, %s522
      %p524 = scmp.eq.s32.totalorder %s44, 0
      %p525 = por %p523, %p524
      %s527 = sadd.s32 %s526, 1
      %p530 = scmp.eq.s32.totalorder %s38, 5
      %p531 = scmp.ne.s32.totalorder %s526, %s528
      %p532 = scmp.eq.s32.totalorder %s38, 0
      %p533 = por %p531, %p532
      %p534 = scmp.ne.s32.totalorder %s526, %s528
      %p535 = scmp.eq.s32.totalorder %s43, 5
      %p536 = por %p534, %p535
      %p537 = scmp.ne.s32.totalorder %s528, %s529
      %p538 = scmp.eq.s32.totalorder %s43, 0
      %p539 = por %p537, %p538
      %p540 = scmp.ne.s32.totalorder %s528, %s529
      %p541 = scmp.eq.s32.totalorder %s44, 5
      %p542 = por %p540, %p541
      %p544 = scmp.ne.s32.totalorder %s529, %s543
      %p545 = scmp.eq.s32.totalorder %s44, 0
      %p546 = por %p544, %p545
      %s548 = sadd.s32 %s547, 1
      %p551 = scmp.eq.s32.totalorder %s38, 5
      %p552 = scmp.ne.s32.totalorder %s547, %s549
      %p553 = scmp.eq.s32.totalorder %s38, 0
      %p554 = por %p552, %p553
      %p555 = scmp.ne.s32.totalorder %s547, %s549
      %p556 = scmp.eq.s32.totalorder %s43, 5
      %p557 = por %p555, %p556
      %p558 = scmp.ne.s32.totalorder %s549, %s550
      %p559 = scmp.eq.s32.totalorder %s43, 0
      %p560 = por %p558, %p559
      %p561 = scmp.ne.s32.totalorder %s549, %s550
      %p562 = scmp.eq.s32.totalorder %s44, 5
      %p563 = por %p561, %p562
      %p565 = scmp.ne.s32.totalorder %s550, %s564
      %p566 = scmp.eq.s32.totalorder %s44, 0
      %p567 = por %p565, %p566
      %s568 = ssub.s32 %s45, %s57
      %p569 = scmp.eq.s32.totalorder %s568, 0
      %s571 = sadd.s32 %s570, 1
      %s572 = scalar_select %p569, %s570, %s571
      %p575 = pneg %p569
      %p576 = scmp.eq.s32.totalorder %s38, 5
      %p577 = por %p575, %p576
      %p578 = scmp.ne.s32.totalorder %s570, %s573
      %p579 = scmp.eq.s32.totalorder %s38, 0
      %p580 = por %p578, %p579
      %p581 = scmp.ne.s32.totalorder %s570, %s573
      %p582 = scmp.eq.s32.totalorder %s43, 5
      %p583 = por %p581, %p582
      %p584 = scmp.ne.s32.totalorder %s573, %s574
      %p585 = scmp.eq.s32.totalorder %s43, 0
      %p586 = por %p584, %p585
      %p587 = scmp.ne.s32.totalorder %s573, %s574
      %p588 = scmp.eq.s32.totalorder %s44, 5
      %p589 = por %p587, %p588
      %p591 = scmp.ne.s32.totalorder %s574, %s590
      %p592 = scmp.eq.s32.totalorder %s44, 0
      %p593 = por %p591, %p592
      %p594 = scmp.le.s32.totalorder 1, %s38
      %p595 = scmp.lt.s32.totalorder %s38, 7
      %p596 = pnand %p594, %p595
      %p597 = pneg %p596
      // Predicated region
      $region9: #{ptransformer_decoder.1} parent=5 // pred_check
        _
      $region10: #{ptransformer_decoder.1} parent=5 // pred_check_branch
        %599 = sbr.rel (%p596) target = $region12
      $region11: #{ptransformer_decoder.1} parent=5 // pred_region
        %s600 = ssub.s32 %s38, 1
        // Predicated region
        $region13: #{ptransformer_decoder.1} parent=11 // pred_check
          %p601 = pneg %p539
        $region14: #{ptransformer_decoder.1} parent=11 // pred_check_branch
          %603 = sbr.rel (%p601) target = $region16
        $region15: #{ptransformer_decoder.1} parent=11 // pred_region
          _
        $region16: #{ptransformer_decoder.1} parent=11 // pred_fallthru
          _
        // Predicated region
        $region17: #{ptransformer_decoder.1} parent=11 // pred_check
          %p604 = pneg %p560
        $region18: #{ptransformer_decoder.1} parent=11 // pred_check_branch
          %606 = sbr.rel (%p604) target = $region20
        $region19: #{ptransformer_decoder.1} parent=11 // pred_region
          _
        $region20: #{ptransformer_decoder.1} parent=11 // pred_fallthru
          _
      $region12: #{ptransformer_decoder.1} parent=5 // pred_fallthru
        _
      %p607 = scmp.lt.s32.totalorder %s38, 6
      // Predicated region
      $region21: #{ptransformer_decoder.1} parent=5 // pred_check
        %p608 = pneg %p607
      $region22: #{ptransformer_decoder.1} parent=5 // pred_check_branch
        %610 = sbr.rel (%p608) target = $region24
      $region23: #{ptransformer_decoder.1} parent=5 // pred_region
        // Predicated region
        $region25: #{ptransformer_decoder.1} parent=23 // pred_check
          %p611 = pneg %p70
        $region26: #{ptransformer_decoder.1} parent=23 // pred_check_branch
          %613 = sbr.rel (%p611) target = $region28
        $region27: #{ptransformer_decoder.1} parent=23 // pred_region
          %p614 = scmp.lt.s32.totalorder %s45, 1
          %s615 = scalar_select %p614, %s45, 1
          %s616 = smul.addr %s615, 8
          %s617 = scalar_lea.vmem %s0, %s616
        $region28: #{ptransformer_decoder.1} parent=23 // pred_fallthru
          _
        // Predicated region
        $region29: #{ptransformer_decoder.1} parent=23 // pred_check
          %p618 = pneg %p96
        $region30: #{ptransformer_decoder.1} parent=23 // pred_check_branch
          %620 = sbr.rel (%p618) target = $region32
        $region31: #{ptransformer_decoder.1} parent=23 // pred_region
          %p621 = scmp.lt.s32.totalorder %s45, 1
          %s622 = scalar_select %p621, %s45, 1
          %s623 = smul.addr %s622, 2
          %s624 = smul.addr %s623, 8
          %s625 = scalar_lea.vmem %s1, %s624
        $region32: #{ptransformer_decoder.1} parent=23 // pred_fallthru
          _
        // Predicated region
        $region33: #{ptransformer_decoder.1} parent=23 // pred_check
          %p626 = pneg %p122
        $region34: #{ptransformer_decoder.1} parent=23 // pred_check_branch
          %628 = sbr.rel (%p626) target = $region36
        $region35: #{ptransformer_decoder.1} parent=23 // pred_region
          %s629 = sand.u32 %s112, 1
          %s630 = scalar_lea.sflag [#allocation4], %s629
          %s631 = sand.u32 %s112, 1
          %s632 = smul.addr %s631, 384
          %s633 = scalar_lea.vmem [#allocation3], %s632
          %635 = vsyncadd %s630, 0
          %s636 = smul.addr %s46, 48
          %s637 = smul.addr %s636, 8
          %s638 = scalar_lea.hbm %s2, %s637
          %s639 = sshll.u32 %s638, 4
          %s640 = int_to_ptr.hbm [resolvable:$true] %s639
          %s641 = sshll.u32 %s633, 4
          %s642 = int_to_ptr.vmem [resolvable:$true] %s641
          %647 = dma.hbm_to_vmem [thread:$0]  %s640, 6144, %s642, %s630, 384, 384, 24
        $region36: #{ptransformer_decoder.1} parent=23 // pred_fallthru
          _
        // Predicated region
        $region37: #{ptransformer_decoder.1} parent=23 // pred_check
          %p648 = pneg %p148
        $region38: #{ptransformer_decoder.1} parent=23 // pred_check_branch
          %650 = sbr.rel (%p648) target = $region40
        $region39: #{ptransformer_decoder.1} parent=23 // pred_region
          %p651 = scmp.lt.s32.totalorder %s46, 2
          %s652 = scalar_select %p651, %s46, 2
          %s653 = smul.addr %s652, 3
          %s654 = scalar_lea.vmem %s3, %s653
        $region40: #{ptransformer_decoder.1} parent=23 // pred_fallthru
          _
        // Predicated region
        $region41: #{ptransformer_decoder.1} parent=23 // pred_check
          %p655 = pneg %p174
        $region42: #{ptransformer_decoder.1} parent=23 // pred_check_branch
          %657 = sbr.rel (%p655) target = $region44
        $region43: #{ptransformer_decoder.1} parent=23 // pred_region
          %s658 = sand.u32 %s38, 1
          %s659 = scalar_lea.sflag [#allocation6], %s658
          %s660 = sand.u32 %s164, 1
          %s661 = smul.addr %s660, 128
          %s662 = scalar_lea.vmem [#allocation5], %s661
          %664 = vsyncadd %s659, 0
          %s665 = smul.addr %s46, 16
          %s666 = smul.addr %s665, 8
          %s667 = scalar_lea.hbm %s4, %s666
          %s668 = sshll.u32 %s667, 4
          %s669 = int_to_ptr.hbm [resolvable:$true] %s668
          %s670 = sshll.u32 %s662, 4
          %s671 = int_to_ptr.vmem [resolvable:$true] %s670
          %676 = dma.hbm_to_vmem [thread:$0]  %s669, 2048, %s671, %s659, 128, 128, 8
        $region44: #{ptransformer_decoder.1} parent=23 // pred_fallthru
          _
        // Predicated region
        $region45: #{ptransformer_decoder.1} parent=23 // pred_check
          %p677 = pneg %p200
        $region46: #{ptransformer_decoder.1} parent=23 // pred_check_branch
          %679 = sbr.rel (%p677) target = $region48
        $region47: #{ptransformer_decoder.1} parent=23 // pred_region
          %p680 = scmp.lt.s32.totalorder %s46, 2
          %s681 = scalar_select %p680, %s46, 2
          %s682 = scalar_lea.vmem %s5, %s681
        $region48: #{ptransformer_decoder.1} parent=23 // pred_fallthru
          _
        // Predicated region
        $region49: #{ptransformer_decoder.1} parent=23 // pred_check
          %p683 = pneg %p226
        $region50: #{ptransformer_decoder.1} parent=23 // pred_check_branch
          %685 = sbr.rel (%p683) target = $region52
        $region51: #{ptransformer_decoder.1} parent=23 // pred_region
          %s686 = sand.u32 %s38, 1
          %s687 = scalar_lea.sflag [#allocation6], %s686
          %s688 = sand.u32 %s216, 1
          %s689 = smul.addr %s688, 128
          %s690 = scalar_lea.vmem [#allocation7], %s689
          %692 = vsyncadd %s687, 0
          %s693 = smul.addr %s46, 16
          %s694 = smul.addr %s693, 8
          %s695 = scalar_lea.hbm %s6, %s694
          %s696 = sshll.u32 %s695, 4
          %s697 = int_to_ptr.hbm [resolvable:$true] %s696
          %s698 = sshll.u32 %s690, 4
          %s699 = int_to_ptr.vmem [resolvable:$true] %s698
          %704 = dma.hbm_to_vmem [thread:$0]  %s697, 2048, %s699, %s687, 128, 128, 8
        $region52: #{ptransformer_decoder.1} parent=23 // pred_fallthru
          _
        // Predicated region
        $region53: #{ptransformer_decoder.1} parent=23 // pred_check
          %p705 = pneg %p252
        $region54: #{ptransformer_decoder.1} parent=23 // pred_check_branch
          %707 = sbr.rel (%p705) target = $region56
        $region55: #{ptransformer_decoder.1} parent=23 // pred_region
          %p708 = scmp.lt.s32.totalorder %s46, 2
          %s709 = scalar_select %p708, %s46, 2
          %s710 = scalar_lea.vmem %s7, %s709
        $region56: #{ptransformer_decoder.1} parent=23 // pred_fallthru
          _
        // Predicated region
        $region57: #{ptransformer_decoder.1} parent=23 // pred_check
          %p711 = pneg %p278
        $region58: #{ptransformer_decoder.1} parent=23 // pred_check_branch
          %713 = sbr.rel (%p711) target = $region60
        $region59: #{ptransformer_decoder.1} parent=23 // pred_region
          %s714 = sand.u32 %s38, 1
          %s715 = scalar_lea.sflag [#allocation9], %s714
          %s716 = sand.u32 %s268, 1
          %s717 = smul.addr %s716, 256
          %s718 = scalar_lea.vmem [#allocation8], %s717
          %720 = vsyncadd %s715, 0
          %s721 = smul.addr %s46, 32
          %s722 = smul.addr %s721, 8
          %s723 = scalar_lea.hbm %s8, %s722
          %s724 = sshll.u32 %s723, 4
          %s725 = int_to_ptr.hbm [resolvable:$true] %s724
          %s726 = sshll.u32 %s718, 4
          %s727 = int_to_ptr.vmem [resolvable:$true] %s726
          %732 = dma.hbm_to_vmem [thread:$0]  %s725, 4096, %s727, %s715, 256, 256, 16
        $region60: #{ptransformer_decoder.1} parent=23 // pred_fallthru
          _
        // Predicated region
        $region61: #{ptransformer_decoder.1} parent=23 // pred_check
          %p733 = pneg %p304
        $region62: #{ptransformer_decoder.1} parent=23 // pred_check_branch
          %735 = sbr.rel (%p733) target = $region64
        $region63: #{ptransformer_decoder.1} parent=23 // pred_region
          %p736 = scmp.lt.s32.totalorder %s46, 2
          %s737 = scalar_select %p736, %s46, 2
          %s738 = smul.addr %s737, 2
          %s739 = scalar_lea.vmem %s9, %s738
        $region64: #{ptransformer_decoder.1} parent=23 // pred_fallthru
          _
        // Predicated region
        $region65: #{ptransformer_decoder.1} parent=23 // pred_check
          %p740 = pneg %p330
        $region66: #{ptransformer_decoder.1} parent=23 // pred_check_branch
          %742 = sbr.rel (%p740) target = $region68
        $region67: #{ptransformer_decoder.1} parent=23 // pred_region
          %s743 = sand.u32 %s38, 1
          %s744 = scalar_lea.sflag [#allocation9], %s743
          %s745 = sand.u32 %s320, 1
          %s746 = smul.addr %s745, 128
          %s747 = scalar_lea.vmem [#allocation10], %s746
          %749 = vsyncadd %s744, 0
          %s750 = smul.addr %s46, 16
          %s751 = smul.addr %s750, 8
          %s752 = scalar_lea.hbm %s10, %s751
          %s753 = sshll.u32 %s752, 4
          %s754 = int_to_ptr.hbm [resolvable:$true] %s753
          %s755 = sshll.u32 %s747, 4
          %s756 = int_to_ptr.vmem [resolvable:$true] %s755
          %761 = dma.hbm_to_vmem [thread:$0]  %s754, 2048, %s756, %s744, 128, 128, 8
        $region68: #{ptransformer_decoder.1} parent=23 // pred_fallthru
          _
        // Predicated region
        $region69: #{ptransformer_decoder.1} parent=23 // pred_check
          %p762 = pneg %p356
        $region70: #{ptransformer_decoder.1} parent=23 // pred_check_branch
          %764 = sbr.rel (%p762) target = $region72
        $region71: #{ptransformer_decoder.1} parent=23 // pred_region
          %p765 = scmp.lt.s32.totalorder %s46, 2
          %s766 = scalar_select %p765, %s46, 2
          %s767 = scalar_lea.vmem %s11, %s766
        $region72: #{ptransformer_decoder.1} parent=23 // pred_fallthru
          _
        // Predicated region
        $region73: #{ptransformer_decoder.1} parent=23 // pred_check
          %p768 = pneg %p382
        $region74: #{ptransformer_decoder.1} parent=23 // pred_check_branch
          %770 = sbr.rel (%p768) target = $region76
        $region75: #{ptransformer_decoder.1} parent=23 // pred_region
          %p771 = scmp.lt.s32.totalorder %s46, 2
          %s772 = scalar_select %p771, %s46, 2
          %s773 = smul.addr %s772, 4
          %s774 = scalar_lea.vmem %s12, %s773
        $region76: #{ptransformer_decoder.1} parent=23 // pred_fallthru
          _
        // Predicated region
        $region77: #{ptransformer_decoder.1} parent=23 // pred_check
          %p775 = pneg %p408
        $region78: #{ptransformer_decoder.1} parent=23 // pred_check_branch
          %777 = sbr.rel (%p775) target = $region80
        $region79: #{ptransformer_decoder.1} parent=23 // pred_region
          %p778 = scmp.lt.s32.totalorder %s46, 2
          %s779 = scalar_select %p778, %s46, 2
          %s780 = smul.addr %s779, 4
          %s781 = scalar_lea.vmem %s13, %s780
        $region80: #{ptransformer_decoder.1} parent=23 // pred_fallthru
          _
        // Predicated region
        $region81: #{ptransformer_decoder.1} parent=23 // pred_check
          %p782 = pneg %p434
        $region82: #{ptransformer_decoder.1} parent=23 // pred_check_branch
          %784 = sbr.rel (%p782) target = $region84
        $region83: #{ptransformer_decoder.1} parent=23 // pred_region
          %s785 = sand.u32 %s38, 1
          %s786 = scalar_lea.sflag [#allocation12], %s785
          %s787 = sand.u32 %s424, 1
          %s788 = smul.addr %s787, 128
          %s789 = scalar_lea.vmem [#allocation11], %s788
          %791 = vsyncadd %s786, 0
          %s792 = smul.addr %s46, 16
          %s793 = smul.addr %s792, 8
          %s794 = scalar_lea.hbm %s14, %s793
          %s795 = sshll.u32 %s794, 4
          %s796 = int_to_ptr.hbm [resolvable:$true] %s795
          %s797 = sshll.u32 %s789, 4
          %s798 = int_to_ptr.vmem [resolvable:$true] %s797
          %803 = dma.hbm_to_vmem [thread:$0]  %s796, 2048, %s798, %s786, 128, 128, 8
        $region84: #{ptransformer_decoder.1} parent=23 // pred_fallthru
          _
        // Predicated region
        $region85: #{ptransformer_decoder.1} parent=23 // pred_check
          %p804 = pneg %p460
        $region86: #{ptransformer_decoder.1} parent=23 // pred_check_branch
          %806 = sbr.rel (%p804) target = $region88
        $region87: #{ptransformer_decoder.1} parent=23 // pred_region
          %p807 = scmp.lt.s32.totalorder %s46, 2
          %s808 = scalar_select %p807, %s46, 2
          %s809 = scalar_lea.vmem %s15, %s808
        $region88: #{ptransformer_decoder.1} parent=23 // pred_fallthru
          _
        // Predicated region
        $region89: #{ptransformer_decoder.1} parent=23 // pred_check
          %p810 = pneg %p486
        $region90: #{ptransformer_decoder.1} parent=23 // pred_check_branch
          %812 = sbr.rel (%p810) target = $region92
        $region91: #{ptransformer_decoder.1} parent=23 // pred_region
          %s813 = sand.u32 %s38, 1
          %s814 = scalar_lea.sflag [#allocation12], %s813
          %s815 = sand.u32 %s476, 1
          %s816 = smul.addr %s815, 128
          %s817 = scalar_lea.vmem [#allocation13], %s816
          %819 = vsyncadd %s814, 0
          %s820 = smul.addr %s46, 16
          %s821 = smul.addr %s820, 8
          %s822 = scalar_lea.hbm %s16, %s821
          %s823 = sshll.u32 %s822, 4
          %s824 = int_to_ptr.hbm [resolvable:$true] %s823
          %s825 = sshll.u32 %s817, 4
          %s826 = int_to_ptr.vmem [resolvable:$true] %s825
          %831 = dma.hbm_to_vmem [thread:$0]  %s824, 2048, %s826, %s814, 128, 128, 8
        $region92: #{ptransformer_decoder.1} parent=23 // pred_fallthru
          _
        // Predicated region
        $region93: #{ptransformer_decoder.1} parent=23 // pred_check
          %p832 = pneg %p512
        $region94: #{ptransformer_decoder.1} parent=23 // pred_check_branch
          %834 = sbr.rel (%p832) target = $region96
        $region95: #{ptransformer_decoder.1} parent=23 // pred_region
          %p835 = scmp.lt.s32.totalorder %s46, 2
          %s836 = scalar_select %p835, %s46, 2
          %s837 = scalar_lea.vmem %s17, %s836
        $region96: #{ptransformer_decoder.1} parent=23 // pred_fallthru
          _
      $region24: #{ptransformer_decoder.1} parent=5 // pred_fallthru
        _
      %p838 = scmp.le.s32.totalorder 1, %s38
      %p839 = scmp.lt.s32.totalorder %s38, 7
      %p840 = pnand %p838, %p839
      %p841 = pneg %p840
      // Predicated region
      $region97: #{ptransformer_decoder.1} parent=5 // pred_check
        _
      $region98: #{ptransformer_decoder.1} parent=5 // pred_check_branch
        %843 = sbr.rel (%p840) target = $region100
      $region99: #{ptransformer_decoder.1} parent=5 // pred_region
        %s844 = ssub.s32 %s38, 1
        %s845 = sand.u32 %s115, 1
        %s846 = scalar_lea.sflag [#allocation4], %s845
        %s847 = sand.u32 %s115, 1
        %s848 = smul.addr %s847, 384
        %s849 = scalar_lea.vmem [#allocation3], %s848
        // Predicated region
        $region101: #{ptransformer_decoder.1} parent=99 // pred_check
          %p850 = pneg %p128
        $region102: #{ptransformer_decoder.1} parent=99 // pred_check_branch
          %852 = sbr.rel (%p850) target = $region104
        $region103: #{ptransformer_decoder.1} parent=99 // pred_region
          %854 = dma.done %s846, 6144
        $region104: #{ptransformer_decoder.1} parent=99 // pred_fallthru
          _
        %s855 = sand.u32 %s43, 1
        %s856 = scalar_lea.sflag [#allocation6], %s855
        %s857 = sand.u32 %s167, 1
        %s858 = smul.addr %s857, 128
        %s859 = scalar_lea.vmem [#allocation5], %s858
        // Predicated region
        $region105: #{ptransformer_decoder.1} parent=99 // pred_check
          %p860 = pneg %p180
        $region106: #{ptransformer_decoder.1} parent=99 // pred_check_branch
          %862 = sbr.rel (%p860) target = $region108
        $region107: #{ptransformer_decoder.1} parent=99 // pred_region
          %864 = dma.done %s856, 2048
        $region108: #{ptransformer_decoder.1} parent=99 // pred_fallthru
          _
        %s865 = sand.u32 %s43, 1
        %s866 = scalar_lea.sflag [#allocation6], %s865
        %s867 = sand.u32 %s219, 1
        %s868 = smul.addr %s867, 128
        %s869 = scalar_lea.vmem [#allocation7], %s868
        // Predicated region
        $region109: #{ptransformer_decoder.1} parent=99 // pred_check
          %p870 = pneg %p232
        $region110: #{ptransformer_decoder.1} parent=99 // pred_check_branch
          %872 = sbr.rel (%p870) target = $region112
        $region111: #{ptransformer_decoder.1} parent=99 // pred_region
          %874 = dma.done %s866, 2048
        $region112: #{ptransformer_decoder.1} parent=99 // pred_fallthru
          _
        %s875 = sand.u32 %s43, 1
        %s876 = scalar_lea.sflag [#allocation9], %s875
        %s877 = sand.u32 %s271, 1
        %s878 = smul.addr %s877, 256
        %s879 = scalar_lea.vmem [#allocation8], %s878
        // Predicated region
        $region113: #{ptransformer_decoder.1} parent=99 // pred_check
          %p880 = pneg %p284
        $region114: #{ptransformer_decoder.1} parent=99 // pred_check_branch
          %882 = sbr.rel (%p880) target = $region116
        $region115: #{ptransformer_decoder.1} parent=99 // pred_region
          %884 = dma.done %s876, 4096
        $region116: #{ptransformer_decoder.1} parent=99 // pred_fallthru
          _
        %s885 = sand.u32 %s43, 1
        %s886 = scalar_lea.sflag [#allocation9], %s885
        %s887 = sand.u32 %s323, 1
        %s888 = smul.addr %s887, 128
        %s889 = scalar_lea.vmem [#allocation10], %s888
        // Predicated region
        $region117: #{ptransformer_decoder.1} parent=99 // pred_check
          %p890 = pneg %p336
        $region118: #{ptransformer_decoder.1} parent=99 // pred_check_branch
          %892 = sbr.rel (%p890) target = $region120
        $region119: #{ptransformer_decoder.1} parent=99 // pred_region
          %894 = dma.done %s886, 2048
        $region120: #{ptransformer_decoder.1} parent=99 // pred_fallthru
          _
        %s895 = sand.u32 %s43, 1
        %s896 = scalar_lea.sflag [#allocation12], %s895
        %s897 = sand.u32 %s427, 1
        %s898 = smul.addr %s897, 128
        %s899 = scalar_lea.vmem [#allocation11], %s898
        // Predicated region
        $region121: #{ptransformer_decoder.1} parent=99 // pred_check
          %p900 = pneg %p440
        $region122: #{ptransformer_decoder.1} parent=99 // pred_check_branch
          %902 = sbr.rel (%p900) target = $region124
        $region123: #{ptransformer_decoder.1} parent=99 // pred_region
          %904 = dma.done %s896, 2048
        $region124: #{ptransformer_decoder.1} parent=99 // pred_fallthru
          _
        %s905 = sand.u32 %s43, 1
        %s906 = scalar_lea.sflag [#allocation12], %s905
        %s907 = sand.u32 %s479, 1
        %s908 = smul.addr %s907, 128
        %s909 = scalar_lea.vmem [#allocation13], %s908
        // Predicated region
        $region125: #{ptransformer_decoder.1} parent=99 // pred_check
          %p910 = pneg %p492
        $region126: #{ptransformer_decoder.1} parent=99 // pred_check_branch
          %912 = sbr.rel (%p910) target = $region128
        $region127: #{ptransformer_decoder.1} parent=99 // pred_region
          %914 = dma.done %s906, 2048
        $region128: #{ptransformer_decoder.1} parent=99 // pred_fallthru
          _
        %p915 = scmp.lt.s32.totalorder %s47, 1
        %s916 = scalar_select %p915, %s47, 1
        %s917 = smul.addr %s916, 8
        %s918 = scalar_lea.vmem %s0, %s917
        %p919 = pneg %p76
        %p920 = pneg %p73
        %p921 = scmp.lt.s32.totalorder %s47, 1
        %s922 = scalar_select %p921, %s47, 1
        %s923 = smul.addr %s922, 2
        %s924 = smul.addr %s923, 8
        %s925 = scalar_lea.vmem %s1, %s924
        %p926 = pneg %p102
        %p927 = pneg %p99
        %s928 = sand.u32 %s115, 1
        %s929 = scalar_lea.sflag [#allocation4], %s928
        %s930 = sand.u32 %s115, 1
        %s931 = smul.addr %s930, 384
        %s932 = scalar_lea.vmem [#allocation3], %s931
        %p933 = pneg %p128
        %p934 = pneg %p125
        %p935 = scmp.lt.s32.totalorder %s48, 2
        %s936 = scalar_select %p935, %s48, 2
        %s937 = smul.addr %s936, 3
        %s938 = scalar_lea.vmem %s3, %s937
        %p939 = pneg %p154
        %p940 = pneg %p151
        %s941 = sand.u32 %s43, 1
        %s942 = scalar_lea.sflag [#allocation6], %s941
        %s943 = sand.u32 %s167, 1
        %s944 = smul.addr %s943, 128
        %s945 = scalar_lea.vmem [#allocation5], %s944
        %p946 = pneg %p180
        %p947 = pneg %p177
        %p948 = scmp.lt.s32.totalorder %s48, 2
        %s949 = scalar_select %p948, %s48, 2
        %s950 = scalar_lea.vmem %s5, %s949
        %p951 = pneg %p206
        %p952 = pneg %p203
        %s953 = sand.u32 %s43, 1
        %s954 = scalar_lea.sflag [#allocation6], %s953
        %s955 = sand.u32 %s219, 1
        %s956 = smul.addr %s955, 128
        %s957 = scalar_lea.vmem [#allocation7], %s956
        %p958 = pneg %p232
        %p959 = pneg %p229
        %p960 = scmp.lt.s32.totalorder %s48, 2
        %s961 = scalar_select %p960, %s48, 2
        %s962 = scalar_lea.vmem %s7, %s961
        %p963 = pneg %p258
        %p964 = pneg %p255
        %s965 = sand.u32 %s43, 1
        %s966 = scalar_lea.sflag [#allocation9], %s965
        %s967 = sand.u32 %s271, 1
        %s968 = smul.addr %s967, 256
        %s969 = scalar_lea.vmem [#allocation8], %s968
        %p970 = pneg %p284
        %p971 = pneg %p281
        %p972 = scmp.lt.s32.totalorder %s48, 2
        %s973 = scalar_select %p972, %s48, 2
        %s974 = smul.addr %s973, 2
        %s975 = scalar_lea.vmem %s9, %s974
        %p976 = pneg %p310
        %p977 = pneg %p307
        %s978 = sand.u32 %s43, 1
        %s979 = scalar_lea.sflag [#allocation9], %s978
        %s980 = sand.u32 %s323, 1
        %s981 = smul.addr %s980, 128
        %s982 = scalar_lea.vmem [#allocation10], %s981
        %p983 = pneg %p336
        %p984 = pneg %p333
        %p985 = scmp.lt.s32.totalorder %s48, 2
        %s986 = scalar_select %p985, %s48, 2
        %s987 = scalar_lea.vmem %s11, %s986
        %p988 = pneg %p362
        %p989 = pneg %p359
        %p990 = scmp.lt.s32.totalorder %s48, 2
        %s991 = scalar_select %p990, %s48, 2
        %s992 = smul.addr %s991, 4
        %s993 = scalar_lea.vmem %s12, %s992
        %p994 = pneg %p388
        %p995 = pneg %p385
        %p996 = scmp.lt.s32.totalorder %s48, 2
        %s997 = scalar_select %p996, %s48, 2
        %s998 = smul.addr %s997, 4
        %s999 = scalar_lea.vmem %s13, %s998
        %p1000 = pneg %p414
        %p1001 = pneg %p411
        %s1002 = sand.u32 %s43, 1
        %s1003 = scalar_lea.sflag [#allocation12], %s1002
        %s1004 = sand.u32 %s427, 1
        %s1005 = smul.addr %s1004, 128
        %s1006 = scalar_lea.vmem [#allocation11], %s1005
        %p1007 = pneg %p440
        %p1008 = pneg %p437
        %p1009 = scmp.lt.s32.totalorder %s48, 2
        %s1010 = scalar_select %p1009, %s48, 2
        %s1011 = scalar_lea.vmem %s15, %s1010
        %p1012 = pneg %p466
        %p1013 = pneg %p463
        %s1014 = sand.u32 %s43, 1
        %s1015 = scalar_lea.sflag [#allocation12], %s1014
        %s1016 = sand.u32 %s479, 1
        %s1017 = smul.addr %s1016, 128
        %s1018 = scalar_lea.vmem [#allocation13], %s1017
        %p1019 = pneg %p492
        %p1020 = pneg %p489
        %p1021 = scmp.lt.s32.totalorder %s48, 2
        %s1022 = scalar_select %p1021, %s48, 2
        %s1023 = scalar_lea.vmem %s17, %s1022
        %p1024 = pneg %p518
        %p1025 = pneg %p515
        %p1026 = pneg %p539
        %p1027 = pneg %p536
        %p1028 = pneg %p560
        %p1029 = pneg %p557
        %p1030 = pneg %p586
        %p1031 = pneg %p583
        %p1032 = scmp.lt.s32.totalorder %s47, 1
        %s1033 = scalar_select %p1032, %s47, 1
        %s1034 = smul.addr %s1033, 8
        %s1035 = scalar_lea.vmem %s20, %s1034
        %p1036 = scmp.lt.s32.totalorder %s47, 1
        %s1037 = scalar_select %p1036, %s47, 1
        %s1038 = smul.addr %s1037, 8
        %s1039 = scalar_lea.vmem %s0, %s1038
        %p1040 = scmp.lt.s32.totalorder %s47, 1
        %s1041 = scalar_select %p1040, %s47, 1
        %s1042 = smul.addr %s1041, 2
        %s1043 = smul.addr %s1042, 8
        %s1044 = scalar_lea.vmem %s1, %s1043
        %p1045 = scmp.lt.s32.totalorder %s48, 2
        %s1046 = scalar_select %p1045, %s48, 2
        %s1047 = smul.addr %s1046, 3
        %s1048 = scalar_lea.vmem %s3, %s1047
        %p1049 = scmp.lt.s32.totalorder %s48, 2
        %s1050 = scalar_select %p1049, %s48, 2
        %s1051 = scalar_lea.vmem %s5, %s1050
        %p1052 = scmp.lt.s32.totalorder %s48, 2
        %s1053 = scalar_select %p1052, %s48, 2
        %s1054 = scalar_lea.vmem %s7, %s1053
        %p1055 = scmp.lt.s32.totalorder %s48, 2
        %s1056 = scalar_select %p1055, %s48, 2
        %s1057 = smul.addr %s1056, 2
        %s1058 = scalar_lea.vmem %s9, %s1057
        %p1059 = scmp.lt.s32.totalorder %s48, 2
        %s1060 = scalar_select %p1059, %s48, 2
        %s1061 = scalar_lea.vmem %s11, %s1060
        %p1062 = scmp.lt.s32.totalorder %s48, 2
        %s1063 = scalar_select %p1062, %s48, 2
        %s1064 = smul.addr %s1063, 4
        %s1065 = scalar_lea.vmem %s12, %s1064
        %p1066 = scmp.lt.s32.totalorder %s48, 2
        %s1067 = scalar_select %p1066, %s48, 2
        %s1068 = smul.addr %s1067, 4
        %s1069 = scalar_lea.vmem %s13, %s1068
        %p1070 = scmp.lt.s32.totalorder %s48, 2
        %s1071 = scalar_select %p1070, %s48, 2
        %s1072 = scalar_lea.vmem %s15, %s1071
        %p1073 = scmp.lt.s32.totalorder %s48, 2
        %s1074 = scalar_select %p1073, %s48, 2
        %s1075 = scalar_lea.vmem %s17, %s1074
        %p1076 = scmp.lt.s32.totalorder %s47, 1
        %s1077 = scalar_select %p1076, %s47, 1
        %s1078 = smul.addr %s1077, 8
        %s1079 = scalar_lea.vmem %s20, %s1078
        %p1080 = scmp.eq.s32.totalorder %s48, 0
        // Predicated region
        $region129: #{ptransformer_decoder.1} parent=99 // pred_check
          %p1081 = pneg %p1080
        $region130: #{ptransformer_decoder.1} parent=99 // pred_check_branch
          %1083 = sbr.rel (%p1081) target = $region132
        $region131: #{ptransformer_decoder.1} parent=99 // pred_region
          %v1084 = vld [vmem:[%s1039] sm:$0xff]
          %1085 = vst [vmem:[#allocation2] sm:$0xff] %v1084
        $region132: #{ptransformer_decoder.1} parent=99 // pred_fallthru
          _
        %p1086 = scmp.eq.s32.totalorder %s48, 2
        // Predicated region
        $region133: #{ptransformer_decoder.1} parent=99 // pred_check
          %p1087 = pneg %p1086
        $region134: #{ptransformer_decoder.1} parent=99 // pred_check_branch
          %1089 = sbr.rel (%p1087) target = $region136
        $region135: #{ptransformer_decoder.1} parent=99 // pred_region
          %v1090 = vld [vmem:[#allocation2] sm:$0xff]
          %v1091 = vld [vmem:[%s18] sm:$0x1]
          %v1092 = vld [vmem:[%s19] sm:$0x1]
          %1093 = vadd.xlane.f32.xlu0 %v1090
          %v1094 = vpop.xlane.xlu0 %1093
          %v1095 = vmul.f32 %v1090, %v1090
          %1096 = vadd.xlane.f32.xlu0 %v1095
          %v1097 = vpop.xlane.xlu0 %1096
          %v1098 = vmul.f32 %v1094, 0.03125
          %v1099 = vmul.f32 %v1097, 0.03125
          %v1100 = vmul.f32 %v1098, %v1098
          %v1101 = vsub.f32 %v1099, %v1100
          %v1102 = vsub.f32 %v1090, %v1098
          %v1103 = vadd.f32 %v1101, 1e-05
          %v1104 = vrsqrt.pop %v1103
          %v1105 = vmul.f32 %v1104, %v1103
          %v1106 = vmul.f32 %v1105, %v1104
          %v1107 = vmul.f32 0.5, %v1106
          %v1108 = vsub.f32 1.5, %v1107
          %v1109 = vmul.f32 %v1104, %v1108
          %vm1110 = vweird.f32 %v1103
          %vm1111 = vweird.f32 %v1104
          %vm1112 = vmor %vm1110, %vm1111
          %v1113 = vsel %vm1112, %v1104, %v1109
          %v1114 = vmul.f32 %v1102, %v1113
          %v1116 = vperm.slane %v1091, 0
          %v1118 = vmul.f32 %v1114, %v1116
          %v1120 = vperm.slane %v1092, 0
          %v1122 = vadd.f32 %v1118, %v1120
          %1123 = vst [vmem:[#allocation2] sm:$0xff] %v1122
        $region136: #{ptransformer_decoder.1} parent=99 // pred_fallthru
          _
        %v1124 = vld [vmem:[#allocation2] sm:$0xff]
        %v1125 = vld [vmem:[%s1044] sm:$0xff]
        %v1126 = vld [vmem:[%s1044 + $0x8] sm:$0xff]
        %v1127 = vld [vmem:[%s1065] sm:$0x7]
        %v1128 = vld [vmem:[%s1069] sm:$0x7]
        %v1129 = vld [vmem:[%s849] sm:$0xff]
        %v1130 = vld [vmem:[%s849 + $0x8] sm:$0xff]
        %v1131 = vld [vmem:[%s849 + $0x10] sm:$0xff]
        %v1132 = vld [vmem:[%s849 + $0x18] sm:$0xff]
        %v1133 = vld [vmem:[%s849 + $0x20] sm:$0xff]
        %v1134 = vld [vmem:[%s849 + $0x28] sm:$0xff]
        %v1135 = vld [vmem:[%s849 + $0x30] sm:$0xff]
        %v1136 = vld [vmem:[%s849 + $0x38] sm:$0xff]
        %v1137 = vld [vmem:[%s849 + $0x40] sm:$0xff]
        %v1138 = vld [vmem:[%s849 + $0x48] sm:$0xff]
        %v1139 = vld [vmem:[%s849 + $0x50] sm:$0xff]
        %v1140 = vld [vmem:[%s849 + $0x58] sm:$0xff]
        %v1141 = vld [vmem:[%s849 + $0x60] sm:$0xff]
        %v1142 = vld [vmem:[%s849 + $0x68] sm:$0xff]
        %v1143 = vld [vmem:[%s849 + $0x70] sm:$0xff]
        %v1144 = vld [vmem:[%s849 + $0x78] sm:$0xff]
        %v1145 = vld [vmem:[%s849 + $0x80] sm:$0xff]
        %v1146 = vld [vmem:[%s849 + $0x88] sm:$0xff]
        %v1147 = vld [vmem:[%s849 + $0x90] sm:$0xff]
        %v1148 = vld [vmem:[%s849 + $0x98] sm:$0xff]
        %v1149 = vld [vmem:[%s849 + $0xa0] sm:$0xff]
        %v1150 = vld [vmem:[%s849 + $0xa8] sm:$0xff]
        %v1151 = vld [vmem:[%s849 + $0xb0] sm:$0xff]
        %v1152 = vld [vmem:[%s849 + $0xb8] sm:$0xff]
        %v1153 = vld [vmem:[%s849 + $0xc0] sm:$0xff]
        %v1154 = vld [vmem:[%s849 + $0xc8] sm:$0xff]
        %v1155 = vld [vmem:[%s849 + $0xd0] sm:$0xff]
        %v1156 = vld [vmem:[%s849 + $0xd8] sm:$0xff]
        %v1157 = vld [vmem:[%s849 + $0xe0] sm:$0xff]
        %v1158 = vld [vmem:[%s849 + $0xe8] sm:$0xff]
        %v1159 = vld [vmem:[%s849 + $0xf0] sm:$0xff]
        %v1160 = vld [vmem:[%s849 + $0xf8] sm:$0xff]
        %v1161 = vld [vmem:[%s849 + $0x100] sm:$0xff]
        %v1162 = vld [vmem:[%s849 + $0x108] sm:$0xff]
        %v1163 = vld [vmem:[%s849 + $0x110] sm:$0xff]
        %v1164 = vld [vmem:[%s849 + $0x118] sm:$0xff]
        %v1165 = vld [vmem:[%s849 + $0x120] sm:$0xff]
        %v1166 = vld [vmem:[%s849 + $0x128] sm:$0xff]
        %v1167 = vld [vmem:[%s849 + $0x130] sm:$0xff]
        %v1168 = vld [vmem:[%s849 + $0x138] sm:$0xff]
        %v1169 = vld [vmem:[%s849 + $0x140] sm:$0xff]
        %v1170 = vld [vmem:[%s849 + $0x148] sm:$0xff]
        %v1171 = vld [vmem:[%s849 + $0x150] sm:$0xff]
        %v1172 = vld [vmem:[%s849 + $0x158] sm:$0xff]
        %v1173 = vld [vmem:[%s849 + $0x160] sm:$0xff]
        %v1174 = vld [vmem:[%s849 + $0x168] sm:$0xff]
        %v1175 = vld [vmem:[%s849 + $0x170] sm:$0xff]
        %v1176 = vld [vmem:[%s849 + $0x178] sm:$0xff]
        %v1177 = vld [vmem:[%s1048] sm:$0x7]
        %v1179 = vperm.slane %v1177, 0
        %v1180 = vperm.slane %v1177, 1
        %v1181 = vperm.slane %v1177, 2
        %1185 = vmatpush.msra.mxu0 %v1174
        %1186 = vmatpush.msra.mxu0 %v1171
        %1187 = vmatpush.msra.mxu0 %v1168
        %1188 = vmatpush.msra.mxu0 %v1165
        %1189 = vmatpush.msra.mxu0 %v1162
        %1190 = vmatpush.msra.mxu0 %v1159
        %1191 = vmatpush.msra.mxu0 %v1156
        %1192 = vmatpush.msra.mxu0 %v1153
        %1193 = vmatpush.msra.mxu0 %v1150
        %1194 = vmatpush.msra.mxu0 %v1147
        %1195 = vmatpush.msra.mxu0 %v1144
        %1196 = vmatpush.msra.mxu0 %v1141
        %1197 = vmatpush.msra.mxu0 %v1138
        %1198 = vmatpush.msra.mxu0 %v1135
        %1199 = vmatpush.msra.mxu0 %v1132
        %1200 = vmatpush.msra.mxu0 %v1129
        %1201 = vmatmul.f32.gmra.mxu0 %v1124
        %v1202 = vpop.f32.mrf.mxu0
        %v1203 = vadd.f32 %v1179, %v1202
        %1204 = vdwg.mxu0
        %1205 = vmatpush.msra.mxu0 %v1175
        %1206 = vmatpush.msra.mxu0 %v1172
        %1207 = vmatpush.msra.mxu0 %v1169
        %1208 = vmatpush.msra.mxu0 %v1166
        %1209 = vmatpush.msra.mxu0 %v1163
        %1210 = vmatpush.msra.mxu0 %v1160
        %1211 = vmatpush.msra.mxu0 %v1157
        %1212 = vmatpush.msra.mxu0 %v1154
        %1213 = vmatpush.msra.mxu0 %v1151
        %1214 = vmatpush.msra.mxu0 %v1148
        %1215 = vmatpush.msra.mxu0 %v1145
        %1216 = vmatpush.msra.mxu0 %v1142
        %1217 = vmatpush.msra.mxu0 %v1139
        %1218 = vmatpush.msra.mxu0 %v1136
        %1219 = vmatpush.msra.mxu0 %v1133
        %1220 = vmatpush.msra.mxu0 %v1130
        %1221 = vmatmul.f32.gmra.mxu0 %v1124
        %v1222 = vpop.f32.mrf.mxu0
        %v1223 = vadd.f32 %v1180, %v1222
        %1224 = vdwg.mxu0
        %1225 = vmatpush.msra.mxu0 %v1176
        %1226 = vmatpush.msra.mxu0 %v1173
        %1227 = vmatpush.msra.mxu0 %v1170
        %1228 = vmatpush.msra.mxu0 %v1167
        %1229 = vmatpush.msra.mxu0 %v1164
        %1230 = vmatpush.msra.mxu0 %v1161
        %1231 = vmatpush.msra.mxu0 %v1158
        %1232 = vmatpush.msra.mxu0 %v1155
        %1233 = vmatpush.msra.mxu0 %v1152
        %1234 = vmatpush.msra.mxu0 %v1149
        %1235 = vmatpush.msra.mxu0 %v1146
        %1236 = vmatpush.msra.mxu0 %v1143
        %1237 = vmatpush.msra.mxu0 %v1140
        %1238 = vmatpush.msra.mxu0 %v1137
        %1239 = vmatpush.msra.mxu0 %v1134
        %1240 = vmatpush.msra.mxu0 %v1131
        %1241 = vmatmul.f32.gmra.mxu0 %v1124
        %v1242 = vpop.f32.mrf.mxu0
        %v1243 = vadd.f32 %v1181, %v1242
        %1244 = vdwg.mxu0
        %1246 = vrot.lane.b32.xlu0 %v1203, 96
        %v1247 = vpop.permute.xlu0 %1246
        %1248 = vrot.lane.b32.xlu0 %v1203, 64
        %v1249 = vpop.permute.xlu0 %1248
        %1250 = vrot.lane.b32.xlu0 %v1203, 32
        %v1251 = vpop.permute.xlu0 %1250
        %1253 = vrot.lane.b32.xlu0 %v1223, 96
        %v1254 = vpop.permute.xlu0 %1253
        %1255 = vrot.lane.b32.xlu0 %v1223, 64
        %v1256 = vpop.permute.xlu0 %1255
        %1257 = vrot.lane.b32.xlu0 %v1223, 32
        %v1258 = vpop.permute.xlu0 %1257
        %1260 = vrot.lane.b32.xlu0 %v1243, 96
        %v1261 = vpop.permute.xlu0 %1260
        %1263 = vrot.lane.b32.xlu0 %v1243, 64
        %v1264 = vpop.permute.xlu0 %1263
        %1266 = vrot.lane.b32.xlu0 %v1243, 32
        %v1267 = vpop.permute.xlu0 %1266
        %vm1269 = vcmask 261120
        %v1270 = vsel %vm1269, %v1203, 0
        %v1272 = vsel %vm1269, %v1223, 0
        %1274 = vmatpush.xpose.msra.mxu0 0.0
        %1275 = vmatpush.xpose.msra.mxu0 0.0
        %1276 = vmatpush.xpose.msra.mxu0 0.0
        %1277 = vmatpush.xpose.msra.mxu0 0.0
        %1278 = vmatpush.xpose.msra.mxu0 0.0
        %1279 = vmatpush.xpose.msra.mxu0 0.0
        %1280 = vmatpush.xpose.msra.mxu0 0.0
        %1281 = vmatpush.xpose.msra.mxu0 0.0
        %1282 = vmatpush.xpose.msra.mxu0 0.0
        %1283 = vmatpush.xpose.msra.mxu0 0.0
        %1284 = vmatpush.xpose.msra.mxu0 0.0
        %1285 = vmatpush.xpose.msra.mxu0 0.0
        %1286 = vmatpush.xpose.msra.mxu0 0.0
        %1287 = vmatpush.xpose.msra.mxu0 0.0
        %1288 = vmatpush.xpose.msra.mxu0 0.0
        %1289 = vmatpush.xpose.msra.mxu0 %v1272
        %1290 = vmatmul.f32.gmra.mxu0 %v1270
        %v1291 = vpop.f32.mrf.mxu0
        %v1292 = vadd.f32 0.0, %v1291
        %1293 = vdwg.mxu0
        %v1294 = vsel %vm1269, %v1247, 0
        %v1296 = vsel %vm1269, %v1254, 0
        %1298 = vmatpush.xpose.msra.mxu0 0.0
        %1299 = vmatpush.xpose.msra.mxu0 0.0
        %1300 = vmatpush.xpose.msra.mxu0 0.0
        %1301 = vmatpush.xpose.msra.mxu0 0.0
        %1302 = vmatpush.xpose.msra.mxu0 0.0
        %1303 = vmatpush.xpose.msra.mxu0 0.0
        %1304 = vmatpush.xpose.msra.mxu0 0.0
        %1305 = vmatpush.xpose.msra.mxu0 0.0
        %1306 = vmatpush.xpose.msra.mxu0 0.0
        %1307 = vmatpush.xpose.msra.mxu0 0.0
        %1308 = vmatpush.xpose.msra.mxu0 0.0
        %1309 = vmatpush.xpose.msra.mxu0 0.0
        %1310 = vmatpush.xpose.msra.mxu0 0.0
        %1311 = vmatpush.xpose.msra.mxu0 0.0
        %1312 = vmatpush.xpose.msra.mxu0 0.0
        %1313 = vmatpush.xpose.msra.mxu0 %v1296
        %1314 = vmatmul.f32.gmra.mxu0 %v1294
        %v1315 = vpop.f32.mrf.mxu0
        %v1316 = vadd.f32 0.0, %v1315
        %1317 = vdwg.mxu0
        %v1318 = vsel %vm1269, %v1249, 0
        %v1320 = vsel %vm1269, %v1256, 0
        %1322 = vmatpush.xpose.msra.mxu0 0.0
        %1323 = vmatpush.xpose.msra.mxu0 0.0
        %1324 = vmatpush.xpose.msra.mxu0 0.0
        %1325 = vmatpush.xpose.msra.mxu0 0.0
        %1326 = vmatpush.xpose.msra.mxu0 0.0
        %1327 = vmatpush.xpose.msra.mxu0 0.0
        %1328 = vmatpush.xpose.msra.mxu0 0.0
        %1329 = vmatpush.xpose.msra.mxu0 0.0
        %1330 = vmatpush.xpose.msra.mxu0 0.0
        %1331 = vmatpush.xpose.msra.mxu0 0.0
        %1332 = vmatpush.xpose.msra.mxu0 0.0
        %1333 = vmatpush.xpose.msra.mxu0 0.0
        %1334 = vmatpush.xpose.msra.mxu0 0.0
        %1335 = vmatpush.xpose.msra.mxu0 0.0
        %1336 = vmatpush.xpose.msra.mxu0 0.0
        %1337 = vmatpush.xpose.msra.mxu0 %v1320
        %1338 = vmatmul.f32.gmra.mxu0 %v1318
        %v1339 = vpop.f32.mrf.mxu0
        %v1340 = vadd.f32 0.0, %v1339
        %1341 = vdwg.mxu0
        %v1342 = vsel %vm1269, %v1251, 0
        %v1344 = vsel %vm1269, %v1258, 0
        %1346 = vmatpush.xpose.msra.mxu0 0.0
        %1347 = vmatpush.xpose.msra.mxu0 0.0
        %1348 = vmatpush.xpose.msra.mxu0 0.0
        %1349 = vmatpush.xpose.msra.mxu0 0.0
        %1350 = vmatpush.xpose.msra.mxu0 0.0
        %1351 = vmatpush.xpose.msra.mxu0 0.0
        %1352 = vmatpush.xpose.msra.mxu0 0.0
        %1353 = vmatpush.xpose.msra.mxu0 0.0
        %1354 = vmatpush.xpose.msra.mxu0 0.0
        %1355 = vmatpush.xpose.msra.mxu0 0.0
        %1356 = vmatpush.xpose.msra.mxu0 0.0
        %1357 = vmatpush.xpose.msra.mxu0 0.0
        %1358 = vmatpush.xpose.msra.mxu0 0.0
        %1359 = vmatpush.xpose.msra.mxu0 0.0
        %1360 = vmatpush.xpose.msra.mxu0 0.0
        %1361 = vmatpush.xpose.msra.mxu0 %v1344
        %1362 = vmatmul.f32.gmra.mxu0 %v1342
        %v1363 = vpop.f32.mrf.mxu0
        %v1364 = vadd.f32 0.0, %v1363
        %1365 = vdwg.mxu0
        %vm1366 = vcmask 64512
        %v1367 = vsel %vm1366, %v1292, -inf
        %1368 = vmax.xlane.f32.xlu0 %v1367
        %v1369 = vpop.xlane.xlu0 %1368
        %v1370 = vsel %vm1366, %v1316, -inf
        %1371 = vmax.xlane.f32.xlu0 %v1370
        %v1372 = vpop.xlane.xlu0 %1371
        %v1373 = vsel %vm1366, %v1340, -inf
        %1374 = vmax.xlane.f32.xlu0 %v1373
        %v1375 = vpop.xlane.xlu0 %1374
        %v1376 = vsel %vm1366, %v1364, -inf
        %1377 = vmax.xlane.f32.xlu0 %v1376
        %v1378 = vpop.xlane.xlu0 %1377
        %v1379 = vsub.f32 %v1292, %v1369
        %v1380 = vsub.f32 %v1316, %v1372
        %v1381 = vsub.f32 %v1340, %v1375
        %v1382 = vsub.f32 %v1364, %v1378
        %v1383 = vmul.f32 %v1379, 1.442695
        %v1384 = vpow.pop %v1383
        %v1385 = vmul.f32 %v1380, 1.442695
        %v1386 = vpow.pop %v1385
        %v1387 = vmul.f32 %v1381, 1.442695
        %v1388 = vpow.pop %v1387
        %v1389 = vmul.f32 %v1382, 1.442695
        %v1390 = vpow.pop %v1389
        %v1391 = vsel %vm1366, %v1384, 0.0
        %1392 = vadd.xlane.f32.xlu0 %v1391
        %v1393 = vpop.xlane.xlu0 %1392
        %v1394 = vsel %vm1366, %v1386, 0.0
        %1395 = vadd.xlane.f32.xlu0 %v1394
        %v1396 = vpop.xlane.xlu0 %1395
        %v1397 = vsel %vm1366, %v1388, 0.0
        %1398 = vadd.xlane.f32.xlu0 %v1397
        %v1399 = vpop.xlane.xlu0 %1398
        %v1400 = vsel %vm1366, %v1390, 0.0
        %1401 = vadd.xlane.f32.xlu0 %v1400
        %v1402 = vpop.xlane.xlu0 %1401
        %v1403 = vrcp.pop %v1393
        %v1404 = vmul.f32 %v1393, %v1403
        %v1405 = vsub.f32 1.0, %v1404
        %v1406 = vmul.f32 %v1403, %v1405
        %v1407 = vadd.f32 %v1403, %v1406
        %vm1408 = vweird.f32 %v1393
        %vm1409 = vweird.f32 %v1403
        %vm1410 = vmor %vm1408, %vm1409
        %v1411 = vsel %vm1410, %v1403, %v1407
        %v1412 = vand.u32 2147483647, %v1393
        %vm1413 = vcmp.eq.f32.partialorder %v1412, 8.507059e+37
        %v1414 = vand.u32 %v1393, 2147483648
        %v1415 = vor.u32 1.1754944e-38, %v1414
        %v1416 = vsel %vm1413, %v1415, %v1411
        %v1417 = vmul.f32 %v1384, %v1416
        %v1418 = vrcp.pop %v1396
        %v1419 = vmul.f32 %v1396, %v1418
        %v1420 = vsub.f32 1.0, %v1419
        %v1421 = vmul.f32 %v1418, %v1420
        %v1422 = vadd.f32 %v1418, %v1421
        %vm1423 = vweird.f32 %v1396
        %vm1424 = vweird.f32 %v1418
        %vm1425 = vmor %vm1423, %vm1424
        %v1426 = vsel %vm1425, %v1418, %v1422
        %v1427 = vand.u32 2147483647, %v1396
        %vm1428 = vcmp.eq.f32.partialorder %v1427, 8.507059e+37
        %v1429 = vand.u32 %v1396, 2147483648
        %v1430 = vor.u32 1.1754944e-38, %v1429
        %v1431 = vsel %vm1428, %v1430, %v1426
        %v1432 = vmul.f32 %v1386, %v1431
        %v1433 = vrcp.pop %v1399
        %v1434 = vmul.f32 %v1399, %v1433
        %v1435 = vsub.f32 1.0, %v1434
        %v1436 = vmul.f32 %v1433, %v1435
        %v1437 = vadd.f32 %v1433, %v1436
        %vm1438 = vweird.f32 %v1399
        %vm1439 = vweird.f32 %v1433
        %vm1440 = vmor %vm1438, %vm1439
        %v1441 = vsel %vm1440, %v1433, %v1437
        %v1442 = vand.u32 2147483647, %v1399
        %vm1443 = vcmp.eq.f32.partialorder %v1442, 8.507059e+37
        %v1444 = vand.u32 %v1399, 2147483648
        %v1445 = vor.u32 1.1754944e-38, %v1444
        %v1446 = vsel %vm1443, %v1445, %v1441
        %v1447 = vmul.f32 %v1388, %v1446
        %v1448 = vrcp.pop %v1402
        %v1449 = vmul.f32 %v1402, %v1448
        %v1450 = vsub.f32 1.0, %v1449
        %v1451 = vmul.f32 %v1448, %v1450
        %v1452 = vadd.f32 %v1448, %v1451
        %vm1453 = vweird.f32 %v1402
        %vm1454 = vweird.f32 %v1448
        %vm1455 = vmor %vm1453, %vm1454
        %v1456 = vsel %vm1455, %v1448, %v1452
        %v1457 = vand.u32 2147483647, %v1402
        %vm1458 = vcmp.eq.f32.partialorder %v1457, 8.507059e+37
        %v1459 = vand.u32 %v1402, 2147483648
        %v1460 = vor.u32 1.1754944e-38, %v1459
        %v1461 = vsel %vm1458, %v1460, %v1456
        %v1462 = vmul.f32 %v1390, %v1461
        %v1464 = vsel %vm1366, %v1417, 0
        %1466 = vmatpush.msra.mxu0 0.0
        %1467 = vmatpush.msra.mxu0 0.0
        %1468 = vmatpush.msra.mxu0 0.0
        %1469 = vmatpush.msra.mxu0 0.0
        %1470 = vmatpush.msra.mxu0 0.0
        %1471 = vmatpush.msra.mxu0 0.0
        %1472 = vmatpush.msra.mxu0 0.0
        %1473 = vmatpush.msra.mxu0 0.0
        %1474 = vmatpush.msra.mxu0 0.0
        %1475 = vmatpush.msra.mxu0 0.0
        %1476 = vmatpush.msra.mxu0 0.0
        %1477 = vmatpush.msra.mxu0 0.0
        %1478 = vmatpush.msra.mxu0 0.0
        %1479 = vmatpush.msra.mxu0 0.0
        %1480 = vmatpush.msra.mxu0 0.0
        %1481 = vmatpush.msra.mxu0 %v1243
        %1482 = vmatmul.f32.gmra.mxu0 %v1464
        %v1483 = vpop.f32.mrf.mxu0
        %v1484 = vadd.f32 0.0, %v1483
        %1485 = vdwg.mxu0
        %v1487 = vsel %vm1366, %v1432, 0
        %1489 = vmatpush.msra.mxu0 0.0
        %1490 = vmatpush.msra.mxu0 0.0
        %1491 = vmatpush.msra.mxu0 0.0
        %1492 = vmatpush.msra.mxu0 0.0
        %1493 = vmatpush.msra.mxu0 0.0
        %1494 = vmatpush.msra.mxu0 0.0
        %1495 = vmatpush.msra.mxu0 0.0
        %1496 = vmatpush.msra.mxu0 0.0
        %1497 = vmatpush.msra.mxu0 0.0
        %1498 = vmatpush.msra.mxu0 0.0
        %1499 = vmatpush.msra.mxu0 0.0
        %1500 = vmatpush.msra.mxu0 0.0
        %1501 = vmatpush.msra.mxu0 0.0
        %1502 = vmatpush.msra.mxu0 0.0
        %1503 = vmatpush.msra.mxu0 0.0
        %1504 = vmatpush.msra.mxu0 %v1261
        %1505 = vmatmul.f32.gmra.mxu0 %v1487
        %v1506 = vpop.f32.mrf.mxu0
        %v1507 = vadd.f32 0.0, %v1506
        %1508 = vdwg.mxu0
        %v1510 = vsel %vm1366, %v1447, 0
        %1512 = vmatpush.msra.mxu0 0.0
        %1513 = vmatpush.msra.mxu0 0.0
        %1514 = vmatpush.msra.mxu0 0.0
        %1515 = vmatpush.msra.mxu0 0.0
        %1516 = vmatpush.msra.mxu0 0.0
        %1517 = vmatpush.msra.mxu0 0.0
        %1518 = vmatpush.msra.mxu0 0.0
        %1519 = vmatpush.msra.mxu0 0.0
        %1520 = vmatpush.msra.mxu0 0.0
        %1521 = vmatpush.msra.mxu0 0.0
        %1522 = vmatpush.msra.mxu0 0.0
        %1523 = vmatpush.msra.mxu0 0.0
        %1524 = vmatpush.msra.mxu0 0.0
        %1525 = vmatpush.msra.mxu0 0.0
        %1526 = vmatpush.msra.mxu0 0.0
        %1527 = vmatpush.msra.mxu0 %v1264
        %1528 = vmatmul.f32.gmra.mxu0 %v1510
        %v1529 = vpop.f32.mrf.mxu0
        %v1530 = vadd.f32 0.0, %v1529
        %1531 = vdwg.mxu0
        %v1533 = vsel %vm1366, %v1462, 0
        %1535 = vmatpush.msra.mxu0 0.0
        %1536 = vmatpush.msra.mxu0 0.0
        %1537 = vmatpush.msra.mxu0 0.0
        %1538 = vmatpush.msra.mxu0 0.0
        %1539 = vmatpush.msra.mxu0 0.0
        %1540 = vmatpush.msra.mxu0 0.0
        %1541 = vmatpush.msra.mxu0 0.0
        %1542 = vmatpush.msra.mxu0 0.0
        %1543 = vmatpush.msra.mxu0 0.0
        %1544 = vmatpush.msra.mxu0 0.0
        %1545 = vmatpush.msra.mxu0 0.0
        %1546 = vmatpush.msra.mxu0 0.0
        %1547 = vmatpush.msra.mxu0 0.0
        %1548 = vmatpush.msra.mxu0 0.0
        %1549 = vmatpush.msra.mxu0 0.0
        %1550 = vmatpush.msra.mxu0 %v1267
        %1551 = vmatmul.f32.gmra.mxu0 %v1533
        %v1552 = vpop.f32.mrf.mxu0
        %v1553 = vadd.f32 0.0, %v1552
        %1554 = vdwg.mxu0
        %v1555 = vld [vmem:[%s859] sm:$0xff]
        %v1556 = vld [vmem:[%s859 + $0x8] sm:$0xff]
        %v1557 = vld [vmem:[%s859 + $0x10] sm:$0xff]
        %v1558 = vld [vmem:[%s859 + $0x18] sm:$0xff]
        %v1559 = vld [vmem:[%s859 + $0x20] sm:$0xff]
        %v1560 = vld [vmem:[%s859 + $0x28] sm:$0xff]
        %v1561 = vld [vmem:[%s859 + $0x30] sm:$0xff]
        %v1562 = vld [vmem:[%s859 + $0x38] sm:$0xff]
        %v1563 = vld [vmem:[%s859 + $0x40] sm:$0xff]
        %v1564 = vld [vmem:[%s859 + $0x48] sm:$0xff]
        %v1565 = vld [vmem:[%s859 + $0x50] sm:$0xff]
        %v1566 = vld [vmem:[%s859 + $0x58] sm:$0xff]
        %v1567 = vld [vmem:[%s859 + $0x60] sm:$0xff]
        %v1568 = vld [vmem:[%s859 + $0x68] sm:$0xff]
        %v1569 = vld [vmem:[%s859 + $0x70] sm:$0xff]
        %v1570 = vld [vmem:[%s859 + $0x78] sm:$0xff]
        %v1571 = vld [vmem:[%s1051] sm:$0x1]
        %v1573 = vsel %vm1269, %v1484, 0
        %1575 = vmatpush.msra.mxu0 0.0
        %1576 = vmatpush.msra.mxu0 0.0
        %1577 = vmatpush.msra.mxu0 0.0
        %1578 = vmatpush.msra.mxu0 0.0
        %1579 = vmatpush.msra.mxu0 0.0
        %1580 = vmatpush.msra.mxu0 0.0
        %1581 = vmatpush.msra.mxu0 0.0
        %1582 = vmatpush.msra.mxu0 0.0
        %1583 = vmatpush.msra.mxu0 0.0
        %1584 = vmatpush.msra.mxu0 0.0
        %1585 = vmatpush.msra.mxu0 0.0
        %1586 = vmatpush.msra.mxu0 0.0
        %1587 = vmatpush.msra.mxu0 %v1558
        %1588 = vmatpush.msra.mxu0 %v1557
        %1589 = vmatpush.msra.mxu0 %v1556
        %1590 = vmatpush.msra.mxu0 %v1555
        %1591 = vmatmul.f32.gmra.mxu0 %v1573
        %v1592 = vpop.f32.mrf.mxu0
        %v1593 = vadd.f32 0.0, %v1592
        %1594 = vdwg.mxu0
        %v1596 = vsel %vm1269, %v1507, 0
        %1598 = vmatpush.msra.mxu0 0.0
        %1599 = vmatpush.msra.mxu0 0.0
        %1600 = vmatpush.msra.mxu0 0.0
        %1601 = vmatpush.msra.mxu0 0.0
        %1602 = vmatpush.msra.mxu0 0.0
        %1603 = vmatpush.msra.mxu0 0.0
        %1604 = vmatpush.msra.mxu0 0.0
        %1605 = vmatpush.msra.mxu0 0.0
        %1606 = vmatpush.msra.mxu0 0.0
        %1607 = vmatpush.msra.mxu0 0.0
        %1608 = vmatpush.msra.mxu0 0.0
        %1609 = vmatpush.msra.mxu0 0.0
        %1610 = vmatpush.msra.mxu0 %v1562
        %1611 = vmatpush.msra.mxu0 %v1561
        %1612 = vmatpush.msra.mxu0 %v1560
        %1613 = vmatpush.msra.mxu0 %v1559
        %1614 = vmatmul.f32.gmra.mxu0 %v1596
        %v1615 = vpop.f32.mrf.mxu0
        %v1616 = vadd.f32 0.0, %v1615
        %1617 = vdwg.mxu0
        %v1619 = vsel %vm1269, %v1530, 0
        %1621 = vmatpush.msra.mxu0 0.0
        %1622 = vmatpush.msra.mxu0 0.0
        %1623 = vmatpush.msra.mxu0 0.0
        %1624 = vmatpush.msra.mxu0 0.0
        %1625 = vmatpush.msra.mxu0 0.0
        %1626 = vmatpush.msra.mxu0 0.0
        %1627 = vmatpush.msra.mxu0 0.0
        %1628 = vmatpush.msra.mxu0 0.0
        %1629 = vmatpush.msra.mxu0 0.0
        %1630 = vmatpush.msra.mxu0 0.0
        %1631 = vmatpush.msra.mxu0 0.0
        %1632 = vmatpush.msra.mxu0 0.0
        %1633 = vmatpush.msra.mxu0 %v1566
        %1634 = vmatpush.msra.mxu0 %v1565
        %1635 = vmatpush.msra.mxu0 %v1564
        %1636 = vmatpush.msra.mxu0 %v1563
        %1637 = vmatmul.f32.gmra.mxu0 %v1619
        %v1638 = vpop.f32.mrf.mxu0
        %v1639 = vadd.f32 0.0, %v1638
        %1640 = vdwg.mxu0
        %v1642 = vsel %vm1269, %v1553, 0
        %1644 = vmatpush.msra.mxu0 0.0
        %1645 = vmatpush.msra.mxu0 0.0
        %1646 = vmatpush.msra.mxu0 0.0
        %1647 = vmatpush.msra.mxu0 0.0
        %1648 = vmatpush.msra.mxu0 0.0
        %1649 = vmatpush.msra.mxu0 0.0
        %1650 = vmatpush.msra.mxu0 0.0
        %1651 = vmatpush.msra.mxu0 0.0
        %1652 = vmatpush.msra.mxu0 0.0
        %1653 = vmatpush.msra.mxu0 0.0
        %1654 = vmatpush.msra.mxu0 0.0
        %1655 = vmatpush.msra.mxu0 0.0
        %1656 = vmatpush.msra.mxu0 %v1570
        %1657 = vmatpush.msra.mxu0 %v1569
        %1658 = vmatpush.msra.mxu0 %v1568
        %1659 = vmatpush.msra.mxu0 %v1567
        %1660 = vmatmul.f32.gmra.mxu0 %v1642
        %v1661 = vpop.f32.mrf.mxu0
        %v1662 = vadd.f32 0.0, %v1661
        %1663 = vdwg.mxu0
        %v1664 = vadd.f32 %v1593, %v1616
        %v1665 = vadd.f32 %v1664, %v1639
        %v1666 = vadd.f32 %v1665, %v1662
        %v1668 = vperm.slane %v1571, 0
        %v1670 = vadd.f32 %v1666, %v1668
        %v1671 = vadd.f32 %v1124, %v1670
        %1672 = vadd.xlane.f32.xlu0 %v1671
        %v1673 = vpop.xlane.xlu0 %1672
        %v1674 = vmul.f32 %v1671, %v1671
        %1675 = vadd.xlane.f32.xlu0 %v1674
        %v1676 = vpop.xlane.xlu0 %1675
        %v1677 = vmul.f32 %v1673, 0.03125
        %v1678 = vmul.f32 %v1676, 0.03125
        %v1679 = vmul.f32 %v1677, %v1677
        %v1680 = vsub.f32 %v1678, %v1679
        %v1681 = vsub.f32 %v1671, %v1677
        %v1682 = vadd.f32 %v1680, 1e-05
        %v1683 = vrsqrt.pop %v1682
        %v1684 = vmul.f32 %v1683, %v1682
        %v1685 = vmul.f32 %v1684, %v1683
        %v1686 = vmul.f32 0.5, %v1685
        %v1687 = vsub.f32 1.5, %v1686
        %v1688 = vmul.f32 %v1683, %v1687
        %vm1689 = vweird.f32 %v1682
        %vm1690 = vweird.f32 %v1683
        %vm1691 = vmor %vm1689, %vm1690
        %v1692 = vsel %vm1691, %v1683, %v1688
        %v1693 = vmul.f32 %v1681, %v1692
        %v1694 = vperm.slane %v1127, 0
        %v1695 = vmul.f32 %v1693, %v1694
        %v1696 = vperm.slane %v1128, 0
        %v1697 = vadd.f32 %v1695, %v1696
        %v1698 = vld [vmem:[%s869] sm:$0xff]
        %v1699 = vld [vmem:[%s869 + $0x8] sm:$0xff]
        %v1700 = vld [vmem:[%s869 + $0x10] sm:$0xff]
        %v1701 = vld [vmem:[%s869 + $0x18] sm:$0xff]
        %v1702 = vld [vmem:[%s869 + $0x20] sm:$0xff]
        %v1703 = vld [vmem:[%s869 + $0x28] sm:$0xff]
        %v1704 = vld [vmem:[%s869 + $0x30] sm:$0xff]
        %v1705 = vld [vmem:[%s869 + $0x38] sm:$0xff]
        %v1706 = vld [vmem:[%s869 + $0x40] sm:$0xff]
        %v1707 = vld [vmem:[%s869 + $0x48] sm:$0xff]
        %v1708 = vld [vmem:[%s869 + $0x50] sm:$0xff]
        %v1709 = vld [vmem:[%s869 + $0x58] sm:$0xff]
        %v1710 = vld [vmem:[%s869 + $0x60] sm:$0xff]
        %v1711 = vld [vmem:[%s869 + $0x68] sm:$0xff]
        %v1712 = vld [vmem:[%s869 + $0x70] sm:$0xff]
        %v1713 = vld [vmem:[%s869 + $0x78] sm:$0xff]
        %v1714 = vld [vmem:[%s1054] sm:$0x1]
        %v1716 = vperm.slane %v1714, 0
        %1718 = vmatpush.msra.mxu0 %v1713
        %1719 = vmatpush.msra.mxu0 %v1712
        %1720 = vmatpush.msra.mxu0 %v1711
        %1721 = vmatpush.msra.mxu0 %v1710
        %1722 = vmatpush.msra.mxu0 %v1709
        %1723 = vmatpush.msra.mxu0 %v1708
        %1724 = vmatpush.msra.mxu0 %v1707
        %1725 = vmatpush.msra.mxu0 %v1706
        %1726 = vmatpush.msra.mxu0 %v1705
        %1727 = vmatpush.msra.mxu0 %v1704
        %1728 = vmatpush.msra.mxu0 %v1703
        %1729 = vmatpush.msra.mxu0 %v1702
        %1730 = vmatpush.msra.mxu0 %v1701
        %1731 = vmatpush.msra.mxu0 %v1700
        %1732 = vmatpush.msra.mxu0 %v1699
        %1733 = vmatpush.msra.mxu0 %v1698
        %1734 = vmatmul.f32.gmra.mxu0 %v1697
        %v1735 = vpop.f32.mrf.mxu0
        %v1736 = vadd.f32 %v1716, %v1735
        %1737 = vdwg.mxu0
        %v1738 = vld [vmem:[%s879] sm:$0xff]
        %v1739 = vld [vmem:[%s879 + $0x8] sm:$0xff]
        %v1740 = vld [vmem:[%s879 + $0x10] sm:$0xff]
        %v1741 = vld [vmem:[%s879 + $0x18] sm:$0xff]
        %v1742 = vld [vmem:[%s879 + $0x20] sm:$0xff]
        %v1743 = vld [vmem:[%s879 + $0x28] sm:$0xff]
        %v1744 = vld [vmem:[%s879 + $0x30] sm:$0xff]
        %v1745 = vld [vmem:[%s879 + $0x38] sm:$0xff]
        %v1746 = vld [vmem:[%s879 + $0x40] sm:$0xff]
        %v1747 = vld [vmem:[%s879 + $0x48] sm:$0xff]
        %v1748 = vld [vmem:[%s879 + $0x50] sm:$0xff]
        %v1749 = vld [vmem:[%s879 + $0x58] sm:$0xff]
        %v1750 = vld [vmem:[%s879 + $0x60] sm:$0xff]
        %v1751 = vld [vmem:[%s879 + $0x68] sm:$0xff]
        %v1752 = vld [vmem:[%s879 + $0x70] sm:$0xff]
        %v1753 = vld [vmem:[%s879 + $0x78] sm:$0xff]
        %v1754 = vld [vmem:[%s879 + $0x80] sm:$0xff]
        %v1755 = vld [vmem:[%s879 + $0x88] sm:$0xff]
        %v1756 = vld [vmem:[%s879 + $0x90] sm:$0xff]
        %v1757 = vld [vmem:[%s879 + $0x98] sm:$0xff]
        %v1758 = vld [vmem:[%s879 + $0xa0] sm:$0xff]
        %v1759 = vld [vmem:[%s879 + $0xa8] sm:$0xff]
        %v1760 = vld [vmem:[%s879 + $0xb0] sm:$0xff]
        %v1761 = vld [vmem:[%s879 + $0xb8] sm:$0xff]
        %v1762 = vld [vmem:[%s879 + $0xc0] sm:$0xff]
        %v1763 = vld [vmem:[%s879 + $0xc8] sm:$0xff]
        %v1764 = vld [vmem:[%s879 + $0xd0] sm:$0xff]
        %v1765 = vld [vmem:[%s879 + $0xd8] sm:$0xff]
        %v1766 = vld [vmem:[%s879 + $0xe0] sm:$0xff]
        %v1767 = vld [vmem:[%s879 + $0xe8] sm:$0xff]
        %v1768 = vld [vmem:[%s879 + $0xf0] sm:$0xff]
        %v1769 = vld [vmem:[%s879 + $0xf8] sm:$0xff]
        %v1770 = vld [vmem:[%s1058] sm:$0x3]
        %v1772 = vperm.slane %v1770, 0
        %v1773 = vperm.slane %v1770, 1
        %1776 = vmatpush.msra.mxu0 %v1768
        %1777 = vmatpush.msra.mxu0 %v1766
        %1778 = vmatpush.msra.mxu0 %v1764
        %1779 = vmatpush.msra.mxu0 %v1762
        %1780 = vmatpush.msra.mxu0 %v1760
        %1781 = vmatpush.msra.mxu0 %v1758
        %1782 = vmatpush.msra.mxu0 %v1756
        %1783 = vmatpush.msra.mxu0 %v1754
        %1784 = vmatpush.msra.mxu0 %v1752
        %1785 = vmatpush.msra.mxu0 %v1750
        %1786 = vmatpush.msra.mxu0 %v1748
        %1787 = vmatpush.msra.mxu0 %v1746
        %1788 = vmatpush.msra.mxu0 %v1744
        %1789 = vmatpush.msra.mxu0 %v1742
        %1790 = vmatpush.msra.mxu0 %v1740
        %1791 = vmatpush.msra.mxu0 %v1738
        %1792 = vmatmul.f32.gmra.mxu0 %v1125
        %v1793 = vpop.f32.mrf.mxu0
        %v1794 = vadd.f32 %v1772, %v1793
        %1795 = vmatmul.f32.gmra.mxu0 %v1126
        %v1796 = vpop.f32.mrf.mxu0
        %v1797 = vadd.f32 %v1772, %v1796
        %1798 = vdwg.mxu0
        %1799 = vmatpush.msra.mxu0 %v1769
        %1800 = vmatpush.msra.mxu0 %v1767
        %1801 = vmatpush.msra.mxu0 %v1765
        %1802 = vmatpush.msra.mxu0 %v1763
        %1803 = vmatpush.msra.mxu0 %v1761
        %1804 = vmatpush.msra.mxu0 %v1759
        %1805 = vmatpush.msra.mxu0 %v1757
        %1806 = vmatpush.msra.mxu0 %v1755
        %1807 = vmatpush.msra.mxu0 %v1753
        %1808 = vmatpush.msra.mxu0 %v1751
        %1809 = vmatpush.msra.mxu0 %v1749
        %1810 = vmatpush.msra.mxu0 %v1747
        %1811 = vmatpush.msra.mxu0 %v1745
        %1812 = vmatpush.msra.mxu0 %v1743
        %1813 = vmatpush.msra.mxu0 %v1741
        %1814 = vmatpush.msra.mxu0 %v1739
        %1815 = vmatmul.f32.gmra.mxu0 %v1125
        %v1816 = vpop.f32.mrf.mxu0
        %v1817 = vadd.f32 %v1773, %v1816
        %1818 = vmatmul.f32.gmra.mxu0 %v1126
        %v1819 = vpop.f32.mrf.mxu0
        %v1820 = vadd.f32 %v1773, %v1819
        %1821 = vdwg.mxu0
        %1823 = vrot.lane.b32.xlu0 %v1736, 96
        %v1824 = vpop.permute.xlu0 %1823
        %1825 = vrot.lane.b32.xlu0 %v1736, 64
        %v1826 = vpop.permute.xlu0 %1825
        %1827 = vrot.lane.b32.xlu0 %v1736, 32
        %v1828 = vpop.permute.xlu0 %1827
        %1831 = vrot.lane.b32.xlu0 %v1794, 96
        %v1832 = vpop.permute.xlu0 %1831
        %1833 = vrot.lane.b32.xlu0 %v1797, 96
        %v1834 = vpop.permute.xlu0 %1833
        %1835 = vrot.lane.b32.xlu0 %v1794, 64
        %v1836 = vpop.permute.xlu0 %1835
        %1837 = vrot.lane.b32.xlu0 %v1797, 64
        %v1838 = vpop.permute.xlu0 %1837
        %1839 = vrot.lane.b32.xlu0 %v1794, 32
        %v1840 = vpop.permute.xlu0 %1839
        %1841 = vrot.lane.b32.xlu0 %v1797, 32
        %v1842 = vpop.permute.xlu0 %1841
        %1845 = vrot.lane.b32.xlu0 %v1817, 96
        %v1846 = vpop.permute.xlu0 %1845
        %1847 = vrot.lane.b32.xlu0 %v1820, 96
        %v1848 = vpop.permute.xlu0 %1847
        %1851 = vrot.lane.b32.xlu0 %v1817, 64
        %v1852 = vpop.permute.xlu0 %1851
        %1853 = vrot.lane.b32.xlu0 %v1820, 64
        %v1854 = vpop.permute.xlu0 %1853
        %1857 = vrot.lane.b32.xlu0 %v1817, 32
        %v1858 = vpop.permute.xlu0 %1857
        %1859 = vrot.lane.b32.xlu0 %v1820, 32
        %v1860 = vpop.permute.xlu0 %1859
        %v1863 = vsel %vm1269, %v1736, 0
        %v1865 = vsel %vm1269, %v1794, 0
        %v1867 = vsel %vm1269, %v1797, 0
        %1869 = vmatpush.xpose.msra.mxu0 0.0
        %1870 = vmatpush.xpose.msra.mxu0 0.0
        %1871 = vmatpush.xpose.msra.mxu0 0.0
        %1872 = vmatpush.xpose.msra.mxu0 0.0
        %1873 = vmatpush.xpose.msra.mxu0 0.0
        %1874 = vmatpush.xpose.msra.mxu0 0.0
        %1875 = vmatpush.xpose.msra.mxu0 0.0
        %1876 = vmatpush.xpose.msra.mxu0 0.0
        %1877 = vmatpush.xpose.msra.mxu0 0.0
        %1878 = vmatpush.xpose.msra.mxu0 0.0
        %1879 = vmatpush.xpose.msra.mxu0 0.0
        %1880 = vmatpush.xpose.msra.mxu0 0.0
        %1881 = vmatpush.xpose.msra.mxu0 0.0
        %1882 = vmatpush.xpose.msra.mxu0 0.0
        %1883 = vmatpush.xpose.msra.mxu0 %v1867
        %1884 = vmatpush.xpose.msra.mxu0 %v1865
        %1885 = vmatmul.f32.gmra.mxu0 %v1863
        %v1886 = vpop.f32.mrf.mxu0
        %v1887 = vadd.f32 0.0, %v1886
        %1888 = vdwg.mxu0
        %v1889 = vsel %vm1269, %v1824, 0
        %v1891 = vsel %vm1269, %v1832, 0
        %v1893 = vsel %vm1269, %v1834, 0
        %1895 = vmatpush.xpose.msra.mxu0 0.0
        %1896 = vmatpush.xpose.msra.mxu0 0.0
        %1897 = vmatpush.xpose.msra.mxu0 0.0
        %1898 = vmatpush.xpose.msra.mxu0 0.0
        %1899 = vmatpush.xpose.msra.mxu0 0.0
        %1900 = vmatpush.xpose.msra.mxu0 0.0
        %1901 = vmatpush.xpose.msra.mxu0 0.0
        %1902 = vmatpush.xpose.msra.mxu0 0.0
        %1903 = vmatpush.xpose.msra.mxu0 0.0
        %1904 = vmatpush.xpose.msra.mxu0 0.0
        %1905 = vmatpush.xpose.msra.mxu0 0.0
        %1906 = vmatpush.xpose.msra.mxu0 0.0
        %1907 = vmatpush.xpose.msra.mxu0 0.0
        %1908 = vmatpush.xpose.msra.mxu0 0.0
        %1909 = vmatpush.xpose.msra.mxu0 %v1893
        %1910 = vmatpush.xpose.msra.mxu0 %v1891
        %1911 = vmatmul.f32.gmra.mxu0 %v1889
        %v1912 = vpop.f32.mrf.mxu0
        %v1913 = vadd.f32 0.0, %v1912
        %1914 = vdwg.mxu0
        %v1915 = vsel %vm1269, %v1826, 0
        %v1917 = vsel %vm1269, %v1836, 0
        %v1919 = vsel %vm1269, %v1838, 0
        %1921 = vmatpush.xpose.msra.mxu0 0.0
        %1922 = vmatpush.xpose.msra.mxu0 0.0
        %1923 = vmatpush.xpose.msra.mxu0 0.0
        %1924 = vmatpush.xpose.msra.mxu0 0.0
        %1925 = vmatpush.xpose.msra.mxu0 0.0
        %1926 = vmatpush.xpose.msra.mxu0 0.0
        %1927 = vmatpush.xpose.msra.mxu0 0.0
        %1928 = vmatpush.xpose.msra.mxu0 0.0
        %1929 = vmatpush.xpose.msra.mxu0 0.0
        %1930 = vmatpush.xpose.msra.mxu0 0.0
        %1931 = vmatpush.xpose.msra.mxu0 0.0
        %1932 = vmatpush.xpose.msra.mxu0 0.0
        %1933 = vmatpush.xpose.msra.mxu0 0.0
        %1934 = vmatpush.xpose.msra.mxu0 0.0
        %1935 = vmatpush.xpose.msra.mxu0 %v1919
        %1936 = vmatpush.xpose.msra.mxu0 %v1917
        %1937 = vmatmul.f32.gmra.mxu0 %v1915
        %v1938 = vpop.f32.mrf.mxu0
        %v1939 = vadd.f32 0.0, %v1938
        %1940 = vdwg.mxu0
        %v1941 = vsel %vm1269, %v1828, 0
        %v1943 = vsel %vm1269, %v1840, 0
        %v1945 = vsel %vm1269, %v1842, 0
        %1947 = vmatpush.xpose.msra.mxu0 0.0
        %1948 = vmatpush.xpose.msra.mxu0 0.0
        %1949 = vmatpush.xpose.msra.mxu0 0.0
        %1950 = vmatpush.xpose.msra.mxu0 0.0
        %1951 = vmatpush.xpose.msra.mxu0 0.0
        %1952 = vmatpush.xpose.msra.mxu0 0.0
        %1953 = vmatpush.xpose.msra.mxu0 0.0
        %1954 = vmatpush.xpose.msra.mxu0 0.0
        %1955 = vmatpush.xpose.msra.mxu0 0.0
        %1956 = vmatpush.xpose.msra.mxu0 0.0
        %1957 = vmatpush.xpose.msra.mxu0 0.0
        %1958 = vmatpush.xpose.msra.mxu0 0.0
        %1959 = vmatpush.xpose.msra.mxu0 0.0
        %1960 = vmatpush.xpose.msra.mxu0 0.0
        %1961 = vmatpush.xpose.msra.mxu0 %v1945
        %1962 = vmatpush.xpose.msra.mxu0 %v1943
        %1963 = vmatmul.f32.gmra.mxu0 %v1941
        %v1964 = vpop.f32.mrf.mxu0
        %v1965 = vadd.f32 0.0, %v1964
        %1966 = vdwg.mxu0
        %vm1967 = vcmask 130048
        %v1968 = vsel %vm1967, %v1887, -inf
        %1969 = vmax.xlane.f32.xlu0 %v1968
        %v1970 = vpop.xlane.xlu0 %1969
        %v1971 = vsel %vm1967, %v1913, -inf
        %1972 = vmax.xlane.f32.xlu0 %v1971
        %v1973 = vpop.xlane.xlu0 %1972
        %v1974 = vsel %vm1967, %v1939, -inf
        %1975 = vmax.xlane.f32.xlu0 %v1974
        %v1976 = vpop.xlane.xlu0 %1975
        %v1977 = vsel %vm1967, %v1965, -inf
        %1978 = vmax.xlane.f32.xlu0 %v1977
        %v1979 = vpop.xlane.xlu0 %1978
        %v1980 = vsub.f32 %v1887, %v1970
        %v1981 = vsub.f32 %v1913, %v1973
        %v1982 = vsub.f32 %v1939, %v1976
        %v1983 = vsub.f32 %v1965, %v1979
        %v1984 = vmul.f32 %v1980, 1.442695
        %v1985 = vpow.pop %v1984
        %v1986 = vmul.f32 %v1981, 1.442695
        %v1987 = vpow.pop %v1986
        %v1988 = vmul.f32 %v1982, 1.442695
        %v1989 = vpow.pop %v1988
        %v1990 = vmul.f32 %v1983, 1.442695
        %v1991 = vpow.pop %v1990
        %v1992 = vsel %vm1967, %v1985, 0.0
        %1993 = vadd.xlane.f32.xlu0 %v1992
        %v1994 = vpop.xlane.xlu0 %1993
        %v1995 = vsel %vm1967, %v1987, 0.0
        %1996 = vadd.xlane.f32.xlu0 %v1995
        %v1997 = vpop.xlane.xlu0 %1996
        %v1998 = vsel %vm1967, %v1989, 0.0
        %1999 = vadd.xlane.f32.xlu0 %v1998
        %v2000 = vpop.xlane.xlu0 %1999
        %v2001 = vsel %vm1967, %v1991, 0.0
        %2002 = vadd.xlane.f32.xlu0 %v2001
        %v2003 = vpop.xlane.xlu0 %2002
        %v2004 = vrcp.pop %v1994
        %v2005 = vmul.f32 %v1994, %v2004
        %v2006 = vsub.f32 1.0, %v2005
        %v2007 = vmul.f32 %v2004, %v2006
        %v2008 = vadd.f32 %v2004, %v2007
        %vm2009 = vweird.f32 %v1994
        %vm2010 = vweird.f32 %v2004
        %vm2011 = vmor %vm2009, %vm2010
        %v2012 = vsel %vm2011, %v2004, %v2008
        %v2013 = vand.u32 2147483647, %v1994
        %vm2014 = vcmp.eq.f32.partialorder %v2013, 8.507059e+37
        %v2015 = vand.u32 %v1994, 2147483648
        %v2016 = vor.u32 1.1754944e-38, %v2015
        %v2017 = vsel %vm2014, %v2016, %v2012
        %v2018 = vmul.f32 %v1985, %v2017
        %v2019 = vrcp.pop %v1997
        %v2020 = vmul.f32 %v1997, %v2019
        %v2021 = vsub.f32 1.0, %v2020
        %v2022 = vmul.f32 %v2019, %v2021
        %v2023 = vadd.f32 %v2019, %v2022
        %vm2024 = vweird.f32 %v1997
        %vm2025 = vweird.f32 %v2019
        %vm2026 = vmor %vm2024, %vm2025
        %v2027 = vsel %vm2026, %v2019, %v2023
        %v2028 = vand.u32 2147483647, %v1997
        %vm2029 = vcmp.eq.f32.partialorder %v2028, 8.507059e+37
        %v2030 = vand.u32 %v1997, 2147483648
        %v2031 = vor.u32 1.1754944e-38, %v2030
        %v2032 = vsel %vm2029, %v2031, %v2027
        %v2033 = vmul.f32 %v1987, %v2032
        %v2034 = vrcp.pop %v2000
        %v2035 = vmul.f32 %v2000, %v2034
        %v2036 = vsub.f32 1.0, %v2035
        %v2037 = vmul.f32 %v2034, %v2036
        %v2038 = vadd.f32 %v2034, %v2037
        %vm2039 = vweird.f32 %v2000
        %vm2040 = vweird.f32 %v2034
        %vm2041 = vmor %vm2039, %vm2040
        %v2042 = vsel %vm2041, %v2034, %v2038
        %v2043 = vand.u32 2147483647, %v2000
        %vm2044 = vcmp.eq.f32.partialorder %v2043, 8.507059e+37
        %v2045 = vand.u32 %v2000, 2147483648
        %v2046 = vor.u32 1.1754944e-38, %v2045
        %v2047 = vsel %vm2044, %v2046, %v2042
        %v2048 = vmul.f32 %v1989, %v2047
        %v2049 = vrcp.pop %v2003
        %v2050 = vmul.f32 %v2003, %v2049
        %v2051 = vsub.f32 1.0, %v2050
        %v2052 = vmul.f32 %v2049, %v2051
        %v2053 = vadd.f32 %v2049, %v2052
        %vm2054 = vweird.f32 %v2003
        %vm2055 = vweird.f32 %v2049
        %vm2056 = vmor %vm2054, %vm2055
        %v2057 = vsel %vm2056, %v2049, %v2053
        %v2058 = vand.u32 2147483647, %v2003
        %vm2059 = vcmp.eq.f32.partialorder %v2058, 8.507059e+37
        %v2060 = vand.u32 %v2003, 2147483648
        %v2061 = vor.u32 1.1754944e-38, %v2060
        %v2062 = vsel %vm2059, %v2061, %v2057
        %v2063 = vmul.f32 %v1991, %v2062
        %v2065 = vsel %vm1967, %v2018, 0
        %2067 = vmatpush.msra.mxu0 0.0
        %2068 = vmatpush.msra.mxu0 0.0
        %2069 = vmatpush.msra.mxu0 0.0
        %2070 = vmatpush.msra.mxu0 0.0
        %2071 = vmatpush.msra.mxu0 0.0
        %2072 = vmatpush.msra.mxu0 0.0
        %2073 = vmatpush.msra.mxu0 0.0
        %2074 = vmatpush.msra.mxu0 0.0
        %2075 = vmatpush.msra.mxu0 0.0
        %2076 = vmatpush.msra.mxu0 0.0
        %2077 = vmatpush.msra.mxu0 0.0
        %2078 = vmatpush.msra.mxu0 0.0
        %2079 = vmatpush.msra.mxu0 0.0
        %2080 = vmatpush.msra.mxu0 0.0
        %2081 = vmatpush.msra.mxu0 %v1820
        %2082 = vmatpush.msra.mxu0 %v1817
        %2083 = vmatmul.f32.gmra.mxu0 %v2065
        %v2084 = vpop.f32.mrf.mxu0
        %v2085 = vadd.f32 0.0, %v2084
        %2086 = vdwg.mxu0
        %v2088 = vsel %vm1967, %v2033, 0
        %2090 = vmatpush.msra.mxu0 0.0
        %2091 = vmatpush.msra.mxu0 0.0
        %2092 = vmatpush.msra.mxu0 0.0
        %2093 = vmatpush.msra.mxu0 0.0
        %2094 = vmatpush.msra.mxu0 0.0
        %2095 = vmatpush.msra.mxu0 0.0
        %2096 = vmatpush.msra.mxu0 0.0
        %2097 = vmatpush.msra.mxu0 0.0
        %2098 = vmatpush.msra.mxu0 0.0
        %2099 = vmatpush.msra.mxu0 0.0
        %2100 = vmatpush.msra.mxu0 0.0
        %2101 = vmatpush.msra.mxu0 0.0
        %2102 = vmatpush.msra.mxu0 0.0
        %2103 = vmatpush.msra.mxu0 0.0
        %2104 = vmatpush.msra.mxu0 %v1848
        %2105 = vmatpush.msra.mxu0 %v1846
        %2106 = vmatmul.f32.gmra.mxu0 %v2088
        %v2107 = vpop.f32.mrf.mxu0
        %v2108 = vadd.f32 0.0, %v2107
        %2109 = vdwg.mxu0
        %v2111 = vsel %vm1967, %v2048, 0
        %2113 = vmatpush.msra.mxu0 0.0
        %2114 = vmatpush.msra.mxu0 0.0
        %2115 = vmatpush.msra.mxu0 0.0
        %2116 = vmatpush.msra.mxu0 0.0
        %2117 = vmatpush.msra.mxu0 0.0
        %2118 = vmatpush.msra.mxu0 0.0
        %2119 = vmatpush.msra.mxu0 0.0
        %2120 = vmatpush.msra.mxu0 0.0
        %2121 = vmatpush.msra.mxu0 0.0
        %2122 = vmatpush.msra.mxu0 0.0
        %2123 = vmatpush.msra.mxu0 0.0
        %2124 = vmatpush.msra.mxu0 0.0
        %2125 = vmatpush.msra.mxu0 0.0
        %2126 = vmatpush.msra.mxu0 0.0
        %2127 = vmatpush.msra.mxu0 %v1854
        %2128 = vmatpush.msra.mxu0 %v1852
        %2129 = vmatmul.f32.gmra.mxu0 %v2111
        %v2130 = vpop.f32.mrf.mxu0
        %v2131 = vadd.f32 0.0, %v2130
        %2132 = vdwg.mxu0
        %v2134 = vsel %vm1967, %v2063, 0
        %2136 = vmatpush.msra.mxu0 0.0
        %2137 = vmatpush.msra.mxu0 0.0
        %2138 = vmatpush.msra.mxu0 0.0
        %2139 = vmatpush.msra.mxu0 0.0
        %2140 = vmatpush.msra.mxu0 0.0
        %2141 = vmatpush.msra.mxu0 0.0
        %2142 = vmatpush.msra.mxu0 0.0
        %2143 = vmatpush.msra.mxu0 0.0
        %2144 = vmatpush.msra.mxu0 0.0
        %2145 = vmatpush.msra.mxu0 0.0
        %2146 = vmatpush.msra.mxu0 0.0
        %2147 = vmatpush.msra.mxu0 0.0
        %2148 = vmatpush.msra.mxu0 0.0
        %2149 = vmatpush.msra.mxu0 0.0
        %2150 = vmatpush.msra.mxu0 %v1860
        %2151 = vmatpush.msra.mxu0 %v1858
        %2152 = vmatmul.f32.gmra.mxu0 %v2134
        %v2153 = vpop.f32.mrf.mxu0
        %v2154 = vadd.f32 0.0, %v2153
        %2155 = vdwg.mxu0
        %v2156 = vld [vmem:[%s889] sm:$0xff]
        %v2157 = vld [vmem:[%s889 + $0x8] sm:$0xff]
        %v2158 = vld [vmem:[%s889 + $0x10] sm:$0xff]
        %v2159 = vld [vmem:[%s889 + $0x18] sm:$0xff]
        %v2160 = vld [vmem:[%s889 + $0x20] sm:$0xff]
        %v2161 = vld [vmem:[%s889 + $0x28] sm:$0xff]
        %v2162 = vld [vmem:[%s889 + $0x30] sm:$0xff]
        %v2163 = vld [vmem:[%s889 + $0x38] sm:$0xff]
        %v2164 = vld [vmem:[%s889 + $0x40] sm:$0xff]
        %v2165 = vld [vmem:[%s889 + $0x48] sm:$0xff]
        %v2166 = vld [vmem:[%s889 + $0x50] sm:$0xff]
        %v2167 = vld [vmem:[%s889 + $0x58] sm:$0xff]
        %v2168 = vld [vmem:[%s889 + $0x60] sm:$0xff]
        %v2169 = vld [vmem:[%s889 + $0x68] sm:$0xff]
        %v2170 = vld [vmem:[%s889 + $0x70] sm:$0xff]
        %v2171 = vld [vmem:[%s889 + $0x78] sm:$0xff]
        %v2172 = vld [vmem:[%s1061] sm:$0x1]
        %v2174 = vsel %vm1269, %v2085, 0
        %2176 = vmatpush.msra.mxu0 0.0
        %2177 = vmatpush.msra.mxu0 0.0
        %2178 = vmatpush.msra.mxu0 0.0
        %2179 = vmatpush.msra.mxu0 0.0
        %2180 = vmatpush.msra.mxu0 0.0
        %2181 = vmatpush.msra.mxu0 0.0
        %2182 = vmatpush.msra.mxu0 0.0
        %2183 = vmatpush.msra.mxu0 0.0
        %2184 = vmatpush.msra.mxu0 0.0
        %2185 = vmatpush.msra.mxu0 0.0
        %2186 = vmatpush.msra.mxu0 0.0
        %2187 = vmatpush.msra.mxu0 0.0
        %2188 = vmatpush.msra.mxu0 %v2159
        %2189 = vmatpush.msra.mxu0 %v2158
        %2190 = vmatpush.msra.mxu0 %v2157
        %2191 = vmatpush.msra.mxu0 %v2156
        %2192 = vmatmul.f32.gmra.mxu0 %v2174
        %v2193 = vpop.f32.mrf.mxu0
        %v2194 = vadd.f32 0.0, %v2193
        %2195 = vdwg.mxu0
        %v2197 = vsel %vm1269, %v2108, 0
        %2199 = vmatpush.msra.mxu0 0.0
        %2200 = vmatpush.msra.mxu0 0.0
        %2201 = vmatpush.msra.mxu0 0.0
        %2202 = vmatpush.msra.mxu0 0.0
        %2203 = vmatpush.msra.mxu0 0.0
        %2204 = vmatpush.msra.mxu0 0.0
        %2205 = vmatpush.msra.mxu0 0.0
        %2206 = vmatpush.msra.mxu0 0.0
        %2207 = vmatpush.msra.mxu0 0.0
        %2208 = vmatpush.msra.mxu0 0.0
        %2209 = vmatpush.msra.mxu0 0.0
        %2210 = vmatpush.msra.mxu0 0.0
        %2211 = vmatpush.msra.mxu0 %v2163
        %2212 = vmatpush.msra.mxu0 %v2162
        %2213 = vmatpush.msra.mxu0 %v2161
        %2214 = vmatpush.msra.mxu0 %v2160
        %2215 = vmatmul.f32.gmra.mxu0 %v2197
        %v2216 = vpop.f32.mrf.mxu0
        %v2217 = vadd.f32 0.0, %v2216
        %2218 = vdwg.mxu0
        %v2220 = vsel %vm1269, %v2131, 0
        %2222 = vmatpush.msra.mxu0 0.0
        %2223 = vmatpush.msra.mxu0 0.0
        %2224 = vmatpush.msra.mxu0 0.0
        %2225 = vmatpush.msra.mxu0 0.0
        %2226 = vmatpush.msra.mxu0 0.0
        %2227 = vmatpush.msra.mxu0 0.0
        %2228 = vmatpush.msra.mxu0 0.0
        %2229 = vmatpush.msra.mxu0 0.0
        %2230 = vmatpush.msra.mxu0 0.0
        %2231 = vmatpush.msra.mxu0 0.0
        %2232 = vmatpush.msra.mxu0 0.0
        %2233 = vmatpush.msra.mxu0 0.0
        %2234 = vmatpush.msra.mxu0 %v2167
        %2235 = vmatpush.msra.mxu0 %v2166
        %2236 = vmatpush.msra.mxu0 %v2165
        %2237 = vmatpush.msra.mxu0 %v2164
        %2238 = vmatmul.f32.gmra.mxu0 %v2220
        %v2239 = vpop.f32.mrf.mxu0
        %v2240 = vadd.f32 0.0, %v2239
        %2241 = vdwg.mxu0
        %v2243 = vsel %vm1269, %v2154, 0
        %2245 = vmatpush.msra.mxu0 0.0
        %2246 = vmatpush.msra.mxu0 0.0
        %2247 = vmatpush.msra.mxu0 0.0
        %2248 = vmatpush.msra.mxu0 0.0
        %2249 = vmatpush.msra.mxu0 0.0
        %2250 = vmatpush.msra.mxu0 0.0
        %2251 = vmatpush.msra.mxu0 0.0
        %2252 = vmatpush.msra.mxu0 0.0
        %2253 = vmatpush.msra.mxu0 0.0
        %2254 = vmatpush.msra.mxu0 0.0
        %2255 = vmatpush.msra.mxu0 0.0
        %2256 = vmatpush.msra.mxu0 0.0
        %2257 = vmatpush.msra.mxu0 %v2171
        %2258 = vmatpush.msra.mxu0 %v2170
        %2259 = vmatpush.msra.mxu0 %v2169
        %2260 = vmatpush.msra.mxu0 %v2168
        %2261 = vmatmul.f32.gmra.mxu0 %v2243
        %v2262 = vpop.f32.mrf.mxu0
        %v2263 = vadd.f32 0.0, %v2262
        %2264 = vdwg.mxu0
        %v2265 = vadd.f32 %v2194, %v2217
        %v2266 = vadd.f32 %v2265, %v2240
        %v2267 = vadd.f32 %v2266, %v2263
        %v2269 = vperm.slane %v2172, 0
        %v2271 = vadd.f32 %v2267, %v2269
        %v2272 = vadd.f32 %v1697, %v2271
        %2273 = vadd.xlane.f32.xlu0 %v2272
        %v2274 = vpop.xlane.xlu0 %2273
        %v2275 = vmul.f32 %v2272, %v2272
        %2276 = vadd.xlane.f32.xlu0 %v2275
        %v2277 = vpop.xlane.xlu0 %2276
        %v2278 = vmul.f32 %v2274, 0.03125
        %v2279 = vmul.f32 %v2277, 0.03125
        %v2280 = vmul.f32 %v2278, %v2278
        %v2281 = vsub.f32 %v2279, %v2280
        %v2282 = vsub.f32 %v2272, %v2278
        %v2283 = vadd.f32 %v2281, 1e-05
        %v2284 = vrsqrt.pop %v2283
        %v2285 = vmul.f32 %v2284, %v2283
        %v2286 = vmul.f32 %v2285, %v2284
        %v2287 = vmul.f32 0.5, %v2286
        %v2288 = vsub.f32 1.5, %v2287
        %v2289 = vmul.f32 %v2284, %v2288
        %vm2290 = vweird.f32 %v2283
        %vm2291 = vweird.f32 %v2284
        %vm2292 = vmor %vm2290, %vm2291
        %v2293 = vsel %vm2292, %v2284, %v2289
        %v2294 = vmul.f32 %v2282, %v2293
        %v2295 = vperm.slane %v1127, 1
        %v2296 = vmul.f32 %v2294, %v2295
        %v2297 = vperm.slane %v1128, 1
        %v2298 = vadd.f32 %v2296, %v2297
        %v2299 = vld [vmem:[%s899] sm:$0xff]
        %v2300 = vld [vmem:[%s899 + $0x8] sm:$0xff]
        %v2301 = vld [vmem:[%s899 + $0x10] sm:$0xff]
        %v2302 = vld [vmem:[%s899 + $0x18] sm:$0xff]
        %v2303 = vld [vmem:[%s899 + $0x20] sm:$0xff]
        %v2304 = vld [vmem:[%s899 + $0x28] sm:$0xff]
        %v2305 = vld [vmem:[%s899 + $0x30] sm:$0xff]
        %v2306 = vld [vmem:[%s899 + $0x38] sm:$0xff]
        %v2307 = vld [vmem:[%s899 + $0x40] sm:$0xff]
        %v2308 = vld [vmem:[%s899 + $0x48] sm:$0xff]
        %v2309 = vld [vmem:[%s899 + $0x50] sm:$0xff]
        %v2310 = vld [vmem:[%s899 + $0x58] sm:$0xff]
        %v2311 = vld [vmem:[%s899 + $0x60] sm:$0xff]
        %v2312 = vld [vmem:[%s899 + $0x68] sm:$0xff]
        %v2313 = vld [vmem:[%s899 + $0x70] sm:$0xff]
        %v2314 = vld [vmem:[%s899 + $0x78] sm:$0xff]
        %v2315 = vld [vmem:[%s1072] sm:$0x1]
        %v2317 = vperm.slane %v2315, 0
        %2319 = vmatpush.msra.mxu0 %v2314
        %2320 = vmatpush.msra.mxu0 %v2313
        %2321 = vmatpush.msra.mxu0 %v2312
        %2322 = vmatpush.msra.mxu0 %v2311
        %2323 = vmatpush.msra.mxu0 %v2310
        %2324 = vmatpush.msra.mxu0 %v2309
        %2325 = vmatpush.msra.mxu0 %v2308
        %2326 = vmatpush.msra.mxu0 %v2307
        %2327 = vmatpush.msra.mxu0 %v2306
        %2328 = vmatpush.msra.mxu0 %v2305
        %2329 = vmatpush.msra.mxu0 %v2304
        %2330 = vmatpush.msra.mxu0 %v2303
        %2331 = vmatpush.msra.mxu0 %v2302
        %2332 = vmatpush.msra.mxu0 %v2301
        %2333 = vmatpush.msra.mxu0 %v2300
        %2334 = vmatpush.msra.mxu0 %v2299
        %2335 = vmatmul.f32.gmra.mxu0 %v2298
        %v2336 = vpop.f32.mrf.mxu0
        %v2337 = vadd.f32 %v2317, %v2336
        %2338 = vdwg.mxu0
        %v2339 = vmax.f32 %v2337, 0.0
        %v2340 = vld [vmem:[%s909] sm:$0xff]
        %v2341 = vld [vmem:[%s909 + $0x8] sm:$0xff]
        %v2342 = vld [vmem:[%s909 + $0x10] sm:$0xff]
        %v2343 = vld [vmem:[%s909 + $0x18] sm:$0xff]
        %v2344 = vld [vmem:[%s909 + $0x20] sm:$0xff]
        %v2345 = vld [vmem:[%s909 + $0x28] sm:$0xff]
        %v2346 = vld [vmem:[%s909 + $0x30] sm:$0xff]
        %v2347 = vld [vmem:[%s909 + $0x38] sm:$0xff]
        %v2348 = vld [vmem:[%s909 + $0x40] sm:$0xff]
        %v2349 = vld [vmem:[%s909 + $0x48] sm:$0xff]
        %v2350 = vld [vmem:[%s909 + $0x50] sm:$0xff]
        %v2351 = vld [vmem:[%s909 + $0x58] sm:$0xff]
        %v2352 = vld [vmem:[%s909 + $0x60] sm:$0xff]
        %v2353 = vld [vmem:[%s909 + $0x68] sm:$0xff]
        %v2354 = vld [vmem:[%s909 + $0x70] sm:$0xff]
        %v2355 = vld [vmem:[%s909 + $0x78] sm:$0xff]
        %v2356 = vld [vmem:[%s1075] sm:$0x1]
        %v2358 = vperm.slane %v2356, 0
        %2360 = vmatpush.msra.mxu0 %v2355
        %2361 = vmatpush.msra.mxu0 %v2354
        %2362 = vmatpush.msra.mxu0 %v2353
        %2363 = vmatpush.msra.mxu0 %v2352
        %2364 = vmatpush.msra.mxu0 %v2351
        %2365 = vmatpush.msra.mxu0 %v2350
        %2366 = vmatpush.msra.mxu0 %v2349
        %2367 = vmatpush.msra.mxu0 %v2348
        %2368 = vmatpush.msra.mxu0 %v2347
        %2369 = vmatpush.msra.mxu0 %v2346
        %2370 = vmatpush.msra.mxu0 %v2345
        %2371 = vmatpush.msra.mxu0 %v2344
        %2372 = vmatpush.msra.mxu0 %v2343
        %2373 = vmatpush.msra.mxu0 %v2342
        %2374 = vmatpush.msra.mxu0 %v2341
        %2375 = vmatpush.msra.mxu0 %v2340
        %2376 = vmatmul.f32.gmra.mxu0 %v2339
        %v2377 = vpop.f32.mrf.mxu0
        %v2378 = vadd.f32 %v2358, %v2377
        %2379 = vdwg.mxu0
        %v2380 = vadd.f32 %v2298, %v2378
        %2381 = vadd.xlane.f32.xlu0 %v2380
        %v2382 = vpop.xlane.xlu0 %2381
        %v2383 = vmul.f32 %v2380, %v2380
        %2384 = vadd.xlane.f32.xlu0 %v2383
        %v2385 = vpop.xlane.xlu0 %2384
        %v2386 = vmul.f32 %v2382, 0.03125
        %v2387 = vmul.f32 %v2385, 0.03125
        %v2388 = vmul.f32 %v2386, %v2386
        %v2389 = vsub.f32 %v2387, %v2388
        %v2390 = vsub.f32 %v2380, %v2386
        %v2391 = vadd.f32 %v2389, 1e-05
        %v2392 = vrsqrt.pop %v2391
        %v2393 = vmul.f32 %v2392, %v2391
        %v2394 = vmul.f32 %v2393, %v2392
        %v2395 = vmul.f32 0.5, %v2394
        %v2396 = vsub.f32 1.5, %v2395
        %v2397 = vmul.f32 %v2392, %v2396
        %vm2398 = vweird.f32 %v2391
        %vm2399 = vweird.f32 %v2392
        %vm2400 = vmor %vm2398, %vm2399
        %v2401 = vsel %vm2400, %v2392, %v2397
        %v2402 = vmul.f32 %v2390, %v2401
        %v2403 = vperm.slane %v1127, 2
        %v2404 = vmul.f32 %v2402, %v2403
        %v2405 = vperm.slane %v1128, 2
        %v2406 = vadd.f32 %v2404, %v2405
        %2407 = vst [vmem:[#allocation2] sm:$0xff] %v2406
        // Predicated region
        $region137: #{ptransformer_decoder.1} parent=99 // pred_check
          %p2408 = pneg %p1086
        $region138: #{ptransformer_decoder.1} parent=99 // pred_check_branch
          %2410 = sbr.rel (%p2408) target = $region140
        $region139: #{ptransformer_decoder.1} parent=99 // pred_region
          %2411 = vst [vmem:[%s1079] sm:$0xff] %v2406
        $region140: #{ptransformer_decoder.1} parent=99 // pred_fallthru
          _
        %p2412 = scmp.lt.s32.totalorder %s47, 1
        %s2413 = scalar_select %p2412, %s47, 1
        %s2414 = smul.addr %s2413, 8
        %s2415 = scalar_lea.vmem %s20, %s2414
        // Predicated region
        $region141: #{ptransformer_decoder.1} parent=99 // pred_check
          %p2416 = pneg %p583
        $region142: #{ptransformer_decoder.1} parent=99 // pred_check_branch
          %2418 = sbr.rel (%p2416) target = $region144
        $region143: #{ptransformer_decoder.1} parent=99 // pred_region
          _
        $region144: #{ptransformer_decoder.1} parent=99 // pred_fallthru
          _
      $region100: #{ptransformer_decoder.1} parent=5 // pred_fallthru
        _
      %p2419 = scmp.le.s32.totalorder 2, %s38
      // Predicated region
      $region145: #{ptransformer_decoder.1} parent=5 // pred_check
        %p2420 = pneg %p2419
      $region146: #{ptransformer_decoder.1} parent=5 // pred_check_branch
        %2422 = sbr.rel (%p2420) target = $region148
      $region147: #{ptransformer_decoder.1} parent=5 // pred_region
        %s2423 = ssub.s32 %s38, 2
        // Predicated region
        $region149: #{ptransformer_decoder.1} parent=147 // pred_check
          %p2424 = pneg %p589
        $region150: #{ptransformer_decoder.1} parent=147 // pred_check_branch
          %2426 = sbr.rel (%p2424) target = $region152
        $region151: #{ptransformer_decoder.1} parent=147 // pred_region
          %p2427 = scmp.lt.s32.totalorder %s49, 1
          %s2428 = scalar_select %p2427, %s49, 1
          %s2429 = smul.addr %s2428, 8
          %s2430 = scalar_lea.vmem %s20, %s2429
        $region152: #{ptransformer_decoder.1} parent=147 // pred_fallthru
          _
      $region148: #{ptransformer_decoder.1} parent=5 // pred_fallthru
        _
    $region6: #{ptransformer_decoder.1} parent=1 // loop_footer
      %s42 = sadd.s32 1, %s38
    $region7: #{ptransformer_decoder.1} parent=1 // loop_footer_branch
      %37 = sbr.rel target = $region3
    $region8: #{ptransformer_decoder.1} parent=1 // loop_exit
      _
    %2431 = vsyncpa [#allocation4], 1
    %s2432 = scalar_lea.sflag [#allocation4], 1
    %2433 = vsyncpa %s2432, 1
    %2434 = vsyncpa [#allocation6], 1
    %s2435 = scalar_lea.sflag [#allocation6], 1
    %2436 = vsyncpa %s2435, 1
    %2437 = vsyncpa [#allocation9], 1
    %s2438 = scalar_lea.sflag [#allocation9], 1
    %2439 = vsyncpa %s2438, 1
    %2440 = vsyncpa [#allocation12], 1
    %s2441 = scalar_lea.sflag [#allocation12], 1
    %2442 = vsyncpa %s2441, 1

</llo_original>
